<compile_context>
chip_gen: v7x
topology: tpu7x:2x2x1
jax: 0.10.0
libtpu: 0.0.40
codegen_flags: <defaults>
</compile_context>

<pallas_src>
import math

import jax
import jax.numpy as jnp
from jax.experimental import pallas as pl
from jax.experimental.pallas import tpu as pltpu  # noqa: F401  (kept for TPU backend)

# ---- small synthetic BERT config ----
VOCAB = 100
TYPE_VOCAB = 2
MAX_POS = 64
HIDDEN = 32
NUM_HEADS = 4
HEAD_DIM = HIDDEN // NUM_HEADS
INTER = 64
NUM_LAYERS = 2
LN_EPS = 1e-12

BATCH = 2
SEQ = 8


def _layernorm(x, g, b):
    mu = jnp.mean(x, axis=-1, keepdims=True)
    var = jnp.mean(jnp.square(x - mu), axis=-1, keepdims=True)
    return (x - mu) * jax.lax.rsqrt(var + LN_EPS) * g + b


def _gelu(x):
    # tanh approximation of GELU (original TF BERT formulation)
    c = math.sqrt(2.0 / math.pi)
    return 0.5 * x * (1.0 + jnp.tanh(c * (x + 0.044715 * x * x * x)))


# ---------------- fused Pallas kernel ----------------

def bert_qa_kernel(emb_ref, bias_ref, eg_ref, eb_ref,
                   wqkv_ref, bqkv_ref, wo_ref, bo_ref,
                   g1_ref, b1_ref, w1_ref, bi1_ref, w2_ref, bi2_ref,
                   g2_ref, b2_ref, qw_ref, qb_ref, o_ref):
    # Embedding sum was done in the wrapper (fused by XLA); LayerNorm here.
    x = _layernorm(emb_ref[...], eg_ref[...], eb_ref[...])   # (T, HIDDEN)
    bias = bias_ref[...]                                     # (T, T) precomputed
    scale = 1.0 / math.sqrt(HEAD_DIM)

    for l in range(NUM_LAYERS):          # static unroll; weights stay in VMEM
        # fused QKV projection: one MXU push for all three projections
        qkv = (jnp.dot(x, wqkv_ref[l], preferred_element_type=jnp.float32)
               + bqkv_ref[l])            # (T, 3*HIDDEN)
        wo = wo_ref[l]                   # (HIDDEN, HIDDEN)

        attn = jnp.zeros_like(x)
        for h in range(NUM_HEADS):       # static loop over heads (2-D dots only)
            lo = h * HEAD_DIM
            hi = lo + HEAD_DIM
            qh = qkv[:, lo:hi]
            kh = qkv[:, HIDDEN + lo:HIDDEN + hi]
            vh = qkv[:, 2 * HIDDEN + lo:2 * HIDDEN + hi]

            # scores: (T, T) = qh @ kh^T
            s = jax.lax.dot_general(qh, kh, (((1,), (1,)), ((), ())),
                                    preferred_element_type=jnp.float32)
            s = s * scale + bias
            s = s - jnp.max(s, axis=-1, keepdims=True)
            p = jnp.exp(s)
            p = p * pl.reciprocal(jnp.sum(p, axis=-1, keepdims=True), approx=True)

            ctx_h = jnp.dot(p, vh, preferred_element_type=jnp.float32)   # (T, D)
            # fold the output projection per head -> no lane concatenate
            attn = attn + jnp.dot(ctx_h, wo[lo:hi, :],
                                  preferred_element_type=jnp.float32)
        attn = attn + bo_ref[l]

        x = _layernorm(x + attn, g1_ref[l], b1_ref[l])

        hmid = _gelu(jnp.dot(x, w1_ref[l], preferred_element_type=jnp.float32)
                     + bi1_ref[l])
        ffn = jnp.dot(hmid, w2_ref[l], preferred_element_type=jnp.float32) + bi2_ref[l]
        x = _layernorm(x + ffn, g2_ref[l], b2_ref[l])

    # fused QA head; emit as (2, T) so start/end rows are contiguous
    logits = jnp.dot(x, qw_ref[...], preferred_element_type=jnp.float32) + qb_ref[...]
    o_ref[...] = logits.T                # (2, T)


def bert_qa_pallas(emb, attn_bias, p):
    T = emb.shape[0]
    # Tiny model: everything (weights + activations, well under 1 MiB f32)
    # lives in VMEM for the whole kernel -> single block, no grid.
    return pl.pallas_call(
        bert_qa_kernel,
        out_shape=jax.ShapeDtypeStruct((2, T), jnp.float32),
    )(emb, attn_bias,
      p["emb_ln_g"], p["emb_ln_b"],
      p["wqkv"], p["bqkv"], p["wo"], p["bo"],
      p["ln1_g"], p["ln1_b"], p["w1"], p["b1"], p["w2"], p["b2"],
      p["ln2_g"], p["ln2_b"], p["qa_w"], p["qa_b"])


# ---------------- parameters / forward ----------------

def init_params(key):
    keys = jax.random.split(key, 16)
    kit = iter(keys)

    def w(shape):
        return jax.random.normal(next(kit), shape, jnp.float32) * 0.02

    L = NUM_LAYERS
    return {
        "word_emb": w((VOCAB, HIDDEN)),
        "pos_emb": w((MAX_POS, HIDDEN)),
        "type_emb": w((TYPE_VOCAB, HIDDEN)),
        "emb_ln_g": jnp.ones((1, HIDDEN), jnp.float32),
        "emb_ln_b": jnp.zeros((1, HIDDEN), jnp.float32),
        # per-layer weights stacked on a leading NUM_LAYERS axis (fused kernel)
        "wqkv": w((L, HIDDEN, 3 * HIDDEN)),
        "bqkv": jnp.zeros((L, 1, 3 * HIDDEN), jnp.float32),
        "wo": w((L, HIDDEN, HIDDEN)),
        "bo": jnp.zeros((L, 1, HIDDEN), jnp.float32),
        "ln1_g": jnp.ones((L, 1, HIDDEN), jnp.float32),
        "ln1_b": jnp.zeros((L, 1, HIDDEN), jnp.float32),
        "w1": w((L, HIDDEN, INTER)),
        "b1": jnp.zeros((L, 1, INTER), jnp.float32),
        "w2": w((L, INTER, HIDDEN)),
        "b2": jnp.zeros((L, 1, HIDDEN), jnp.float32),
        "ln2_g": jnp.ones((L, 1, HIDDEN), jnp.float32),
        "ln2_b": jnp.zeros((L, 1, HIDDEN), jnp.float32),
        "qa_w": w((HIDDEN, 2)),
        "qa_b": jnp.zeros((1, 2), jnp.float32),
    }


def bert_qa_forward(params, token_idxs, token_type_idxs, masks):
    B_, S_ = token_idxs.shape
    T = B_ * S_

    # get_position_idxs: [0..seq_len) broadcast over batch
    position_idxs = jnp.broadcast_to(jnp.arange(S_, dtype=jnp.int32)[None, :], (B_, S_))

    # Embedding gathers are index glue; sum them once in XLA and feed the
    # single (T, HIDDEN) tensor to the fused kernel.
    emb = (params["word_emb"][token_idxs]
           + params["pos_emb"][position_idxs]
           + params["type_emb"][token_type_idxs]).reshape(T, HIDDEN)

    # Combined attention bias, computed ONCE:
    #   key padding mask  -> -1e9  (matches torch: (1-mask)*-1e9)
    #   cross-batch block -> -1e30 (batch folded into one token axis)
    batch_ids = jnp.repeat(jnp.arange(B_, dtype=jnp.int32), S_)
    same_batch = batch_ids[:, None] == batch_ids[None, :]
    key_bias = (1.0 - masks.astype(jnp.float32).reshape(T)) * -1e9
    attn_bias = jnp.where(same_batch, key_bias[None, :], -1e30).astype(jnp.float32)

    logits = bert_qa_pallas(emb, attn_bias, params)   # (2, T)
    logits = logits.reshape(2, B_, S_)
    # matches torch: return (x[:, :, 0], x[:, :, 1])
    return logits[0], logits[1]


if __name__ == "__main__":
    key = jax.random.PRNGKey(0)
    pkey, tkey, ykey = jax.random.split(key, 3)
    params = init_params(pkey)

    token_idxs = jax.random.randint(tkey, (BATCH, SEQ), 0, VOCAB, dtype=jnp.int32)
    token_type_idxs = jax.random.randint(ykey, (BATCH, SEQ), 0, TYPE_VOCAB, dtype=jnp.int32)
    masks = jnp.ones((BATCH, SEQ), jnp.int32)

    start_logits, end_logits = jax.jit(bert_qa_forward)(
        params, token_idxs, token_type_idxs, masks)
    jax.block_until_ready((start_logits, end_logits))

    assert start_logits.shape == (BATCH, SEQ)
    assert end_logits.shape == (BATCH, SEQ)
    assert bool(jnp.all(jnp.isfinite(start_logits))) and bool(jnp.all(jnp.isfinite(end_logits)))
    print("KERNEL_OK")
</pallas_src>

<mosaic_0001>
module attributes {stable_mosaic.version = 11 : i64} {
  func.func @bert_qa_kernel(%arg0: memref<16x32xf32, #tpu.memory_space<vmem>>, %arg1: memref<16x16xf32, #tpu.memory_space<vmem>>, %arg2: memref<1x32xf32, #tpu.memory_space<vmem>>, %arg3: memref<1x32xf32, #tpu.memory_space<vmem>>, %arg4: memref<2x32x96xf32, #tpu.memory_space<vmem>>, %arg5: memref<2x1x96xf32, #tpu.memory_space<vmem>>, %arg6: memref<2x32x32xf32, #tpu.memory_space<vmem>>, %arg7: memref<2x1x32xf32, #tpu.memory_space<vmem>>, %arg8: memref<2x1x32xf32, #tpu.memory_space<vmem>>, %arg9: memref<2x1x32xf32, #tpu.memory_space<vmem>>, %arg10: memref<2x32x64xf32, #tpu.memory_space<vmem>>, %arg11: memref<2x1x64xf32, #tpu.memory_space<vmem>>, %arg12: memref<2x64x32xf32, #tpu.memory_space<vmem>>, %arg13: memref<2x1x32xf32, #tpu.memory_space<vmem>>, %arg14: memref<2x1x32xf32, #tpu.memory_space<vmem>>, %arg15: memref<2x1x32xf32, #tpu.memory_space<vmem>>, %arg16: memref<32x2xf32, #tpu.memory_space<vmem>>, %arg17: memref<1x2xf32, #tpu.memory_space<vmem>>, %arg18: memref<2x16xf32, #tpu.memory_space<vmem>>) attributes {dimension_semantics = [], scalar_prefetch = 0 : i64, scratch_operands = 0 : i64, tpu.core_type = #tpu.core_type<tc>} {
    %c0 = arith.constant 0 : index
    %c0_0 = arith.constant 0 : index
    %0 = vector.load %arg0[%c0, %c0_0] : memref<16x32xf32, #tpu.memory_space<vmem>>, vector<16x32xf32>
    %c0_1 = arith.constant 0 : index
    %c0_2 = arith.constant 0 : index
    %1 = vector.load %arg2[%c0_1, %c0_2] : memref<1x32xf32, #tpu.memory_space<vmem>>, vector<1x32xf32>
    %c0_3 = arith.constant 0 : index
    %c0_4 = arith.constant 0 : index
    %2 = vector.load %arg3[%c0_3, %c0_4] : memref<1x32xf32, #tpu.memory_space<vmem>>, vector<1x32xf32>
    %cst = arith.constant dense<0.000000e+00> : vector<16xf32>
    %3 = vector.multi_reduction <add>, %0, %cst [1] : vector<16x32xf32> to vector<16xf32>
    %4 = vector.shape_cast %3 : vector<16xf32> to vector<16x1xf32>
    %cst_5 = arith.constant 3.200000e+01 : f32
    %5 = vector.broadcast %cst_5 : f32 to vector<16x1xf32>
    %6 = arith.divf %4, %5 : vector<16x1xf32>
    %7 = vector.broadcast %6 : vector<16x1xf32> to vector<16x32xf32>
    %8 = arith.subf %0, %7 : vector<16x32xf32>
    %9 = arith.mulf %8, %8 : vector<16x32xf32>
    %cst_6 = arith.constant dense<0.000000e+00> : vector<16xf32>
    %10 = vector.multi_reduction <add>, %9, %cst_6 [1] : vector<16x32xf32> to vector<16xf32>
    %11 = vector.shape_cast %10 : vector<16xf32> to vector<16x1xf32>
    %cst_7 = arith.constant 3.200000e+01 : f32
    %12 = vector.broadcast %cst_7 : f32 to vector<16x1xf32>
    %13 = arith.divf %11, %12 : vector<16x1xf32>
    %14 = vector.broadcast %6 : vector<16x1xf32> to vector<16x32xf32>
    %15 = arith.subf %0, %14 : vector<16x32xf32>
    %cst_8 = arith.constant 9.99999996E-13 : f32
    %16 = vector.broadcast %cst_8 : f32 to vector<16x1xf32>
    %17 = arith.addf %13, %16 : vector<16x1xf32>
    %18 = math.rsqrt %17 : vector<16x1xf32>
    %19 = vector.broadcast %18 : vector<16x1xf32> to vector<16x32xf32>
    %20 = arith.mulf %15, %19 : vector<16x32xf32>
    %21 = vector.broadcast %1 : vector<1x32xf32> to vector<16x32xf32>
    %22 = arith.mulf %20, %21 : vector<16x32xf32>
    %23 = vector.broadcast %2 : vector<1x32xf32> to vector<16x32xf32>
    %24 = arith.addf %22, %23 : vector<16x32xf32>
    %c0_9 = arith.constant 0 : index
    %c0_10 = arith.constant 0 : index
    %25 = vector.load %arg1[%c0_9, %c0_10] : memref<16x16xf32, #tpu.memory_space<vmem>>, vector<16x16xf32>
    %c0_11 = arith.constant 0 : index
    %c0_12 = arith.constant 0 : index
    %c0_13 = arith.constant 0 : index
    %26 = vector.load %arg4[%c0_11, %c0_12, %c0_13] : memref<2x32x96xf32, #tpu.memory_space<vmem>>, vector<1x32x96xf32>
    %27 = vector.shape_cast %26 : vector<1x32x96xf32> to vector<32x96xf32>
    %cst_14 = arith.constant dense<0.000000e+00> : vector<16x96xf32>
    %28 = tpu.matmul %24, %27, %cst_14 {dimension_numbers = #tpu.dot_dimension_numbers<[1], [0], [0], [1], [0, 0, 1, 1], [], []>} : vector<16x32xf32>, vector<32x96xf32>, vector<16x96xf32> -> vector<16x96xf32>
    %c0_15 = arith.constant 0 : index
    %c0_16 = arith.constant 0 : index
    %c0_17 = arith.constant 0 : index
    %29 = vector.load %arg5[%c0_15, %c0_16, %c0_17] : memref<2x1x96xf32, #tpu.memory_space<vmem>>, vector<1x1x96xf32>
    %30 = vector.shape_cast %29 : vector<1x1x96xf32> to vector<1x96xf32>
    %31 = vector.broadcast %30 : vector<1x96xf32> to vector<16x96xf32>
    %32 = arith.addf %28, %31 : vector<16x96xf32>
    %c0_18 = arith.constant 0 : index
    %c0_19 = arith.constant 0 : index
    %c0_20 = arith.constant 0 : index
    %33 = vector.load %arg6[%c0_18, %c0_19, %c0_20] : memref<2x32x32xf32, #tpu.memory_space<vmem>>, vector<1x32x32xf32>
    %34 = vector.shape_cast %33 : vector<1x32x32xf32> to vector<32x32xf32>
    %cst_21 = arith.constant 0.000000e+00 : f32
    %35 = vector.broadcast %cst_21 : f32 to vector<16x32xf32>
    %36 = vector.extract_strided_slice %32 {offsets = [0, 0], sizes = [16, 8], strides = [1, 1]} : vector<16x96xf32> to vector<16x8xf32>
    %37 = vector.extract_strided_slice %32 {offsets = [0, 32], sizes = [16, 8], strides = [1, 1]} : vector<16x96xf32> to vector<16x8xf32>
    %38 = vector.extract_strided_slice %32 {offsets = [0, 64], sizes = [16, 8], strides = [1, 1]} : vector<16x96xf32> to vector<16x8xf32>
    %cst_22 = arith.constant dense<0.000000e+00> : vector<16x16xf32>
    %39 = tpu.matmul %36, %37, %cst_22 {dimension_numbers = #tpu.dot_dimension_numbers<[1], [1], [0], [0], [0, 0, 1, 0], [], []>} : vector<16x8xf32>, vector<16x8xf32>, vector<16x16xf32> -> vector<16x16xf32>
    %cst_23 = arith.constant 0.353553385 : f32
    %40 = vector.broadcast %cst_23 : f32 to vector<16x16xf32>
    %41 = arith.mulf %39, %40 : vector<16x16xf32>
    %42 = arith.addf %41, %25 : vector<16x16xf32>
    %cst_24 = arith.constant dense<0xFF800000> : vector<16xf32>
    %43 = vector.multi_reduction <maximumf>, %42, %cst_24 [1] : vector<16x16xf32> to vector<16xf32>
    %44 = vector.shape_cast %43 : vector<16xf32> to vector<16x1xf32>
    %45 = vector.broadcast %44 : vector<16x1xf32> to vector<16x16xf32>
    %46 = arith.subf %42, %45 : vector<16x16xf32>
    %47 = math.exp %46 : vector<16x16xf32>
    %cst_25 = arith.constant dense<0.000000e+00> : vector<16xf32>
    %48 = vector.multi_reduction <add>, %47, %cst_25 [1] : vector<16x16xf32> to vector<16xf32>
    %49 = vector.shape_cast %48 : vector<16xf32> to vector<16x1xf32>
    %50 = tpu.reciprocal %49 {approx = true} : vector<16x1xf32> -> vector<16x1xf32>
    %51 = vector.broadcast %50 : vector<16x1xf32> to vector<16x16xf32>
    %52 = arith.mulf %47, %51 : vector<16x16xf32>
    %cst_26 = arith.constant dense<0.000000e+00> : vector<16x8xf32>
    %53 = tpu.matmul %52, %38, %cst_26 {dimension_numbers = #tpu.dot_dimension_numbers<[1], [0], [0], [1], [0, 0, 1, 1], [], []>} : vector<16x16xf32>, vector<16x8xf32>, vector<16x8xf32> -> vector<16x8xf32>
    %54 = vector.extract_strided_slice %34 {offsets = [0, 0], sizes = [8, 32], strides = [1, 1]} : vector<32x32xf32> to vector<8x32xf32>
    %cst_27 = arith.constant dense<0.000000e+00> : vector<16x32xf32>
    %55 = tpu.matmul %53, %54, %cst_27 {dimension_numbers = #tpu.dot_dimension_numbers<[1], [0], [0], [1], [0, 0, 1, 1], [], []>} : vector<16x8xf32>, vector<8x32xf32>, vector<16x32xf32> -> vector<16x32xf32>
    %56 = arith.addf %35, %55 : vector<16x32xf32>
    %57 = vector.extract_strided_slice %32 {offsets = [0, 8], sizes = [16, 8], strides = [1, 1]} : vector<16x96xf32> to vector<16x8xf32>
    %58 = vector.extract_strided_slice %32 {offsets = [0, 40], sizes = [16, 8], strides = [1, 1]} : vector<16x96xf32> to vector<16x8xf32>
    %59 = vector.extract_strided_slice %32 {offsets = [0, 72], sizes = [16, 8], strides = [1, 1]} : vector<16x96xf32> to vector<16x8xf32>
    %cst_28 = arith.constant dense<0.000000e+00> : vector<16x16xf32>
    %60 = tpu.matmul %57, %58, %cst_28 {dimension_numbers = #tpu.dot_dimension_numbers<[1], [1], [0], [0], [0, 0, 1, 0], [], []>} : vector<16x8xf32>, vector<16x8xf32>, vector<16x16xf32> -> vector<16x16xf32>
    %cst_29 = arith.constant 0.353553385 : f32
    %61 = vector.broadcast %cst_29 : f32 to vector<16x16xf32>
    %62 = arith.mulf %60, %61 : vector<16x16xf32>
    %63 = arith.addf %62, %25 : vector<16x16xf32>
    %cst_30 = arith.constant dense<0xFF800000> : vector<16xf32>
    %64 = vector.multi_reduction <maximumf>, %63, %cst_30 [1] : vector<16x16xf32> to vector<16xf32>
    %65 = vector.shape_cast %64 : vector<16xf32> to vector<16x1xf32>
    %66 = vector.broadcast %65 : vector<16x1xf32> to vector<16x16xf32>
    %67 = arith.subf %63, %66 : vector<16x16xf32>
    %68 = math.exp %67 : vector<16x16xf32>
    %cst_31 = arith.constant dense<0.000000e+00> : vector<16xf32>
    %69 = vector.multi_reduction <add>, %68, %cst_31 [1] : vector<16x16xf32> to vector<16xf32>
    %70 = vector.shape_cast %69 : vector<16xf32> to vector<16x1xf32>
    %71 = tpu.reciprocal %70 {approx = true} : vector<16x1xf32> -> vector<16x1xf32>
    %72 = vector.broadcast %71 : vector<16x1xf32> to vector<16x16xf32>
    %73 = arith.mulf %68, %72 : vector<16x16xf32>
    %cst_32 = arith.constant dense<0.000000e+00> : vector<16x8xf32>
    %74 = tpu.matmul %73, %59, %cst_32 {dimension_numbers = #tpu.dot_dimension_numbers<[1], [0], [0], [1], [0, 0, 1, 1], [], []>} : vector<16x16xf32>, vector<16x8xf32>, vector<16x8xf32> -> vector<16x8xf32>
    %75 = vector.extract_strided_slice %34 {offsets = [8, 0], sizes = [8, 32], strides = [1, 1]} : vector<32x32xf32> to vector<8x32xf32>
    %cst_33 = arith.constant dense<0.000000e+00> : vector<16x32xf32>
    %76 = tpu.matmul %74, %75, %cst_33 {dimension_numbers = #tpu.dot_dimension_numbers<[1], [0], [0], [1], [0, 0, 1, 1], [], []>} : vector<16x8xf32>, vector<8x32xf32>, vector<16x32xf32> -> vector<16x32xf32>
    %77 = arith.addf %56, %76 : vector<16x32xf32>
    %78 = vector.extract_strided_slice %32 {offsets = [0, 16], sizes = [16, 8], strides = [1, 1]} : vector<16x96xf32> to vector<16x8xf32>
    %79 = vector.extract_strided_slice %32 {offsets = [0, 48], sizes = [16, 8], strides = [1, 1]} : vector<16x96xf32> to vector<16x8xf32>
    %80 = vector.extract_strided_slice %32 {offsets = [0, 80], sizes = [16, 8], strides = [1, 1]} : vector<16x96xf32> to vector<16x8xf32>
    %cst_34 = arith.constant dense<0.000000e+00> : vector<16x16xf32>
    %81 = tpu.matmul %78, %79, %cst_34 {dimension_numbers = #tpu.dot_dimension_numbers<[1], [1], [0], [0], [0, 0, 1, 0], [], []>} : vector<16x8xf32>, vector<16x8xf32>, vector<16x16xf32> -> vector<16x16xf32>
    %cst_35 = arith.constant 0.353553385 : f32
    %82 = vector.broadcast %cst_35 : f32 to vector<16x16xf32>
    %83 = arith.mulf %81, %82 : vector<16x16xf32>
    %84 = arith.addf %83, %25 : vector<16x16xf32>
    %cst_36 = arith.constant dense<0xFF800000> : vector<16xf32>
    %85 = vector.multi_reduction <maximumf>, %84, %cst_36 [1] : vector<16x16xf32> to vector<16xf32>
    %86 = vector.shape_cast %85 : vector<16xf32> to vector<16x1xf32>
    %87 = vector.broadcast %86 : vector<16x1xf32> to vector<16x16xf32>
    %88 = arith.subf %84, %87 : vector<16x16xf32>
    %89 = math.exp %88 : vector<16x16xf32>
    %cst_37 = arith.constant dense<0.000000e+00> : vector<16xf32>
    %90 = vector.multi_reduction <add>, %89, %cst_37 [1] : vector<16x16xf32> to vector<16xf32>
    %91 = vector.shape_cast %90 : vector<16xf32> to vector<16x1xf32>
    %92 = tpu.reciprocal %91 {approx = true} : vector<16x1xf32> -> vector<16x1xf32>
    %93 = vector.broadcast %92 : vector<16x1xf32> to vector<16x16xf32>
    %94 = arith.mulf %89, %93 : vector<16x16xf32>
    %cst_38 = arith.constant dense<0.000000e+00> : vector<16x8xf32>
    %95 = tpu.matmul %94, %80, %cst_38 {dimension_numbers = #tpu.dot_dimension_numbers<[1], [0], [0], [1], [0, 0, 1, 1], [], []>} : vector<16x16xf32>, vector<16x8xf32>, vector<16x8xf32> -> vector<16x8xf32>
    %96 = vector.extract_strided_slice %34 {offsets = [16, 0], sizes = [8, 32], strides = [1, 1]} : vector<32x32xf32> to vector<8x32xf32>
    %cst_39 = arith.constant dense<0.000000e+00> : vector<16x32xf32>
    %97 = tpu.matmul %95, %96, %cst_39 {dimension_numbers = #tpu.dot_dimension_numbers<[1], [0], [0], [1], [0, 0, 1, 1], [], []>} : vector<16x8xf32>, vector<8x32xf32>, vector<16x32xf32> -> vector<16x32xf32>
    %98 = arith.addf %77, %97 : vector<16x32xf32>
    %99 = vector.extract_strided_slice %32 {offsets = [0, 24], sizes = [16, 8], strides = [1, 1]} : vector<16x96xf32> to vector<16x8xf32>
    %100 = vector.extract_strided_slice %32 {offsets = [0, 56], sizes = [16, 8], strides = [1, 1]} : vector<16x96xf32> to vector<16x8xf32>
    %101 = vector.extract_strided_slice %32 {offsets = [0, 88], sizes = [16, 8], strides = [1, 1]} : vector<16x96xf32> to vector<16x8xf32>
    %cst_40 = arith.constant dense<0.000000e+00> : vector<16x16xf32>
    %102 = tpu.matmul %99, %100, %cst_40 {dimension_numbers = #tpu.dot_dimension_numbers<[1], [1], [0], [0], [0, 0, 1, 0], [], []>} : vector<16x8xf32>, vector<16x8xf32>, vector<16x16xf32> -> vector<16x16xf32>
    %cst_41 = arith.constant 0.353553385 : f32
    %103 = vector.broadcast %cst_41 : f32 to vector<16x16xf32>
    %104 = arith.mulf %102, %103 : vector<16x16xf32>
    %105 = arith.addf %104, %25 : vector<16x16xf32>
    %cst_42 = arith.constant dense<0xFF800000> : vector<16xf32>
    %106 = vector.multi_reduction <maximumf>, %105, %cst_42 [1] : vector<16x16xf32> to vector<16xf32>
    %107 = vector.shape_cast %106 : vector<16xf32> to vector<16x1xf32>
    %108 = vector.broadcast %107 : vector<16x1xf32> to vector<16x16xf32>
    %109 = arith.subf %105, %108 : vector<16x16xf32>
    %110 = math.exp %109 : vector<16x16xf32>
    %cst_43 = arith.constant dense<0.000000e+00> : vector<16xf32>
    %111 = vector.multi_reduction <add>, %110, %cst_43 [1] : vector<16x16xf32> to vector<16xf32>
    %112 = vector.shape_cast %111 : vector<16xf32> to vector<16x1xf32>
    %113 = tpu.reciprocal %112 {approx = true} : vector<16x1xf32> -> vector<16x1xf32>
    %114 = vector.broadcast %113 : vector<16x1xf32> to vector<16x16xf32>
    %115 = arith.mulf %110, %114 : vector<16x16xf32>
    %cst_44 = arith.constant dense<0.000000e+00> : vector<16x8xf32>
    %116 = tpu.matmul %115, %101, %cst_44 {dimension_numbers = #tpu.dot_dimension_numbers<[1], [0], [0], [1], [0, 0, 1, 1], [], []>} : vector<16x16xf32>, vector<16x8xf32>, vector<16x8xf32> -> vector<16x8xf32>
    %117 = vector.extract_strided_slice %34 {offsets = [24, 0], sizes = [8, 32], strides = [1, 1]} : vector<32x32xf32> to vector<8x32xf32>
    %cst_45 = arith.constant dense<0.000000e+00> : vector<16x32xf32>
    %118 = tpu.matmul %116, %117, %cst_45 {dimension_numbers = #tpu.dot_dimension_numbers<[1], [0], [0], [1], [0, 0, 1, 1], [], []>} : vector<16x8xf32>, vector<8x32xf32>, vector<16x32xf32> -> vector<16x32xf32>
    %119 = arith.addf %98, %118 : vector<16x32xf32>
    %c0_46 = arith.constant 0 : index
    %c0_47 = arith.constant 0 : index
    %c0_48 = arith.constant 0 : index
    %120 = vector.load %arg7[%c0_46, %c0_47, %c0_48] : memref<2x1x32xf32, #tpu.memory_space<vmem>>, vector<1x1x32xf32>
    %121 = vector.shape_cast %120 : vector<1x1x32xf32> to vector<1x32xf32>
    %122 = vector.broadcast %121 : vector<1x32xf32> to vector<16x32xf32>
    %123 = arith.addf %119, %122 : vector<16x32xf32>
    %124 = arith.addf %24, %123 : vector<16x32xf32>
    %c0_49 = arith.constant 0 : index
    %c0_50 = arith.constant 0 : index
    %c0_51 = arith.constant 0 : index
    %125 = vector.load %arg8[%c0_49, %c0_50, %c0_51] : memref<2x1x32xf32, #tpu.memory_space<vmem>>, vector<1x1x32xf32>
    %126 = vector.shape_cast %125 : vector<1x1x32xf32> to vector<1x32xf32>
    %c0_52 = arith.constant 0 : index
    %c0_53 = arith.constant 0 : index
    %c0_54 = arith.constant 0 : index
    %127 = vector.load %arg9[%c0_52, %c0_53, %c0_54] : memref<2x1x32xf32, #tpu.memory_space<vmem>>, vector<1x1x32xf32>
    %128 = vector.shape_cast %127 : vector<1x1x32xf32> to vector<1x32xf32>
    %cst_55 = arith.constant dense<0.000000e+00> : vector<16xf32>
    %129 = vector.multi_reduction <add>, %124, %cst_55 [1] : vector<16x32xf32> to vector<16xf32>
    %130 = vector.shape_cast %129 : vector<16xf32> to vector<16x1xf32>
    %cst_56 = arith.constant 3.200000e+01 : f32
    %131 = vector.broadcast %cst_56 : f32 to vector<16x1xf32>
    %132 = arith.divf %130, %131 : vector<16x1xf32>
    %133 = vector.broadcast %132 : vector<16x1xf32> to vector<16x32xf32>
    %134 = arith.subf %124, %133 : vector<16x32xf32>
    %135 = arith.mulf %134, %134 : vector<16x32xf32>
    %cst_57 = arith.constant dense<0.000000e+00> : vector<16xf32>
    %136 = vector.multi_reduction <add>, %135, %cst_57 [1] : vector<16x32xf32> to vector<16xf32>
    %137 = vector.shape_cast %136 : vector<16xf32> to vector<16x1xf32>
    %cst_58 = arith.constant 3.200000e+01 : f32
    %138 = vector.broadcast %cst_58 : f32 to vector<16x1xf32>
    %139 = arith.divf %137, %138 : vector<16x1xf32>
    %140 = vector.broadcast %132 : vector<16x1xf32> to vector<16x32xf32>
    %141 = arith.subf %124, %140 : vector<16x32xf32>
    %cst_59 = arith.constant 9.99999996E-13 : f32
    %142 = vector.broadcast %cst_59 : f32 to vector<16x1xf32>
    %143 = arith.addf %139, %142 : vector<16x1xf32>
    %144 = math.rsqrt %143 : vector<16x1xf32>
    %145 = vector.broadcast %144 : vector<16x1xf32> to vector<16x32xf32>
    %146 = arith.mulf %141, %145 : vector<16x32xf32>
    %147 = vector.broadcast %126 : vector<1x32xf32> to vector<16x32xf32>
    %148 = arith.mulf %146, %147 : vector<16x32xf32>
    %149 = vector.broadcast %128 : vector<1x32xf32> to vector<16x32xf32>
    %150 = arith.addf %148, %149 : vector<16x32xf32>
    %c0_60 = arith.constant 0 : index
    %c0_61 = arith.constant 0 : index
    %c0_62 = arith.constant 0 : index
    %151 = vector.load %arg10[%c0_60, %c0_61, %c0_62] : memref<2x32x64xf32, #tpu.memory_space<vmem>>, vector<1x32x64xf32>
    %152 = vector.shape_cast %151 : vector<1x32x64xf32> to vector<32x64xf32>
    %cst_63 = arith.constant dense<0.000000e+00> : vector<16x64xf32>
    %153 = tpu.matmul %150, %152, %cst_63 {dimension_numbers = #tpu.dot_dimension_numbers<[1], [0], [0], [1], [0, 0, 1, 1], [], []>} : vector<16x32xf32>, vector<32x64xf32>, vector<16x64xf32> -> vector<16x64xf32>
    %c0_64 = arith.constant 0 : index
    %c0_65 = arith.constant 0 : index
    %c0_66 = arith.constant 0 : index
    %154 = vector.load %arg11[%c0_64, %c0_65, %c0_66] : memref<2x1x64xf32, #tpu.memory_space<vmem>>, vector<1x1x64xf32>
    %155 = vector.shape_cast %154 : vector<1x1x64xf32> to vector<1x64xf32>
    %156 = vector.broadcast %155 : vector<1x64xf32> to vector<16x64xf32>
    %157 = arith.addf %153, %156 : vector<16x64xf32>
    %cst_67 = arith.constant 5.000000e-01 : f32
    %158 = vector.broadcast %cst_67 : f32 to vector<16x64xf32>
    %159 = arith.mulf %158, %157 : vector<16x64xf32>
    %cst_68 = arith.constant 4.471500e-02 : f32
    %160 = vector.broadcast %cst_68 : f32 to vector<16x64xf32>
    %161 = arith.mulf %160, %157 : vector<16x64xf32>
    %162 = arith.mulf %161, %157 : vector<16x64xf32>
    %163 = arith.mulf %162, %157 : vector<16x64xf32>
    %164 = arith.addf %157, %163 : vector<16x64xf32>
    %cst_69 = arith.constant 0.797884583 : f32
    %165 = vector.broadcast %cst_69 : f32 to vector<16x64xf32>
    %166 = arith.mulf %165, %164 : vector<16x64xf32>
    %167 = math.tanh %166 : vector<16x64xf32>
    %cst_70 = arith.constant 1.000000e+00 : f32
    %168 = vector.broadcast %cst_70 : f32 to vector<16x64xf32>
    %169 = arith.addf %168, %167 : vector<16x64xf32>
    %170 = arith.mulf %159, %169 : vector<16x64xf32>
    %c0_71 = arith.constant 0 : index
    %c0_72 = arith.constant 0 : index
    %c0_73 = arith.constant 0 : index
    %171 = vector.load %arg12[%c0_71, %c0_72, %c0_73] : memref<2x64x32xf32, #tpu.memory_space<vmem>>, vector<1x64x32xf32>
    %172 = vector.shape_cast %171 : vector<1x64x32xf32> to vector<64x32xf32>
    %cst_74 = arith.constant dense<0.000000e+00> : vector<16x32xf32>
    %173 = tpu.matmul %170, %172, %cst_74 {dimension_numbers = #tpu.dot_dimension_numbers<[1], [0], [0], [1], [0, 0, 1, 1], [], []>} : vector<16x64xf32>, vector<64x32xf32>, vector<16x32xf32> -> vector<16x32xf32>
    %c0_75 = arith.constant 0 : index
    %c0_76 = arith.constant 0 : index
    %c0_77 = arith.constant 0 : index
    %174 = vector.load %arg13[%c0_75, %c0_76, %c0_77] : memref<2x1x32xf32, #tpu.memory_space<vmem>>, vector<1x1x32xf32>
    %175 = vector.shape_cast %174 : vector<1x1x32xf32> to vector<1x32xf32>
    %176 = vector.broadcast %175 : vector<1x32xf32> to vector<16x32xf32>
    %177 = arith.addf %173, %176 : vector<16x32xf32>
    %178 = arith.addf %150, %177 : vector<16x32xf32>
    %c0_78 = arith.constant 0 : index
    %c0_79 = arith.constant 0 : index
    %c0_80 = arith.constant 0 : index
    %179 = vector.load %arg14[%c0_78, %c0_79, %c0_80] : memref<2x1x32xf32, #tpu.memory_space<vmem>>, vector<1x1x32xf32>
    %180 = vector.shape_cast %179 : vector<1x1x32xf32> to vector<1x32xf32>
    %c0_81 = arith.constant 0 : index
    %c0_82 = arith.constant 0 : index
    %c0_83 = arith.constant 0 : index
    %181 = vector.load %arg15[%c0_81, %c0_82, %c0_83] : memref<2x1x32xf32, #tpu.memory_space<vmem>>, vector<1x1x32xf32>
    %182 = vector.shape_cast %181 : vector<1x1x32xf32> to vector<1x32xf32>
    %cst_84 = arith.constant dense<0.000000e+00> : vector<16xf32>
    %183 = vector.multi_reduction <add>, %178, %cst_84 [1] : vector<16x32xf32> to vector<16xf32>
    %184 = vector.shape_cast %183 : vector<16xf32> to vector<16x1xf32>
    %cst_85 = arith.constant 3.200000e+01 : f32
    %185 = vector.broadcast %cst_85 : f32 to vector<16x1xf32>
    %186 = arith.divf %184, %185 : vector<16x1xf32>
    %187 = vector.broadcast %186 : vector<16x1xf32> to vector<16x32xf32>
    %188 = arith.subf %178, %187 : vector<16x32xf32>
    %189 = arith.mulf %188, %188 : vector<16x32xf32>
    %cst_86 = arith.constant dense<0.000000e+00> : vector<16xf32>
    %190 = vector.multi_reduction <add>, %189, %cst_86 [1] : vector<16x32xf32> to vector<16xf32>
    %191 = vector.shape_cast %190 : vector<16xf32> to vector<16x1xf32>
    %cst_87 = arith.constant 3.200000e+01 : f32
    %192 = vector.broadcast %cst_87 : f32 to vector<16x1xf32>
    %193 = arith.divf %191, %192 : vector<16x1xf32>
    %194 = vector.broadcast %186 : vector<16x1xf32> to vector<16x32xf32>
    %195 = arith.subf %178, %194 : vector<16x32xf32>
    %cst_88 = arith.constant 9.99999996E-13 : f32
    %196 = vector.broadcast %cst_88 : f32 to vector<16x1xf32>
    %197 = arith.addf %193, %196 : vector<16x1xf32>
    %198 = math.rsqrt %197 : vector<16x1xf32>
    %199 = vector.broadcast %198 : vector<16x1xf32> to vector<16x32xf32>
    %200 = arith.mulf %195, %199 : vector<16x32xf32>
    %201 = vector.broadcast %180 : vector<1x32xf32> to vector<16x32xf32>
    %202 = arith.mulf %200, %201 : vector<16x32xf32>
    %203 = vector.broadcast %182 : vector<1x32xf32> to vector<16x32xf32>
    %204 = arith.addf %202, %203 : vector<16x32xf32>
    %c1 = arith.constant 1 : index
    %c0_89 = arith.constant 0 : index
    %c0_90 = arith.constant 0 : index
    %205 = vector.load %arg4[%c1, %c0_89, %c0_90] : memref<2x32x96xf32, #tpu.memory_space<vmem>>, vector<1x32x96xf32>
    %206 = vector.shape_cast %205 : vector<1x32x96xf32> to vector<32x96xf32>
    %cst_91 = arith.constant dense<0.000000e+00> : vector<16x96xf32>
    %207 = tpu.matmul %204, %206, %cst_91 {dimension_numbers = #tpu.dot_dimension_numbers<[1], [0], [0], [1], [0, 0, 1, 1], [], []>} : vector<16x32xf32>, vector<32x96xf32>, vector<16x96xf32> -> vector<16x96xf32>
    %c1_92 = arith.constant 1 : index
    %c0_93 = arith.constant 0 : index
    %c0_94 = arith.constant 0 : index
    %208 = vector.load %arg5[%c1_92, %c0_93, %c0_94] : memref<2x1x96xf32, #tpu.memory_space<vmem>>, vector<1x1x96xf32>
    %209 = vector.shape_cast %208 : vector<1x1x96xf32> to vector<1x96xf32>
    %210 = vector.broadcast %209 : vector<1x96xf32> to vector<16x96xf32>
    %211 = arith.addf %207, %210 : vector<16x96xf32>
    %c1_95 = arith.constant 1 : index
    %c0_96 = arith.constant 0 : index
    %c0_97 = arith.constant 0 : index
    %212 = vector.load %arg6[%c1_95, %c0_96, %c0_97] : memref<2x32x32xf32, #tpu.memory_space<vmem>>, vector<1x32x32xf32>
    %213 = vector.shape_cast %212 : vector<1x32x32xf32> to vector<32x32xf32>
    %cst_98 = arith.constant 0.000000e+00 : f32
    %214 = vector.broadcast %cst_98 : f32 to vector<16x32xf32>
    %215 = vector.extract_strided_slice %211 {offsets = [0, 0], sizes = [16, 8], strides = [1, 1]} : vector<16x96xf32> to vector<16x8xf32>
    %216 = vector.extract_strided_slice %211 {offsets = [0, 32], sizes = [16, 8], strides = [1, 1]} : vector<16x96xf32> to vector<16x8xf32>
    %217 = vector.extract_strided_slice %211 {offsets = [0, 64], sizes = [16, 8], strides = [1, 1]} : vector<16x96xf32> to vector<16x8xf32>
    %cst_99 = arith.constant dense<0.000000e+00> : vector<16x16xf32>
    %218 = tpu.matmul %215, %216, %cst_99 {dimension_numbers = #tpu.dot_dimension_numbers<[1], [1], [0], [0], [0, 0, 1, 0], [], []>} : vector<16x8xf32>, vector<16x8xf32>, vector<16x16xf32> -> vector<16x16xf32>
    %cst_100 = arith.constant 0.353553385 : f32
    %219 = vector.broadcast %cst_100 : f32 to vector<16x16xf32>
    %220 = arith.mulf %218, %219 : vector<16x16xf32>
    %221 = arith.addf %220, %25 : vector<16x16xf32>
    %cst_101 = arith.constant dense<0xFF800000> : vector<16xf32>
    %222 = vector.multi_reduction <maximumf>, %221, %cst_101 [1] : vector<16x16xf32> to vector<16xf32>
    %223 = vector.shape_cast %222 : vector<16xf32> to vector<16x1xf32>
    %224 = vector.broadcast %223 : vector<16x1xf32> to vector<16x16xf32>
    %225 = arith.subf %221, %224 : vector<16x16xf32>
    %226 = math.exp %225 : vector<16x16xf32>
    %cst_102 = arith.constant dense<0.000000e+00> : vector<16xf32>
    %227 = vector.multi_reduction <add>, %226, %cst_102 [1] : vector<16x16xf32> to vector<16xf32>
    %228 = vector.shape_cast %227 : vector<16xf32> to vector<16x1xf32>
    %229 = tpu.reciprocal %228 {approx = true} : vector<16x1xf32> -> vector<16x1xf32>
    %230 = vector.broadcast %229 : vector<16x1xf32> to vector<16x16xf32>
    %231 = arith.mulf %226, %230 : vector<16x16xf32>
    %cst_103 = arith.constant dense<0.000000e+00> : vector<16x8xf32>
    %232 = tpu.matmul %231, %217, %cst_103 {dimension_numbers = #tpu.dot_dimension_numbers<[1], [0], [0], [1], [0, 0, 1, 1], [], []>} : vector<16x16xf32>, vector<16x8xf32>, vector<16x8xf32> -> vector<16x8xf32>
    %233 = vector.extract_strided_slice %213 {offsets = [0, 0], sizes = [8, 32], strides = [1, 1]} : vector<32x32xf32> to vector<8x32xf32>
    %cst_104 = arith.constant dense<0.000000e+00> : vector<16x32xf32>
    %234 = tpu.matmul %232, %233, %cst_104 {dimension_numbers = #tpu.dot_dimension_numbers<[1], [0], [0], [1], [0, 0, 1, 1], [], []>} : vector<16x8xf32>, vector<8x32xf32>, vector<16x32xf32> -> vector<16x32xf32>
    %235 = arith.addf %214, %234 : vector<16x32xf32>
    %236 = vector.extract_strided_slice %211 {offsets = [0, 8], sizes = [16, 8], strides = [1, 1]} : vector<16x96xf32> to vector<16x8xf32>
    %237 = vector.extract_strided_slice %211 {offsets = [0, 40], sizes = [16, 8], strides = [1, 1]} : vector<16x96xf32> to vector<16x8xf32>
    %238 = vector.extract_strided_slice %211 {offsets = [0, 72], sizes = [16, 8], strides = [1, 1]} : vector<16x96xf32> to vector<16x8xf32>
    %cst_105 = arith.constant dense<0.000000e+00> : vector<16x16xf32>
    %239 = tpu.matmul %236, %237, %cst_105 {dimension_numbers = #tpu.dot_dimension_numbers<[1], [1], [0], [0], [0, 0, 1, 0], [], []>} : vector<16x8xf32>, vector<16x8xf32>, vector<16x16xf32> -> vector<16x16xf32>
    %cst_106 = arith.constant 0.353553385 : f32
    %240 = vector.broadcast %cst_106 : f32 to vector<16x16xf32>
    %241 = arith.mulf %239, %240 : vector<16x16xf32>
    %242 = arith.addf %241, %25 : vector<16x16xf32>
    %cst_107 = arith.constant dense<0xFF800000> : vector<16xf32>
    %243 = vector.multi_reduction <maximumf>, %242, %cst_107 [1] : vector<16x16xf32> to vector<16xf32>
    %244 = vector.shape_cast %243 : vector<16xf32> to vector<16x1xf32>
    %245 = vector.broadcast %244 : vector<16x1xf32> to vector<16x16xf32>
    %246 = arith.subf %242, %245 : vector<16x16xf32>
    %247 = math.exp %246 : vector<16x16xf32>
    %cst_108 = arith.constant dense<0.000000e+00> : vector<16xf32>
    %248 = vector.multi_reduction <add>, %247, %cst_108 [1] : vector<16x16xf32> to vector<16xf32>
    %249 = vector.shape_cast %248 : vector<16xf32> to vector<16x1xf32>
    %250 = tpu.reciprocal %249 {approx = true} : vector<16x1xf32> -> vector<16x1xf32>
    %251 = vector.broadcast %250 : vector<16x1xf32> to vector<16x16xf32>
    %252 = arith.mulf %247, %251 : vector<16x16xf32>
    %cst_109 = arith.constant dense<0.000000e+00> : vector<16x8xf32>
    %253 = tpu.matmul %252, %238, %cst_109 {dimension_numbers = #tpu.dot_dimension_numbers<[1], [0], [0], [1], [0, 0, 1, 1], [], []>} : vector<16x16xf32>, vector<16x8xf32>, vector<16x8xf32> -> vector<16x8xf32>
    %254 = vector.extract_strided_slice %213 {offsets = [8, 0], sizes = [8, 32], strides = [1, 1]} : vector<32x32xf32> to vector<8x32xf32>
    %cst_110 = arith.constant dense<0.000000e+00> : vector<16x32xf32>
    %255 = tpu.matmul %253, %254, %cst_110 {dimension_numbers = #tpu.dot_dimension_numbers<[1], [0], [0], [1], [0, 0, 1, 1], [], []>} : vector<16x8xf32>, vector<8x32xf32>, vector<16x32xf32> -> vector<16x32xf32>
    %256 = arith.addf %235, %255 : vector<16x32xf32>
    %257 = vector.extract_strided_slice %211 {offsets = [0, 16], sizes = [16, 8], strides = [1, 1]} : vector<16x96xf32> to vector<16x8xf32>
    %258 = vector.extract_strided_slice %211 {offsets = [0, 48], sizes = [16, 8], strides = [1, 1]} : vector<16x96xf32> to vector<16x8xf32>
    %259 = vector.extract_strided_slice %211 {offsets = [0, 80], sizes = [16, 8], strides = [1, 1]} : vector<16x96xf32> to vector<16x8xf32>
    %cst_111 = arith.constant dense<0.000000e+00> : vector<16x16xf32>
    %260 = tpu.matmul %257, %258, %cst_111 {dimension_numbers = #tpu.dot_dimension_numbers<[1], [1], [0], [0], [0, 0, 1, 0], [], []>} : vector<16x8xf32>, vector<16x8xf32>, vector<16x16xf32> -> vector<16x16xf32>
    %cst_112 = arith.constant 0.353553385 : f32
    %261 = vector.broadcast %cst_112 : f32 to vector<16x16xf32>
    %262 = arith.mulf %260, %261 : vector<16x16xf32>
    %263 = arith.addf %262, %25 : vector<16x16xf32>
    %cst_113 = arith.constant dense<0xFF800000> : vector<16xf32>
    %264 = vector.multi_reduction <maximumf>, %263, %cst_113 [1] : vector<16x16xf32> to vector<16xf32>
    %265 = vector.shape_cast %264 : vector<16xf32> to vector<16x1xf32>
    %266 = vector.broadcast %265 : vector<16x1xf32> to vector<16x16xf32>
    %267 = arith.subf %263, %266 : vector<16x16xf32>
    %268 = math.exp %267 : vector<16x16xf32>
    %cst_114 = arith.constant dense<0.000000e+00> : vector<16xf32>
    %269 = vector.multi_reduction <add>, %268, %cst_114 [1] : vector<16x16xf32> to vector<16xf32>
    %270 = vector.shape_cast %269 : vector<16xf32> to vector<16x1xf32>
    %271 = tpu.reciprocal %270 {approx = true} : vector<16x1xf32> -> vector<16x1xf32>
    %272 = vector.broadcast %271 : vector<16x1xf32> to vector<16x16xf32>
    %273 = arith.mulf %268, %272 : vector<16x16xf32>
    %cst_115 = arith.constant dense<0.000000e+00> : vector<16x8xf32>
    %274 = tpu.matmul %273, %259, %cst_115 {dimension_numbers = #tpu.dot_dimension_numbers<[1], [0], [0], [1], [0, 0, 1, 1], [], []>} : vector<16x16xf32>, vector<16x8xf32>, vector<16x8xf32> -> vector<16x8xf32>
    %275 = vector.extract_strided_slice %213 {offsets = [16, 0], sizes = [8, 32], strides = [1, 1]} : vector<32x32xf32> to vector<8x32xf32>
    %cst_116 = arith.constant dense<0.000000e+00> : vector<16x32xf32>
    %276 = tpu.matmul %274, %275, %cst_116 {dimension_numbers = #tpu.dot_dimension_numbers<[1], [0], [0], [1], [0, 0, 1, 1], [], []>} : vector<16x8xf32>, vector<8x32xf32>, vector<16x32xf32> -> vector<16x32xf32>
    %277 = arith.addf %256, %276 : vector<16x32xf32>
    %278 = vector.extract_strided_slice %211 {offsets = [0, 24], sizes = [16, 8], strides = [1, 1]} : vector<16x96xf32> to vector<16x8xf32>
    %279 = vector.extract_strided_slice %211 {offsets = [0, 56], sizes = [16, 8], strides = [1, 1]} : vector<16x96xf32> to vector<16x8xf32>
    %280 = vector.extract_strided_slice %211 {offsets = [0, 88], sizes = [16, 8], strides = [1, 1]} : vector<16x96xf32> to vector<16x8xf32>
    %cst_117 = arith.constant dense<0.000000e+00> : vector<16x16xf32>
    %281 = tpu.matmul %278, %279, %cst_117 {dimension_numbers = #tpu.dot_dimension_numbers<[1], [1], [0], [0], [0, 0, 1, 0], [], []>} : vector<16x8xf32>, vector<16x8xf32>, vector<16x16xf32> -> vector<16x16xf32>
    %cst_118 = arith.constant 0.353553385 : f32
    %282 = vector.broadcast %cst_118 : f32 to vector<16x16xf32>
    %283 = arith.mulf %281, %282 : vector<16x16xf32>
    %284 = arith.addf %283, %25 : vector<16x16xf32>
    %cst_119 = arith.constant dense<0xFF800000> : vector<16xf32>
    %285 = vector.multi_reduction <maximumf>, %284, %cst_119 [1] : vector<16x16xf32> to vector<16xf32>
    %286 = vector.shape_cast %285 : vector<16xf32> to vector<16x1xf32>
    %287 = vector.broadcast %286 : vector<16x1xf32> to vector<16x16xf32>
    %288 = arith.subf %284, %287 : vector<16x16xf32>
    %289 = math.exp %288 : vector<16x16xf32>
    %cst_120 = arith.constant dense<0.000000e+00> : vector<16xf32>
    %290 = vector.multi_reduction <add>, %289, %cst_120 [1] : vector<16x16xf32> to vector<16xf32>
    %291 = vector.shape_cast %290 : vector<16xf32> to vector<16x1xf32>
    %292 = tpu.reciprocal %291 {approx = true} : vector<16x1xf32> -> vector<16x1xf32>
    %293 = vector.broadcast %292 : vector<16x1xf32> to vector<16x16xf32>
    %294 = arith.mulf %289, %293 : vector<16x16xf32>
    %cst_121 = arith.constant dense<0.000000e+00> : vector<16x8xf32>
    %295 = tpu.matmul %294, %280, %cst_121 {dimension_numbers = #tpu.dot_dimension_numbers<[1], [0], [0], [1], [0, 0, 1, 1], [], []>} : vector<16x16xf32>, vector<16x8xf32>, vector<16x8xf32> -> vector<16x8xf32>
    %296 = vector.extract_strided_slice %213 {offsets = [24, 0], sizes = [8, 32], strides = [1, 1]} : vector<32x32xf32> to vector<8x32xf32>
    %cst_122 = arith.constant dense<0.000000e+00> : vector<16x32xf32>
    %297 = tpu.matmul %295, %296, %cst_122 {dimension_numbers = #tpu.dot_dimension_numbers<[1], [0], [0], [1], [0, 0, 1, 1], [], []>} : vector<16x8xf32>, vector<8x32xf32>, vector<16x32xf32> -> vector<16x32xf32>
    %298 = arith.addf %277, %297 : vector<16x32xf32>
    %c1_123 = arith.constant 1 : index
    %c0_124 = arith.constant 0 : index
    %c0_125 = arith.constant 0 : index
    %299 = vector.load %arg7[%c1_123, %c0_124, %c0_125] : memref<2x1x32xf32, #tpu.memory_space<vmem>>, vector<1x1x32xf32>
    %300 = vector.shape_cast %299 : vector<1x1x32xf32> to vector<1x32xf32>
    %301 = vector.broadcast %300 : vector<1x32xf32> to vector<16x32xf32>
    %302 = arith.addf %298, %301 : vector<16x32xf32>
    %303 = arith.addf %204, %302 : vector<16x32xf32>
    %c1_126 = arith.constant 1 : index
    %c0_127 = arith.constant 0 : index
    %c0_128 = arith.constant 0 : index
    %304 = vector.load %arg8[%c1_126, %c0_127, %c0_128] : memref<2x1x32xf32, #tpu.memory_space<vmem>>, vector<1x1x32xf32>
    %305 = vector.shape_cast %304 : vector<1x1x32xf32> to vector<1x32xf32>
    %c1_129 = arith.constant 1 : index
    %c0_130 = arith.constant 0 : index
    %c0_131 = arith.constant 0 : index
    %306 = vector.load %arg9[%c1_129, %c0_130, %c0_131] : memref<2x1x32xf32, #tpu.memory_space<vmem>>, vector<1x1x32xf32>
    %307 = vector.shape_cast %306 : vector<1x1x32xf32> to vector<1x32xf32>
    %cst_132 = arith.constant dense<0.000000e+00> : vector<16xf32>
    %308 = vector.multi_reduction <add>, %303, %cst_132 [1] : vector<16x32xf32> to vector<16xf32>
    %309 = vector.shape_cast %308 : vector<16xf32> to vector<16x1xf32>
    %cst_133 = arith.constant 3.200000e+01 : f32
    %310 = vector.broadcast %cst_133 : f32 to vector<16x1xf32>
    %311 = arith.divf %309, %310 : vector<16x1xf32>
    %312 = vector.broadcast %311 : vector<16x1xf32> to vector<16x32xf32>
    %313 = arith.subf %303, %312 : vector<16x32xf32>
    %314 = arith.mulf %313, %313 : vector<16x32xf32>
    %cst_134 = arith.constant dense<0.000000e+00> : vector<16xf32>
    %315 = vector.multi_reduction <add>, %314, %cst_134 [1] : vector<16x32xf32> to vector<16xf32>
    %316 = vector.shape_cast %315 : vector<16xf32> to vector<16x1xf32>
    %cst_135 = arith.constant 3.200000e+01 : f32
    %317 = vector.broadcast %cst_135 : f32 to vector<16x1xf32>
    %318 = arith.divf %316, %317 : vector<16x1xf32>
    %319 = vector.broadcast %311 : vector<16x1xf32> to vector<16x32xf32>
    %320 = arith.subf %303, %319 : vector<16x32xf32>
    %cst_136 = arith.constant 9.99999996E-13 : f32
    %321 = vector.broadcast %cst_136 : f32 to vector<16x1xf32>
    %322 = arith.addf %318, %321 : vector<16x1xf32>
    %323 = math.rsqrt %322 : vector<16x1xf32>
    %324 = vector.broadcast %323 : vector<16x1xf32> to vector<16x32xf32>
    %325 = arith.mulf %320, %324 : vector<16x32xf32>
    %326 = vector.broadcast %305 : vector<1x32xf32> to vector<16x32xf32>
    %327 = arith.mulf %325, %326 : vector<16x32xf32>
    %328 = vector.broadcast %307 : vector<1x32xf32> to vector<16x32xf32>
    %329 = arith.addf %327, %328 : vector<16x32xf32>
    %c1_137 = arith.constant 1 : index
    %c0_138 = arith.constant 0 : index
    %c0_139 = arith.constant 0 : index
    %330 = vector.load %arg10[%c1_137, %c0_138, %c0_139] : memref<2x32x64xf32, #tpu.memory_space<vmem>>, vector<1x32x64xf32>
    %331 = vector.shape_cast %330 : vector<1x32x64xf32> to vector<32x64xf32>
    %cst_140 = arith.constant dense<0.000000e+00> : vector<16x64xf32>
    %332 = tpu.matmul %329, %331, %cst_140 {dimension_numbers = #tpu.dot_dimension_numbers<[1], [0], [0], [1], [0, 0, 1, 1], [], []>} : vector<16x32xf32>, vector<32x64xf32>, vector<16x64xf32> -> vector<16x64xf32>
    %c1_141 = arith.constant 1 : index
    %c0_142 = arith.constant 0 : index
    %c0_143 = arith.constant 0 : index
    %333 = vector.load %arg11[%c1_141, %c0_142, %c0_143] : memref<2x1x64xf32, #tpu.memory_space<vmem>>, vector<1x1x64xf32>
    %334 = vector.shape_cast %333 : vector<1x1x64xf32> to vector<1x64xf32>
    %335 = vector.broadcast %334 : vector<1x64xf32> to vector<16x64xf32>
    %336 = arith.addf %332, %335 : vector<16x64xf32>
    %cst_144 = arith.constant 5.000000e-01 : f32
    %337 = vector.broadcast %cst_144 : f32 to vector<16x64xf32>
    %338 = arith.mulf %337, %336 : vector<16x64xf32>
    %cst_145 = arith.constant 4.471500e-02 : f32
    %339 = vector.broadcast %cst_145 : f32 to vector<16x64xf32>
    %340 = arith.mulf %339, %336 : vector<16x64xf32>
    %341 = arith.mulf %340, %336 : vector<16x64xf32>
    %342 = arith.mulf %341, %336 : vector<16x64xf32>
    %343 = arith.addf %336, %342 : vector<16x64xf32>
    %cst_146 = arith.constant 0.797884583 : f32
    %344 = vector.broadcast %cst_146 : f32 to vector<16x64xf32>
    %345 = arith.mulf %344, %343 : vector<16x64xf32>
    %346 = math.tanh %345 : vector<16x64xf32>
    %cst_147 = arith.constant 1.000000e+00 : f32
    %347 = vector.broadcast %cst_147 : f32 to vector<16x64xf32>
    %348 = arith.addf %347, %346 : vector<16x64xf32>
    %349 = arith.mulf %338, %348 : vector<16x64xf32>
    %c1_148 = arith.constant 1 : index
    %c0_149 = arith.constant 0 : index
    %c0_150 = arith.constant 0 : index
    %350 = vector.load %arg12[%c1_148, %c0_149, %c0_150] : memref<2x64x32xf32, #tpu.memory_space<vmem>>, vector<1x64x32xf32>
    %351 = vector.shape_cast %350 : vector<1x64x32xf32> to vector<64x32xf32>
    %cst_151 = arith.constant dense<0.000000e+00> : vector<16x32xf32>
    %352 = tpu.matmul %349, %351, %cst_151 {dimension_numbers = #tpu.dot_dimension_numbers<[1], [0], [0], [1], [0, 0, 1, 1], [], []>} : vector<16x64xf32>, vector<64x32xf32>, vector<16x32xf32> -> vector<16x32xf32>
    %c1_152 = arith.constant 1 : index
    %c0_153 = arith.constant 0 : index
    %c0_154 = arith.constant 0 : index
    %353 = vector.load %arg13[%c1_152, %c0_153, %c0_154] : memref<2x1x32xf32, #tpu.memory_space<vmem>>, vector<1x1x32xf32>
    %354 = vector.shape_cast %353 : vector<1x1x32xf32> to vector<1x32xf32>
    %355 = vector.broadcast %354 : vector<1x32xf32> to vector<16x32xf32>
    %356 = arith.addf %352, %355 : vector<16x32xf32>
    %357 = arith.addf %329, %356 : vector<16x32xf32>
    %c1_155 = arith.constant 1 : index
    %c0_156 = arith.constant 0 : index
    %c0_157 = arith.constant 0 : index
    %358 = vector.load %arg14[%c1_155, %c0_156, %c0_157] : memref<2x1x32xf32, #tpu.memory_space<vmem>>, vector<1x1x32xf32>
    %359 = vector.shape_cast %358 : vector<1x1x32xf32> to vector<1x32xf32>
    %c1_158 = arith.constant 1 : index
    %c0_159 = arith.constant 0 : index
    %c0_160 = arith.constant 0 : index
    %360 = vector.load %arg15[%c1_158, %c0_159, %c0_160] : memref<2x1x32xf32, #tpu.memory_space<vmem>>, vector<1x1x32xf32>
    %361 = vector.shape_cast %360 : vector<1x1x32xf32> to vector<1x32xf32>
    %cst_161 = arith.constant dense<0.000000e+00> : vector<16xf32>
    %362 = vector.multi_reduction <add>, %357, %cst_161 [1] : vector<16x32xf32> to vector<16xf32>
    %363 = vector.shape_cast %362 : vector<16xf32> to vector<16x1xf32>
    %cst_162 = arith.constant 3.200000e+01 : f32
    %364 = vector.broadcast %cst_162 : f32 to vector<16x1xf32>
    %365 = arith.divf %363, %364 : vector<16x1xf32>
    %366 = vector.broadcast %365 : vector<16x1xf32> to vector<16x32xf32>
    %367 = arith.subf %357, %366 : vector<16x32xf32>
    %368 = arith.mulf %367, %367 : vector<16x32xf32>
    %cst_163 = arith.constant dense<0.000000e+00> : vector<16xf32>
    %369 = vector.multi_reduction <add>, %368, %cst_163 [1] : vector<16x32xf32> to vector<16xf32>
    %370 = vector.shape_cast %369 : vector<16xf32> to vector<16x1xf32>
    %cst_164 = arith.constant 3.200000e+01 : f32
    %371 = vector.broadcast %cst_164 : f32 to vector<16x1xf32>
    %372 = arith.divf %370, %371 : vector<16x1xf32>
    %373 = vector.broadcast %365 : vector<16x1xf32> to vector<16x32xf32>
    %374 = arith.subf %357, %373 : vector<16x32xf32>
    %cst_165 = arith.constant 9.99999996E-13 : f32
    %375 = vector.broadcast %cst_165 : f32 to vector<16x1xf32>
    %376 = arith.addf %372, %375 : vector<16x1xf32>
    %377 = math.rsqrt %376 : vector<16x1xf32>
    %378 = vector.broadcast %377 : vector<16x1xf32> to vector<16x32xf32>
    %379 = arith.mulf %374, %378 : vector<16x32xf32>
    %380 = vector.broadcast %359 : vector<1x32xf32> to vector<16x32xf32>
    %381 = arith.mulf %379, %380 : vector<16x32xf32>
    %382 = vector.broadcast %361 : vector<1x32xf32> to vector<16x32xf32>
    %383 = arith.addf %381, %382 : vector<16x32xf32>
    %c0_166 = arith.constant 0 : index
    %c0_167 = arith.constant 0 : index
    %384 = vector.load %arg16[%c0_166, %c0_167] : memref<32x2xf32, #tpu.memory_space<vmem>>, vector<32x2xf32>
    %cst_168 = arith.constant dense<0.000000e+00> : vector<16x2xf32>
    %385 = tpu.matmul %383, %384, %cst_168 {dimension_numbers = #tpu.dot_dimension_numbers<[1], [0], [0], [1], [0, 0, 1, 1], [], []>} : vector<16x32xf32>, vector<32x2xf32>, vector<16x2xf32> -> vector<16x2xf32>
    %c0_169 = arith.constant 0 : index
    %c0_170 = arith.constant 0 : index
    %386 = vector.load %arg17[%c0_169, %c0_170] : memref<1x2xf32, #tpu.memory_space<vmem>>, vector<1x2xf32>
    %387 = vector.broadcast %386 : vector<1x2xf32> to vector<16x2xf32>
    %388 = arith.addf %385, %387 : vector<16x2xf32>
    %389 = tpu.transpose %388, [1, 0] : vector<16x2xf32> -> vector<2x16xf32>
    %c0_171 = arith.constant 0 : index
    %c0_172 = arith.constant 0 : index
    %390 = vector.load %arg18[%c0_171, %c0_172] : memref<2x16xf32, #tpu.memory_space<vmem>>, vector<2x16xf32>
    tpu.vector_store %arg18[%c0_171, %c0_172], %389 {strides = array<i32>} : memref<2x16xf32, #tpu.memory_space<vmem>>, vector<2x16xf32>,
    return
  }
}

</mosaic_0001>

<llo_original>
// kernel: squeeze.2
$region0: #{squeeze.2}
  %s0 = inlined_call_operand.vmem [shape: f32[16], index: 0, kind: input, shape index: {}]
  %s1 = inlined_call_operand.hbm [shape: f32[2,8], index: 1, kind: output, shape index: {}]
  $region1: #{squeeze.2} parent=0
    #allocation0 [shape = 'u8[1024]{0}', space=vmem, size = 0x400, scoped, tag = 'operand span for operand 1']
    #allocation1 [shape = 's32[1]{0}', space=sflag, size = 0x4, scoped, tag = 'scoped memory for squeeze.2']
    #allocation2 [shape = 'u8[4096]{0}', space=vmem, size = 0x1000, scoped, tag = 'scoped mem for output reshape']
    #allocation3 [shape = 'u8[4096]{0}', space=vmem, size = 0x1000, scoped, tag = 'scoped mem for input reshape']
    %2 = vsyncpa [#allocation1], 0
    %s4 = sshllo.u32 0, 1
    %v5 = vld [vmem:[%s0] sm:%s4]
    %6 = vst [vmem:[#allocation3] sm:%s4] %v5
    %v7 = vld [vmem:[#allocation3] sm:$0x1]
    %vm8 = vcmask 64512
    %9 = vst.msk [vmem:[#allocation2] sm:$0x1] %vm8, %v7
    %v10 = vld [vmem:[#allocation3] sm:$0x1]
    %11 = vrot.lane.b32.xlu0 %v10, 120
    %v12 = vpop.permute.xlu0 %11
    %vm13 = vcmask 64512
    %s14 = scalar_lea.vmem [#allocation2], 1
    %15 = vst.msk [vmem:[%s14] sm:$0x1] %vm13, %v12
    %s17 = sshllo.u32 0, 2
    %v19 = vld [vmem:[#allocation2] sm:%s17]
    %s20 = sshllo.u32 0, 2
    %21 = vst [vmem:[#allocation0] sm:%s20] %v19
    %s23 = ssub.s32 32, 32
    %24 = vsyncadd [#allocation1], %s23
    %s26 = sshll.u32 [#allocation0], 4
    %s27 = int_to_ptr.vmem [resolvable:$true] %s26
    %29 = dma.vmem_to_hbm [thread:$0]  %s27, 32, %s1, [#allocation1]
    %30 = dma.done [#allocation1], 32
    %31 = vsyncpa [#allocation1], 1

// kernel: bert_qa_forward.1
$region0: #{bert_qa_forward.1}
  #allocation0 [shape = 'u32[]', space=smem, size = 0x4, offset = 0x4, fixed_abs, tag = 'smem constant byte address 0x4 - core index']
  #allocation1 [shape = 'u32[144,128]{1,0:T(1,128)}', space=vmem, size = 0x12000, scoped, tag = 'internal scratch']
  %s0 = inlined_call_operand.vmem [shape: f32[16,32], index: 0, kind: input, shape index: {}]
  %s1 = inlined_call_operand.vmem [shape: f32[16,16], index: 1, kind: input, shape index: {}]
  %s2 = inlined_call_operand.vmem [shape: f32[1,32], index: 2, kind: input, shape index: {}]
  %s3 = inlined_call_operand.vmem [shape: f32[1,32], index: 3, kind: input, shape index: {}]
  %s4 = inlined_call_operand.vmem [shape: f32[2,32,96], index: 4, kind: input, shape index: {}]
  %s5 = inlined_call_operand.vmem [shape: f32[2,1,96], index: 5, kind: input, shape index: {}]
  %s6 = inlined_call_operand.vmem [shape: f32[2,32,32], index: 6, kind: input, shape index: {}]
  %s7 = inlined_call_operand.vmem [shape: f32[2,1,32], index: 7, kind: input, shape index: {}]
  %s8 = inlined_call_operand.vmem [shape: f32[2,1,32], index: 8, kind: input, shape index: {}]
  %s9 = inlined_call_operand.vmem [shape: f32[2,1,32], index: 9, kind: input, shape index: {}]
  %s10 = inlined_call_operand.vmem [shape: f32[2,32,64], index: 10, kind: input, shape index: {}]
  %s11 = inlined_call_operand.vmem [shape: f32[2,1,64], index: 11, kind: input, shape index: {}]
  %s12 = inlined_call_operand.vmem [shape: f32[2,64,32], index: 12, kind: input, shape index: {}]
  %s13 = inlined_call_operand.vmem [shape: f32[2,1,32], index: 13, kind: input, shape index: {}]
  %s14 = inlined_call_operand.vmem [shape: f32[2,1,32], index: 14, kind: input, shape index: {}]
  %s15 = inlined_call_operand.vmem [shape: f32[2,1,32], index: 15, kind: input, shape index: {}]
  %s16 = inlined_call_operand.vmem [shape: f32[32,2], index: 16, kind: input, shape index: {}]
  %s17 = inlined_call_operand.vmem [shape: f32[1,2], index: 17, kind: input, shape index: {}]
  %s18 = inlined_call_operand.vmem [shape: f32[2,16], index: 18, kind: output, shape index: {}]
  %s19 = sld [smem:[#allocation0]]
  $region82: #{bert_qa_forward.1} parent=0
    _
  %s21 = ssub.s32 1, %s19
  %s22 = scalar_select 0, %s21, %s19
  // Predicated region
  $region2: #{bert_qa_forward.1} parent=0 // pred_check
    _
  $region3: #{bert_qa_forward.1} parent=0 // pred_check_branch
    %24 = sbr.rel (0) target = $region5
  $region4: #{bert_qa_forward.1} parent=0 // pred_region
    _
  $region5: #{bert_qa_forward.1} parent=0 // pred_fallthru
    _
  // Predicated region
  $region6: #{bert_qa_forward.1} parent=0 // pred_check
    _
  $region7: #{bert_qa_forward.1} parent=0 // pred_check_branch
    %26 = sbr.rel (0) target = $region9
  $region8: #{bert_qa_forward.1} parent=0 // pred_region
    _
  $region9: #{bert_qa_forward.1} parent=0 // pred_fallthru
    _
  // Predicated region
  $region10: #{bert_qa_forward.1} parent=0 // pred_check
    _
  $region11: #{bert_qa_forward.1} parent=0 // pred_check_branch
    %28 = sbr.rel (0) target = $region13
  $region12: #{bert_qa_forward.1} parent=0 // pred_region
    _
  $region13: #{bert_qa_forward.1} parent=0 // pred_fallthru
    _
  // Predicated region
  $region14: #{bert_qa_forward.1} parent=0 // pred_check
    _
  $region15: #{bert_qa_forward.1} parent=0 // pred_check_branch
    %30 = sbr.rel (0) target = $region17
  $region16: #{bert_qa_forward.1} parent=0 // pred_region
    _
  $region17: #{bert_qa_forward.1} parent=0 // pred_fallthru
    _
  // Predicated region
  $region18: #{bert_qa_forward.1} parent=0 // pred_check
    _
  $region19: #{bert_qa_forward.1} parent=0 // pred_check_branch
    %32 = sbr.rel (0) target = $region21
  $region20: #{bert_qa_forward.1} parent=0 // pred_region
    _
  $region21: #{bert_qa_forward.1} parent=0 // pred_fallthru
    _
  // Predicated region
  $region22: #{bert_qa_forward.1} parent=0 // pred_check
    _
  $region23: #{bert_qa_forward.1} parent=0 // pred_check_branch
    %34 = sbr.rel (0) target = $region25
  $region24: #{bert_qa_forward.1} parent=0 // pred_region
    _
  $region25: #{bert_qa_forward.1} parent=0 // pred_fallthru
    _
  // Predicated region
  $region26: #{bert_qa_forward.1} parent=0 // pred_check
    _
  $region27: #{bert_qa_forward.1} parent=0 // pred_check_branch
    %36 = sbr.rel (0) target = $region29
  $region28: #{bert_qa_forward.1} parent=0 // pred_region
    _
  $region29: #{bert_qa_forward.1} parent=0 // pred_fallthru
    _
  // Predicated region
  $region30: #{bert_qa_forward.1} parent=0 // pred_check
    _
  $region31: #{bert_qa_forward.1} parent=0 // pred_check_branch
    %38 = sbr.rel (0) target = $region33
  $region32: #{bert_qa_forward.1} parent=0 // pred_region
    _
  $region33: #{bert_qa_forward.1} parent=0 // pred_fallthru
    _
  // Predicated region
  $region34: #{bert_qa_forward.1} parent=0 // pred_check
    _
  $region35: #{bert_qa_forward.1} parent=0 // pred_check_branch
    %40 = sbr.rel (0) target = $region37
  $region36: #{bert_qa_forward.1} parent=0 // pred_region
    _
  $region37: #{bert_qa_forward.1} parent=0 // pred_fallthru
    _
  // Predicated region
  $region38: #{bert_qa_forward.1} parent=0 // pred_check
    _
  $region39: #{bert_qa_forward.1} parent=0 // pred_check_branch
    %42 = sbr.rel (0) target = $region41
  $region40: #{bert_qa_forward.1} parent=0 // pred_region
    _
  $region41: #{bert_qa_forward.1} parent=0 // pred_fallthru
    _
  // Predicated region
  $region42: #{bert_qa_forward.1} parent=0 // pred_check
    _
  $region43: #{bert_qa_forward.1} parent=0 // pred_check_branch
    %44 = sbr.rel (0) target = $region45
  $region44: #{bert_qa_forward.1} parent=0 // pred_region
    _
  $region45: #{bert_qa_forward.1} parent=0 // pred_fallthru
    _
  // Predicated region
  $region46: #{bert_qa_forward.1} parent=0 // pred_check
    _
  $region47: #{bert_qa_forward.1} parent=0 // pred_check_branch
    %46 = sbr.rel (0) target = $region49
  $region48: #{bert_qa_forward.1} parent=0 // pred_region
    _
  $region49: #{bert_qa_forward.1} parent=0 // pred_fallthru
    _
  // Predicated region
  $region50: #{bert_qa_forward.1} parent=0 // pred_check
    _
  $region51: #{bert_qa_forward.1} parent=0 // pred_check_branch
    %48 = sbr.rel (0) target = $region53
  $region52: #{bert_qa_forward.1} parent=0 // pred_region
    _
  $region53: #{bert_qa_forward.1} parent=0 // pred_fallthru
    _
  // Predicated region
  $region54: #{bert_qa_forward.1} parent=0 // pred_check
    _
  $region55: #{bert_qa_forward.1} parent=0 // pred_check_branch
    %50 = sbr.rel (0) target = $region57
  $region56: #{bert_qa_forward.1} parent=0 // pred_region
    _
  $region57: #{bert_qa_forward.1} parent=0 // pred_fallthru
    _
  // Predicated region
  $region58: #{bert_qa_forward.1} parent=0 // pred_check
    _
  $region59: #{bert_qa_forward.1} parent=0 // pred_check_branch
    %52 = sbr.rel (0) target = $region61
  $region60: #{bert_qa_forward.1} parent=0 // pred_region
    _
  $region61: #{bert_qa_forward.1} parent=0 // pred_fallthru
    _
  // Predicated region
  $region62: #{bert_qa_forward.1} parent=0 // pred_check
    _
  $region63: #{bert_qa_forward.1} parent=0 // pred_check_branch
    %54 = sbr.rel (0) target = $region65
  $region64: #{bert_qa_forward.1} parent=0 // pred_region
    _
  $region65: #{bert_qa_forward.1} parent=0 // pred_fallthru
    _
  // Predicated region
  $region66: #{bert_qa_forward.1} parent=0 // pred_check
    _
  $region67: #{bert_qa_forward.1} parent=0 // pred_check_branch
    %56 = sbr.rel (0) target = $region69
  $region68: #{bert_qa_forward.1} parent=0 // pred_region
    _
  $region69: #{bert_qa_forward.1} parent=0 // pred_fallthru
    _
  // Predicated region
  $region70: #{bert_qa_forward.1} parent=0 // pred_check
    _
  $region71: #{bert_qa_forward.1} parent=0 // pred_check_branch
    %58 = sbr.rel (0) target = $region73
  $region72: #{bert_qa_forward.1} parent=0 // pred_region
    _
  $region73: #{bert_qa_forward.1} parent=0 // pred_fallthru
    _
  %v59 = vld [vmem:[%s0] sm:$0xff]
  %v60 = vld [vmem:[%s0 + $0x8] sm:$0xff]
  %v61 = vld [vmem:[%s2] sm:$0x1]
  %v62 = vld [vmem:[%s3] sm:$0x1]
  %vm63 = vcmask 261120
  %v64 = vsel %vm63, %v59, 0.0
  %65 = vadd.xlane.f32.xlu0 %v64
  %v66 = vpop.xlane.xlu0 %65
  %v67 = vsel %vm63, %v60, 0.0
  %68 = vadd.xlane.f32.xlu0 %v67
  %v69 = vpop.xlane.xlu0 %68
  %v70 = vrcp.pop 32.0
  %v71 = vmul.f32 %v66, %v70
  %v72 = vmul.f32 %v69, %v70
  %v73 = vsub.f32 %v59, %v71
  %v74 = vsub.f32 %v60, %v72
  %v75 = vmul.f32 %v73, %v73
  %v76 = vmul.f32 %v74, %v74
  %v77 = vsel %vm63, %v75, 0.0
  %78 = vadd.xlane.f32.xlu0 %v77
  %v79 = vpop.xlane.xlu0 %78
  %v80 = vsel %vm63, %v76, 0.0
  %81 = vadd.xlane.f32.xlu0 %v80
  %v82 = vpop.xlane.xlu0 %81
  %v83 = vmul.f32 %v79, %v70
  %v84 = vmul.f32 %v82, %v70
  %v85 = vadd.f32 %v83, 1e-12
  %v86 = vadd.f32 %v84, 1e-12
  %v87 = vrsqrt.pop %v85
  %v88 = vrsqrt.pop %v86
  %v89 = vmul.f32 %v73, %v87
  %v90 = vmul.f32 %v74, %v88
  %v92 = vlaneseq
  %v93 = vshrl.u32 %v92, 7
  %v94 = vsub.s32 0, %v93
  %v95 = vrot.slane %v61, %v94
  %v97 = vmul.f32 %v89, %v95
  %v98 = vmul.f32 %v90, %v95
  %v100 = vlaneseq
  %v101 = vshrl.u32 %v100, 7
  %v102 = vsub.s32 0, %v101
  %v103 = vrot.slane %v62, %v102
  %v105 = vadd.f32 %v97, %v103
  %v106 = vadd.f32 %v98, %v103
  %v107 = vld [vmem:[%s1] sm:$0xff]
  %v108 = vld [vmem:[%s1 + $0x8] sm:$0xff]
  %v109 = vld [vmem:[%s4] sm:$0xff]
  %v110 = vld [vmem:[%s4 + $0x8] sm:$0xff]
  %v111 = vld [vmem:[%s4 + $0x10] sm:$0xff]
  %v112 = vld [vmem:[%s4 + $0x18] sm:$0xff]
  %v113 = vld [vmem:[%s5] sm:$0x1]
  %v115 = vlaneseq
  %v116 = vshrl.u32 %v115, 7
  %v117 = vsub.s32 0, %v116
  %v118 = vrot.slane %v113, %v117
  %v121 = vsel %vm63, %v105, 0
  %v124 = vsel %vm63, %v106, 0
  %126 = vmatprep.subr.mxu0 0.0
  %127 = vmatpush1.msra.mxu0 %v109
  %128 = vmatprep.subr.mxu0 0.0
  %129 = vmatpush1.msra.mxu0 %v110
  %130 = vmatprep.subr.mxu0 0.0
  %131 = vmatpush1.msra.mxu0 %v111
  %132 = vmatprep.subr.mxu0 0.0
  %133 = vmatpush1.msra.mxu0 %v112
  %134 = vmatprep.subr.mxu0 0.0
  %135 = vmatpush1.msra.mxu0 0.0
  %136 = vmatprep.subr.mxu0 0.0
  %137 = vmatpush1.msra.mxu0 0.0
  %138 = vmatprep.subr.mxu0 0.0
  %139 = vmatpush1.msra.mxu0 0.0
  %140 = vmatprep.subr.mxu0 0.0
  %141 = vmatpush1.msra.mxu0 0.0
  %142 = vmatprep.subr.mxu0 0.0
  %143 = vmatpush1.msra.mxu0 0.0
  %144 = vmatprep.subr.mxu0 0.0
  %145 = vmatpush1.msra.mxu0 0.0
  %146 = vmatprep.subr.mxu0 0.0
  %147 = vmatpush1.msra.mxu0 0.0
  %148 = vmatprep.subr.mxu0 0.0
  %149 = vmatpush1.msra.mxu0 0.0
  %150 = vmatprep.subr.mxu0 0.0
  %151 = vmatpush1.msra.mxu0 0.0
  %152 = vmatprep.subr.mxu0 0.0
  %153 = vmatpush1.msra.mxu0 0.0
  %154 = vmatprep.subr.mxu0 0.0
  %155 = vmatpush1.msra.mxu0 0.0
  %156 = vmatprep.subr.mxu0 0.0
  %157 = vmatpush1.msra.mxu0 0.0
  %158 = vmatprep.subr.mxu0 0.0
  %159 = vmatpush1.msra.mxu0 0.0
  %160 = vmatprep.subr.mxu0 0.0
  %161 = vmatpush1.msra.mxu0 0.0
  %162 = vmatprep.subr.mxu0 0.0
  %163 = vmatpush1.msra.mxu0 0.0
  %164 = vmatprep.subr.mxu0 0.0
  %165 = vmatpush1.msra.mxu0 0.0
  %166 = vmatprep.subr.mxu0 0.0
  %167 = vmatpush1.msra.mxu0 0.0
  %168 = vmatprep.subr.mxu0 0.0
  %169 = vmatpush1.msra.mxu0 0.0
  %170 = vmatprep.subr.mxu0 0.0
  %171 = vmatpush1.msra.mxu0 0.0
  %172 = vmatprep.subr.mxu0 0.0
  %173 = vmatpush1.msra.mxu0 0.0
  %174 = vmatprep.subr.mxu0 0.0
  %175 = vmatpush1.msra.mxu0 0.0
  %176 = vmatprep.subr.mxu0 0.0
  %177 = vmatpush1.msra.mxu0 0.0
  %178 = vmatprep.subr.mxu0 0.0
  %179 = vmatpush1.msra.mxu0 0.0
  %180 = vmatprep.subr.mxu0 0.0
  %181 = vmatpush1.msra.mxu0 0.0
  %182 = vmatprep.subr.mxu0 0.0
  %183 = vmatpush1.msra.mxu0 0.0
  %184 = vmatprep.subr.mxu0 0.0
  %185 = vmatpush1.msra.mxu0 0.0
  %186 = vmatprep.subr.mxu0 0.0
  %187 = vmatpush1.msra.mxu0 0.0
  %188 = vmatprep.subr.mxu0 0.0
  %189 = vmatpush1.msra.mxu0 0.0
  %190 = vmatprep.mubr.f32.mxu0 0.0
  %191 = vmatmul.mubr.f32.gmra.mrb[0].mxu0 %v121
  %v192 = vpop.f32.mrb[0].mxu0
  %v193 = vadd.f32 %v118, %v192
  %v194 = vpop.f32.mrb[0].mxu0
  %195 = vmatprep.mubr.f32.mxu0 0.0
  %196 = vmatmul.mubr.f32.gmra.mrb[0].mxu0 %v124
  %v197 = vpop.f32.mrb[0].mxu0
  %v198 = vadd.f32 %v118, %v197
  %v199 = vpop.f32.mrb[0].mxu0
  %200 = vdwg.mxu0
  %v201 = vld [vmem:[%s6] sm:$0xff]
  %v202 = vld [vmem:[%s6 + $0x8] sm:$0xff]
  %v203 = vld [vmem:[%s6 + $0x10] sm:$0xff]
  %v204 = vld [vmem:[%s6 + $0x18] sm:$0xff]
  %207 = vrot.lane.b32.xlu0 %v193, 96
  %v208 = vpop.permute.xlu0 %207
  %209 = vrot.lane.b32.xlu0 %v198, 96
  %v210 = vpop.permute.xlu0 %209
  %vm211 = vcmask 64512
  %v212 = vsel %vm211, %v193, 0
  %v214 = vsel %vm211, %v198, 0
  %v216 = vsel %vm211, %v208, 0
  %v218 = vsel %vm211, %v210, 0
  %220 = vmatprep.subr.mxu0 0.0
  %221 = vmatpush1.xpose.msra.mxu0 %v216
  %222 = vmatprep.subr.mxu0 0.0
  %223 = vmatpush1.xpose.msra.mxu0 %v218
  %224 = vmatprep.subr.mxu0 0.0
  %225 = vmatpush1.xpose.msra.mxu0 0.0
  %226 = vmatprep.subr.mxu0 0.0
  %227 = vmatpush1.xpose.msra.mxu0 0.0
  %228 = vmatprep.subr.mxu0 0.0
  %229 = vmatpush1.xpose.msra.mxu0 0.0
  %230 = vmatprep.subr.mxu0 0.0
  %231 = vmatpush1.xpose.msra.mxu0 0.0
  %232 = vmatprep.subr.mxu0 0.0
  %233 = vmatpush1.xpose.msra.mxu0 0.0
  %234 = vmatprep.subr.mxu0 0.0
  %235 = vmatpush1.xpose.msra.mxu0 0.0
  %236 = vmatprep.subr.mxu0 0.0
  %237 = vmatpush1.xpose.msra.mxu0 0.0
  %238 = vmatprep.subr.mxu0 0.0
  %239 = vmatpush1.xpose.msra.mxu0 0.0
  %240 = vmatprep.subr.mxu0 0.0
  %241 = vmatpush1.xpose.msra.mxu0 0.0
  %242 = vmatprep.subr.mxu0 0.0
  %243 = vmatpush1.xpose.msra.mxu0 0.0
  %244 = vmatprep.subr.mxu0 0.0
  %245 = vmatpush1.xpose.msra.mxu0 0.0
  %246 = vmatprep.subr.mxu0 0.0
  %247 = vmatpush1.xpose.msra.mxu0 0.0
  %248 = vmatprep.subr.mxu0 0.0
  %249 = vmatpush1.xpose.msra.mxu0 0.0
  %250 = vmatprep.subr.mxu0 0.0
  %251 = vmatpush1.xpose.msra.mxu0 0.0
  %252 = vmatprep.subr.mxu0 0.0
  %253 = vmatpush1.xpose.msra.mxu0 0.0
  %254 = vmatprep.subr.mxu0 0.0
  %255 = vmatpush1.xpose.msra.mxu0 0.0
  %256 = vmatprep.subr.mxu0 0.0
  %257 = vmatpush1.xpose.msra.mxu0 0.0
  %258 = vmatprep.subr.mxu0 0.0
  %259 = vmatpush1.xpose.msra.mxu0 0.0
  %260 = vmatprep.subr.mxu0 0.0
  %261 = vmatpush1.xpose.msra.mxu0 0.0
  %262 = vmatprep.subr.mxu0 0.0
  %263 = vmatpush1.xpose.msra.mxu0 0.0
  %264 = vmatprep.subr.mxu0 0.0
  %265 = vmatpush1.xpose.msra.mxu0 0.0
  %266 = vmatprep.subr.mxu0 0.0
  %267 = vmatpush1.xpose.msra.mxu0 0.0
  %268 = vmatprep.subr.mxu0 0.0
  %269 = vmatpush1.xpose.msra.mxu0 0.0
  %270 = vmatprep.subr.mxu0 0.0
  %271 = vmatpush1.xpose.msra.mxu0 0.0
  %272 = vmatprep.subr.mxu0 0.0
  %273 = vmatpush1.xpose.msra.mxu0 0.0
  %274 = vmatprep.subr.mxu0 0.0
  %275 = vmatpush1.xpose.msra.mxu0 0.0
  %276 = vmatprep.subr.mxu0 0.0
  %277 = vmatpush1.xpose.msra.mxu0 0.0
  %278 = vmatprep.subr.mxu0 0.0
  %279 = vmatpush1.xpose.msra.mxu0 0.0
  %280 = vmatprep.subr.mxu0 0.0
  %281 = vmatpush1.xpose.msra.mxu0 0.0
  %282 = vmatprep.subr.mxu0 0.0
  %283 = vmatpush1.xpose.msra.mxu0 0.0
  %284 = vmatprep.mubr.f32.mxu0 0.0
  %285 = vmatmul.mubr.f32.gmra.mrb[0].mxu0 %v212
  %v286 = vpop.f32.mrb[0].mxu0
  %v287 = vadd.f32 0.0, %v286
  %v288 = vpop.f32.mrb[0].mxu0
  %289 = vmatprep.mubr.f32.mxu0 0.0
  %290 = vmatmul.mubr.f32.gmra.mrb[0].mxu0 %v214
  %v291 = vpop.f32.mrb[0].mxu0
  %v292 = vadd.f32 0.0, %v291
  %v293 = vpop.f32.mrb[0].mxu0
  %294 = vdwg.mxu0
  %v295 = vmul.f32 %v287, 0.35355338
  %v296 = vmul.f32 %v292, 0.35355338
  %v297 = vadd.f32 %v295, %v107
  %v298 = vadd.f32 %v296, %v108
  %vm299 = vcmask 130048
  %v300 = vsel %vm299, %v297, -inf
  %301 = vmax.xlane.f32.xlu0 %v300
  %v302 = vpop.xlane.xlu0 %301
  %v303 = vsel %vm299, %v298, -inf
  %304 = vmax.xlane.f32.xlu0 %v303
  %v305 = vpop.xlane.xlu0 %304
  %v306 = vsub.f32 %v297, %v302
  %v307 = vsub.f32 %v298, %v305
  %v308 = vmul.f32 %v306, 1.442695
  %v309 = vpow.pop %v308
  %v310 = vmul.f32 %v307, 1.442695
  %v311 = vpow.pop %v310
  %v312 = vsel %vm299, %v309, 0.0
  %313 = vadd.xlane.f32.xlu0 %v312
  %v314 = vpop.xlane.xlu0 %313
  %v315 = vsel %vm299, %v311, 0.0
  %316 = vadd.xlane.f32.xlu0 %v315
  %v317 = vpop.xlane.xlu0 %316
  %v318 = vrcp.pop %v314
  %v319 = vrcp.pop %v317
  %v320 = vmul.f32 %v309, %v318
  %v321 = vmul.f32 %v311, %v319
  %322 = vrot.lane.b32.xlu0 %v193, 64
  %v323 = vpop.permute.xlu0 %322
  %324 = vrot.lane.b32.xlu0 %v198, 64
  %v325 = vpop.permute.xlu0 %324
  %v329 = vsel %vm299, %v320, 0
  %v332 = vsel %vm299, %v321, 0
  %334 = vmatprep.subr.mxu0 0.0
  %335 = vmatpush1.msra.mxu0 %v323
  %336 = vmatprep.subr.mxu0 0.0
  %337 = vmatpush1.msra.mxu0 %v325
  %338 = vmatprep.subr.mxu0 0.0
  %339 = vmatpush1.msra.mxu0 0.0
  %340 = vmatprep.subr.mxu0 0.0
  %341 = vmatpush1.msra.mxu0 0.0
  %342 = vmatprep.subr.mxu0 0.0
  %343 = vmatpush1.msra.mxu0 0.0
  %344 = vmatprep.subr.mxu0 0.0
  %345 = vmatpush1.msra.mxu0 0.0
  %346 = vmatprep.subr.mxu0 0.0
  %347 = vmatpush1.msra.mxu0 0.0
  %348 = vmatprep.subr.mxu0 0.0
  %349 = vmatpush1.msra.mxu0 0.0
  %350 = vmatprep.subr.mxu0 0.0
  %351 = vmatpush1.msra.mxu0 0.0
  %352 = vmatprep.subr.mxu0 0.0
  %353 = vmatpush1.msra.mxu0 0.0
  %354 = vmatprep.subr.mxu0 0.0
  %355 = vmatpush1.msra.mxu0 0.0
  %356 = vmatprep.subr.mxu0 0.0
  %357 = vmatpush1.msra.mxu0 0.0
  %358 = vmatprep.subr.mxu0 0.0
  %359 = vmatpush1.msra.mxu0 0.0
  %360 = vmatprep.subr.mxu0 0.0
  %361 = vmatpush1.msra.mxu0 0.0
  %362 = vmatprep.subr.mxu0 0.0
  %363 = vmatpush1.msra.mxu0 0.0
  %364 = vmatprep.subr.mxu0 0.0
  %365 = vmatpush1.msra.mxu0 0.0
  %366 = vmatprep.subr.mxu0 0.0
  %367 = vmatpush1.msra.mxu0 0.0
  %368 = vmatprep.subr.mxu0 0.0
  %369 = vmatpush1.msra.mxu0 0.0
  %370 = vmatprep.subr.mxu0 0.0
  %371 = vmatpush1.msra.mxu0 0.0
  %372 = vmatprep.subr.mxu0 0.0
  %373 = vmatpush1.msra.mxu0 0.0
  %374 = vmatprep.subr.mxu0 0.0
  %375 = vmatpush1.msra.mxu0 0.0
  %376 = vmatprep.subr.mxu0 0.0
  %377 = vmatpush1.msra.mxu0 0.0
  %378 = vmatprep.subr.mxu0 0.0
  %379 = vmatpush1.msra.mxu0 0.0
  %380 = vmatprep.subr.mxu0 0.0
  %381 = vmatpush1.msra.mxu0 0.0
  %382 = vmatprep.subr.mxu0 0.0
  %383 = vmatpush1.msra.mxu0 0.0
  %384 = vmatprep.subr.mxu0 0.0
  %385 = vmatpush1.msra.mxu0 0.0
  %386 = vmatprep.subr.mxu0 0.0
  %387 = vmatpush1.msra.mxu0 0.0
  %388 = vmatprep.subr.mxu0 0.0
  %389 = vmatpush1.msra.mxu0 0.0
  %390 = vmatprep.subr.mxu0 0.0
  %391 = vmatpush1.msra.mxu0 0.0
  %392 = vmatprep.subr.mxu0 0.0
  %393 = vmatpush1.msra.mxu0 0.0
  %394 = vmatprep.subr.mxu0 0.0
  %395 = vmatpush1.msra.mxu0 0.0
  %396 = vmatprep.subr.mxu0 0.0
  %397 = vmatpush1.msra.mxu0 0.0
  %398 = vmatprep.mubr.f32.mxu0 0.0
  %399 = vmatmul.mubr.f32.gmra.mrb[0].mxu0 %v329
  %v400 = vpop.f32.mrb[0].mxu0
  %v401 = vadd.f32 0.0, %v400
  %v402 = vpop.f32.mrb[0].mxu0
  %403 = vmatprep.mubr.f32.mxu0 0.0
  %404 = vmatmul.mubr.f32.gmra.mrb[0].mxu0 %v332
  %v405 = vpop.f32.mrb[0].mxu0
  %v406 = vadd.f32 0.0, %v405
  %v407 = vpop.f32.mrb[0].mxu0
  %408 = vdwg.mxu0
  %409 = vrot.lane.b32.xlu0 %v193, 120
  %v410 = vpop.permute.xlu0 %409
  %411 = vrot.lane.b32.xlu0 %v198, 120
  %v412 = vpop.permute.xlu0 %411
  %413 = vrot.lane.b32.xlu0 %v193, 88
  %v414 = vpop.permute.xlu0 %413
  %415 = vrot.lane.b32.xlu0 %v198, 88
  %v416 = vpop.permute.xlu0 %415
  %v417 = vsel %vm211, %v410, 0
  %v419 = vsel %vm211, %v412, 0
  %v421 = vsel %vm211, %v414, 0
  %v423 = vsel %vm211, %v416, 0
  %425 = vmatprep.subr.mxu0 0.0
  %426 = vmatpush1.xpose.msra.mxu0 %v421
  %427 = vmatprep.subr.mxu0 0.0
  %428 = vmatpush1.xpose.msra.mxu0 %v423
  %429 = vmatprep.subr.mxu0 0.0
  %430 = vmatpush1.xpose.msra.mxu0 0.0
  %431 = vmatprep.subr.mxu0 0.0
  %432 = vmatpush1.xpose.msra.mxu0 0.0
  %433 = vmatprep.subr.mxu0 0.0
  %434 = vmatpush1.xpose.msra.mxu0 0.0
  %435 = vmatprep.subr.mxu0 0.0
  %436 = vmatpush1.xpose.msra.mxu0 0.0
  %437 = vmatprep.subr.mxu0 0.0
  %438 = vmatpush1.xpose.msra.mxu0 0.0
  %439 = vmatprep.subr.mxu0 0.0
  %440 = vmatpush1.xpose.msra.mxu0 0.0
  %441 = vmatprep.subr.mxu0 0.0
  %442 = vmatpush1.xpose.msra.mxu0 0.0
  %443 = vmatprep.subr.mxu0 0.0
  %444 = vmatpush1.xpose.msra.mxu0 0.0
  %445 = vmatprep.subr.mxu0 0.0
  %446 = vmatpush1.xpose.msra.mxu0 0.0
  %447 = vmatprep.subr.mxu0 0.0
  %448 = vmatpush1.xpose.msra.mxu0 0.0
  %449 = vmatprep.subr.mxu0 0.0
  %450 = vmatpush1.xpose.msra.mxu0 0.0
  %451 = vmatprep.subr.mxu0 0.0
  %452 = vmatpush1.xpose.msra.mxu0 0.0
  %453 = vmatprep.subr.mxu0 0.0
  %454 = vmatpush1.xpose.msra.mxu0 0.0
  %455 = vmatprep.subr.mxu0 0.0
  %456 = vmatpush1.xpose.msra.mxu0 0.0
  %457 = vmatprep.subr.mxu0 0.0
  %458 = vmatpush1.xpose.msra.mxu0 0.0
  %459 = vmatprep.subr.mxu0 0.0
  %460 = vmatpush1.xpose.msra.mxu0 0.0
  %461 = vmatprep.subr.mxu0 0.0
  %462 = vmatpush1.xpose.msra.mxu0 0.0
  %463 = vmatprep.subr.mxu0 0.0
  %464 = vmatpush1.xpose.msra.mxu0 0.0
  %465 = vmatprep.subr.mxu0 0.0
  %466 = vmatpush1.xpose.msra.mxu0 0.0
  %467 = vmatprep.subr.mxu0 0.0
  %468 = vmatpush1.xpose.msra.mxu0 0.0
  %469 = vmatprep.subr.mxu0 0.0
  %470 = vmatpush1.xpose.msra.mxu0 0.0
  %471 = vmatprep.subr.mxu0 0.0
  %472 = vmatpush1.xpose.msra.mxu0 0.0
  %473 = vmatprep.subr.mxu0 0.0
  %474 = vmatpush1.xpose.msra.mxu0 0.0
  %475 = vmatprep.subr.mxu0 0.0
  %476 = vmatpush1.xpose.msra.mxu0 0.0
  %477 = vmatprep.subr.mxu0 0.0
  %478 = vmatpush1.xpose.msra.mxu0 0.0
  %479 = vmatprep.subr.mxu0 0.0
  %480 = vmatpush1.xpose.msra.mxu0 0.0
  %481 = vmatprep.subr.mxu0 0.0
  %482 = vmatpush1.xpose.msra.mxu0 0.0
  %483 = vmatprep.subr.mxu0 0.0
  %484 = vmatpush1.xpose.msra.mxu0 0.0
  %485 = vmatprep.subr.mxu0 0.0
  %486 = vmatpush1.xpose.msra.mxu0 0.0
  %487 = vmatprep.subr.mxu0 0.0
  %488 = vmatpush1.xpose.msra.mxu0 0.0
  %489 = vmatprep.mubr.f32.mxu0 0.0
  %490 = vmatmul.mubr.f32.gmra.mrb[0].mxu0 %v417
  %v491 = vpop.f32.mrb[0].mxu0
  %v492 = vadd.f32 0.0, %v491
  %v493 = vpop.f32.mrb[0].mxu0
  %494 = vmatprep.mubr.f32.mxu0 0.0
  %495 = vmatmul.mubr.f32.gmra.mrb[0].mxu0 %v419
  %v496 = vpop.f32.mrb[0].mxu0
  %v497 = vadd.f32 0.0, %v496
  %v498 = vpop.f32.mrb[0].mxu0
  %499 = vdwg.mxu0
  %v500 = vmul.f32 %v492, 0.35355338
  %v501 = vmul.f32 %v497, 0.35355338
  %v502 = vadd.f32 %v500, %v107
  %v503 = vadd.f32 %v501, %v108
  %v504 = vsel %vm299, %v502, -inf
  %505 = vmax.xlane.f32.xlu0 %v504
  %v506 = vpop.xlane.xlu0 %505
  %v507 = vsel %vm299, %v503, -inf
  %508 = vmax.xlane.f32.xlu0 %v507
  %v509 = vpop.xlane.xlu0 %508
  %v510 = vsub.f32 %v502, %v506
  %v511 = vsub.f32 %v503, %v509
  %v512 = vmul.f32 %v510, 1.442695
  %v513 = vpow.pop %v512
  %v514 = vmul.f32 %v511, 1.442695
  %v515 = vpow.pop %v514
  %v516 = vsel %vm299, %v513, 0.0
  %517 = vadd.xlane.f32.xlu0 %v516
  %v518 = vpop.xlane.xlu0 %517
  %v519 = vsel %vm299, %v515, 0.0
  %520 = vadd.xlane.f32.xlu0 %v519
  %v521 = vpop.xlane.xlu0 %520
  %v522 = vrcp.pop %v518
  %v523 = vrcp.pop %v521
  %v524 = vmul.f32 %v513, %v522
  %v525 = vmul.f32 %v515, %v523
  %526 = vrot.lane.b32.xlu0 %v193, 56
  %v527 = vpop.permute.xlu0 %526
  %528 = vrot.lane.b32.xlu0 %v198, 56
  %v529 = vpop.permute.xlu0 %528
  %v533 = vsel %vm299, %v524, 0
  %v536 = vsel %vm299, %v525, 0
  %538 = vmatprep.subr.mxu0 0.0
  %539 = vmatpush1.msra.mxu0 %v527
  %540 = vmatprep.subr.mxu0 0.0
  %541 = vmatpush1.msra.mxu0 %v529
  %542 = vmatprep.subr.mxu0 0.0
  %543 = vmatpush1.msra.mxu0 0.0
  %544 = vmatprep.subr.mxu0 0.0
  %545 = vmatpush1.msra.mxu0 0.0
  %546 = vmatprep.subr.mxu0 0.0
  %547 = vmatpush1.msra.mxu0 0.0
  %548 = vmatprep.subr.mxu0 0.0
  %549 = vmatpush1.msra.mxu0 0.0
  %550 = vmatprep.subr.mxu0 0.0
  %551 = vmatpush1.msra.mxu0 0.0
  %552 = vmatprep.subr.mxu0 0.0
  %553 = vmatpush1.msra.mxu0 0.0
  %554 = vmatprep.subr.mxu0 0.0
  %555 = vmatpush1.msra.mxu0 0.0
  %556 = vmatprep.subr.mxu0 0.0
  %557 = vmatpush1.msra.mxu0 0.0
  %558 = vmatprep.subr.mxu0 0.0
  %559 = vmatpush1.msra.mxu0 0.0
  %560 = vmatprep.subr.mxu0 0.0
  %561 = vmatpush1.msra.mxu0 0.0
  %562 = vmatprep.subr.mxu0 0.0
  %563 = vmatpush1.msra.mxu0 0.0
  %564 = vmatprep.subr.mxu0 0.0
  %565 = vmatpush1.msra.mxu0 0.0
  %566 = vmatprep.subr.mxu0 0.0
  %567 = vmatpush1.msra.mxu0 0.0
  %568 = vmatprep.subr.mxu0 0.0
  %569 = vmatpush1.msra.mxu0 0.0
  %570 = vmatprep.subr.mxu0 0.0
  %571 = vmatpush1.msra.mxu0 0.0
  %572 = vmatprep.subr.mxu0 0.0
  %573 = vmatpush1.msra.mxu0 0.0
  %574 = vmatprep.subr.mxu0 0.0
  %575 = vmatpush1.msra.mxu0 0.0
  %576 = vmatprep.subr.mxu0 0.0
  %577 = vmatpush1.msra.mxu0 0.0
  %578 = vmatprep.subr.mxu0 0.0
  %579 = vmatpush1.msra.mxu0 0.0
  %580 = vmatprep.subr.mxu0 0.0
  %581 = vmatpush1.msra.mxu0 0.0
  %582 = vmatprep.subr.mxu0 0.0
  %583 = vmatpush1.msra.mxu0 0.0
  %584 = vmatprep.subr.mxu0 0.0
  %585 = vmatpush1.msra.mxu0 0.0
  %586 = vmatprep.subr.mxu0 0.0
  %587 = vmatpush1.msra.mxu0 0.0
  %588 = vmatprep.subr.mxu0 0.0
  %589 = vmatpush1.msra.mxu0 0.0
  %590 = vmatprep.subr.mxu0 0.0
  %591 = vmatpush1.msra.mxu0 0.0
  %592 = vmatprep.subr.mxu0 0.0
  %593 = vmatpush1.msra.mxu0 0.0
  %594 = vmatprep.subr.mxu0 0.0
  %595 = vmatpush1.msra.mxu0 0.0
  %596 = vmatprep.subr.mxu0 0.0
  %597 = vmatpush1.msra.mxu0 0.0
  %598 = vmatprep.subr.mxu0 0.0
  %599 = vmatpush1.msra.mxu0 0.0
  %600 = vmatprep.subr.mxu0 0.0
  %601 = vmatpush1.msra.mxu0 0.0
  %602 = vmatprep.mubr.f32.mxu0 0.0
  %603 = vmatmul.mubr.f32.gmra.mrb[0].mxu0 %v533
  %v604 = vpop.f32.mrb[0].mxu0
  %v605 = vadd.f32 0.0, %v604
  %v606 = vpop.f32.mrb[0].mxu0
  %607 = vmatprep.mubr.f32.mxu0 0.0
  %608 = vmatmul.mubr.f32.gmra.mrb[0].mxu0 %v536
  %v609 = vpop.f32.mrb[0].mxu0
  %v610 = vadd.f32 0.0, %v609
  %v611 = vpop.f32.mrb[0].mxu0
  %612 = vdwg.mxu0
  %v614 = vsel %vm211, %v605, 0
  %v617 = vsel %vm211, %v610, 0
  %619 = vmatprep.subr.mxu0 0.0
  %620 = vmatpush1.msra.mxu0 %v202
  %621 = vmatprep.subr.mxu0 0.0
  %622 = vmatpush1.msra.mxu0 0.0
  %623 = vmatprep.subr.mxu0 0.0
  %624 = vmatpush1.msra.mxu0 0.0
  %625 = vmatprep.subr.mxu0 0.0
  %626 = vmatpush1.msra.mxu0 0.0
  %627 = vmatprep.subr.mxu0 0.0
  %628 = vmatpush1.msra.mxu0 0.0
  %629 = vmatprep.subr.mxu0 0.0
  %630 = vmatpush1.msra.mxu0 0.0
  %631 = vmatprep.subr.mxu0 0.0
  %632 = vmatpush1.msra.mxu0 0.0
  %633 = vmatprep.subr.mxu0 0.0
  %634 = vmatpush1.msra.mxu0 0.0
  %635 = vmatprep.subr.mxu0 0.0
  %636 = vmatpush1.msra.mxu0 0.0
  %637 = vmatprep.subr.mxu0 0.0
  %638 = vmatpush1.msra.mxu0 0.0
  %639 = vmatprep.subr.mxu0 0.0
  %640 = vmatpush1.msra.mxu0 0.0
  %641 = vmatprep.subr.mxu0 0.0
  %642 = vmatpush1.msra.mxu0 0.0
  %643 = vmatprep.subr.mxu0 0.0
  %644 = vmatpush1.msra.mxu0 0.0
  %645 = vmatprep.subr.mxu0 0.0
  %646 = vmatpush1.msra.mxu0 0.0
  %647 = vmatprep.subr.mxu0 0.0
  %648 = vmatpush1.msra.mxu0 0.0
  %649 = vmatprep.subr.mxu0 0.0
  %650 = vmatpush1.msra.mxu0 0.0
  %651 = vmatprep.subr.mxu0 0.0
  %652 = vmatpush1.msra.mxu0 0.0
  %653 = vmatprep.subr.mxu0 0.0
  %654 = vmatpush1.msra.mxu0 0.0
  %655 = vmatprep.subr.mxu0 0.0
  %656 = vmatpush1.msra.mxu0 0.0
  %657 = vmatprep.subr.mxu0 0.0
  %658 = vmatpush1.msra.mxu0 0.0
  %659 = vmatprep.subr.mxu0 0.0
  %660 = vmatpush1.msra.mxu0 0.0
  %661 = vmatprep.subr.mxu0 0.0
  %662 = vmatpush1.msra.mxu0 0.0
  %663 = vmatprep.subr.mxu0 0.0
  %664 = vmatpush1.msra.mxu0 0.0
  %665 = vmatprep.subr.mxu0 0.0
  %666 = vmatpush1.msra.mxu0 0.0
  %667 = vmatprep.subr.mxu0 0.0
  %668 = vmatpush1.msra.mxu0 0.0
  %669 = vmatprep.subr.mxu0 0.0
  %670 = vmatpush1.msra.mxu0 0.0
  %671 = vmatprep.subr.mxu0 0.0
  %672 = vmatpush1.msra.mxu0 0.0
  %673 = vmatprep.subr.mxu0 0.0
  %674 = vmatpush1.msra.mxu0 0.0
  %675 = vmatprep.subr.mxu0 0.0
  %676 = vmatpush1.msra.mxu0 0.0
  %677 = vmatprep.subr.mxu0 0.0
  %678 = vmatpush1.msra.mxu0 0.0
  %679 = vmatprep.subr.mxu0 0.0
  %680 = vmatpush1.msra.mxu0 0.0
  %681 = vmatprep.subr.mxu0 0.0
  %682 = vmatpush1.msra.mxu0 0.0
  %683 = vmatprep.mubr.f32.mxu0 0.0
  %684 = vmatmul.mubr.f32.gmra.mrb[0].mxu0 %v614
  %v685 = vpop.f32.mrb[0].mxu0
  %v686 = vadd.f32 0.0, %v685
  %v687 = vpop.f32.mrb[0].mxu0
  %688 = vmatprep.mubr.f32.mxu0 0.0
  %689 = vmatmul.mubr.f32.gmra.mrb[0].mxu0 %v617
  %v690 = vpop.f32.mrb[0].mxu0
  %v691 = vadd.f32 0.0, %v690
  %v692 = vpop.f32.mrb[0].mxu0
  %693 = vdwg.mxu0
  %v695 = vsel %vm211, %v401, 0
  %v698 = vsel %vm211, %v406, 0
  %700 = vmatprep.subr.mxu0 0.0
  %701 = vmatpush1.msra.mxu0 %v201
  %702 = vmatprep.subr.mxu0 0.0
  %703 = vmatpush1.msra.mxu0 0.0
  %704 = vmatprep.subr.mxu0 0.0
  %705 = vmatpush1.msra.mxu0 0.0
  %706 = vmatprep.subr.mxu0 0.0
  %707 = vmatpush1.msra.mxu0 0.0
  %708 = vmatprep.subr.mxu0 0.0
  %709 = vmatpush1.msra.mxu0 0.0
  %710 = vmatprep.subr.mxu0 0.0
  %711 = vmatpush1.msra.mxu0 0.0
  %712 = vmatprep.subr.mxu0 0.0
  %713 = vmatpush1.msra.mxu0 0.0
  %714 = vmatprep.subr.mxu0 0.0
  %715 = vmatpush1.msra.mxu0 0.0
  %716 = vmatprep.subr.mxu0 0.0
  %717 = vmatpush1.msra.mxu0 0.0
  %718 = vmatprep.subr.mxu0 0.0
  %719 = vmatpush1.msra.mxu0 0.0
  %720 = vmatprep.subr.mxu0 0.0
  %721 = vmatpush1.msra.mxu0 0.0
  %722 = vmatprep.subr.mxu0 0.0
  %723 = vmatpush1.msra.mxu0 0.0
  %724 = vmatprep.subr.mxu0 0.0
  %725 = vmatpush1.msra.mxu0 0.0
  %726 = vmatprep.subr.mxu0 0.0
  %727 = vmatpush1.msra.mxu0 0.0
  %728 = vmatprep.subr.mxu0 0.0
  %729 = vmatpush1.msra.mxu0 0.0
  %730 = vmatprep.subr.mxu0 0.0
  %731 = vmatpush1.msra.mxu0 0.0
  %732 = vmatprep.subr.mxu0 0.0
  %733 = vmatpush1.msra.mxu0 0.0
  %734 = vmatprep.subr.mxu0 0.0
  %735 = vmatpush1.msra.mxu0 0.0
  %736 = vmatprep.subr.mxu0 0.0
  %737 = vmatpush1.msra.mxu0 0.0
  %738 = vmatprep.subr.mxu0 0.0
  %739 = vmatpush1.msra.mxu0 0.0
  %740 = vmatprep.subr.mxu0 0.0
  %741 = vmatpush1.msra.mxu0 0.0
  %742 = vmatprep.subr.mxu0 0.0
  %743 = vmatpush1.msra.mxu0 0.0
  %744 = vmatprep.subr.mxu0 0.0
  %745 = vmatpush1.msra.mxu0 0.0
  %746 = vmatprep.subr.mxu0 0.0
  %747 = vmatpush1.msra.mxu0 0.0
  %748 = vmatprep.subr.mxu0 0.0
  %749 = vmatpush1.msra.mxu0 0.0
  %750 = vmatprep.subr.mxu0 0.0
  %751 = vmatpush1.msra.mxu0 0.0
  %752 = vmatprep.subr.mxu0 0.0
  %753 = vmatpush1.msra.mxu0 0.0
  %754 = vmatprep.subr.mxu0 0.0
  %755 = vmatpush1.msra.mxu0 0.0
  %756 = vmatprep.subr.mxu0 0.0
  %757 = vmatpush1.msra.mxu0 0.0
  %758 = vmatprep.subr.mxu0 0.0
  %759 = vmatpush1.msra.mxu0 0.0
  %760 = vmatprep.subr.mxu0 0.0
  %761 = vmatpush1.msra.mxu0 0.0
  %762 = vmatprep.subr.mxu0 0.0
  %763 = vmatpush1.msra.mxu0 0.0
  %764 = vmatprep.mubr.f32.mxu0 0.0
  %765 = vmatmul.mubr.f32.gmra.mrb[0].mxu0 %v695
  %v766 = vpop.f32.mrb[0].mxu0
  %v767 = vadd.f32 %v686, %v766
  %v768 = vpop.f32.mrb[0].mxu0
  %769 = vmatprep.mubr.f32.mxu0 0.0
  %770 = vmatmul.mubr.f32.gmra.mrb[0].mxu0 %v698
  %v771 = vpop.f32.mrb[0].mxu0
  %v772 = vadd.f32 %v691, %v771
  %v773 = vpop.f32.mrb[0].mxu0
  %774 = vdwg.mxu0
  %775 = vrot.lane.b32.xlu0 %v193, 112
  %v776 = vpop.permute.xlu0 %775
  %777 = vrot.lane.b32.xlu0 %v198, 112
  %v778 = vpop.permute.xlu0 %777
  %779 = vrot.lane.b32.xlu0 %v193, 80
  %v780 = vpop.permute.xlu0 %779
  %781 = vrot.lane.b32.xlu0 %v198, 80
  %v782 = vpop.permute.xlu0 %781
  %v783 = vsel %vm211, %v776, 0
  %v785 = vsel %vm211, %v778, 0
  %v787 = vsel %vm211, %v780, 0
  %v789 = vsel %vm211, %v782, 0
  %791 = vmatprep.subr.mxu0 0.0
  %792 = vmatpush1.xpose.msra.mxu0 %v787
  %793 = vmatprep.subr.mxu0 0.0
  %794 = vmatpush1.xpose.msra.mxu0 %v789
  %795 = vmatprep.subr.mxu0 0.0
  %796 = vmatpush1.xpose.msra.mxu0 0.0
  %797 = vmatprep.subr.mxu0 0.0
  %798 = vmatpush1.xpose.msra.mxu0 0.0
  %799 = vmatprep.subr.mxu0 0.0
  %800 = vmatpush1.xpose.msra.mxu0 0.0
  %801 = vmatprep.subr.mxu0 0.0
  %802 = vmatpush1.xpose.msra.mxu0 0.0
  %803 = vmatprep.subr.mxu0 0.0
  %804 = vmatpush1.xpose.msra.mxu0 0.0
  %805 = vmatprep.subr.mxu0 0.0
  %806 = vmatpush1.xpose.msra.mxu0 0.0
  %807 = vmatprep.subr.mxu0 0.0
  %808 = vmatpush1.xpose.msra.mxu0 0.0
  %809 = vmatprep.subr.mxu0 0.0
  %810 = vmatpush1.xpose.msra.mxu0 0.0
  %811 = vmatprep.subr.mxu0 0.0
  %812 = vmatpush1.xpose.msra.mxu0 0.0
  %813 = vmatprep.subr.mxu0 0.0
  %814 = vmatpush1.xpose.msra.mxu0 0.0
  %815 = vmatprep.subr.mxu0 0.0
  %816 = vmatpush1.xpose.msra.mxu0 0.0
  %817 = vmatprep.subr.mxu0 0.0
  %818 = vmatpush1.xpose.msra.mxu0 0.0
  %819 = vmatprep.subr.mxu0 0.0
  %820 = vmatpush1.xpose.msra.mxu0 0.0
  %821 = vmatprep.subr.mxu0 0.0
  %822 = vmatpush1.xpose.msra.mxu0 0.0
  %823 = vmatprep.subr.mxu0 0.0
  %824 = vmatpush1.xpose.msra.mxu0 0.0
  %825 = vmatprep.subr.mxu0 0.0
  %826 = vmatpush1.xpose.msra.mxu0 0.0
  %827 = vmatprep.subr.mxu0 0.0
  %828 = vmatpush1.xpose.msra.mxu0 0.0
  %829 = vmatprep.subr.mxu0 0.0
  %830 = vmatpush1.xpose.msra.mxu0 0.0
  %831 = vmatprep.subr.mxu0 0.0
  %832 = vmatpush1.xpose.msra.mxu0 0.0
  %833 = vmatprep.subr.mxu0 0.0
  %834 = vmatpush1.xpose.msra.mxu0 0.0
  %835 = vmatprep.subr.mxu0 0.0
  %836 = vmatpush1.xpose.msra.mxu0 0.0
  %837 = vmatprep.subr.mxu0 0.0
  %838 = vmatpush1.xpose.msra.mxu0 0.0
  %839 = vmatprep.subr.mxu0 0.0
  %840 = vmatpush1.xpose.msra.mxu0 0.0
  %841 = vmatprep.subr.mxu0 0.0
  %842 = vmatpush1.xpose.msra.mxu0 0.0
  %843 = vmatprep.subr.mxu0 0.0
  %844 = vmatpush1.xpose.msra.mxu0 0.0
  %845 = vmatprep.subr.mxu0 0.0
  %846 = vmatpush1.xpose.msra.mxu0 0.0
  %847 = vmatprep.subr.mxu0 0.0
  %848 = vmatpush1.xpose.msra.mxu0 0.0
  %849 = vmatprep.subr.mxu0 0.0
  %850 = vmatpush1.xpose.msra.mxu0 0.0
  %851 = vmatprep.subr.mxu0 0.0
  %852 = vmatpush1.xpose.msra.mxu0 0.0
  %853 = vmatprep.subr.mxu0 0.0
  %854 = vmatpush1.xpose.msra.mxu0 0.0
  %855 = vmatprep.mubr.f32.mxu0 0.0
  %856 = vmatmul.mubr.f32.gmra.mrb[0].mxu0 %v783
  %v857 = vpop.f32.mrb[0].mxu0
  %v858 = vadd.f32 0.0, %v857
  %v859 = vpop.f32.mrb[0].mxu0
  %860 = vmatprep.mubr.f32.mxu0 0.0
  %861 = vmatmul.mubr.f32.gmra.mrb[0].mxu0 %v785
  %v862 = vpop.f32.mrb[0].mxu0
  %v863 = vadd.f32 0.0, %v862
  %v864 = vpop.f32.mrb[0].mxu0
  %865 = vdwg.mxu0
  %v866 = vmul.f32 %v858, 0.35355338
  %v867 = vmul.f32 %v863, 0.35355338
  %v868 = vadd.f32 %v866, %v107
  %v869 = vadd.f32 %v867, %v108
  %v870 = vsel %vm299, %v868, -inf
  %871 = vmax.xlane.f32.xlu0 %v870
  %v872 = vpop.xlane.xlu0 %871
  %v873 = vsel %vm299, %v869, -inf
  %874 = vmax.xlane.f32.xlu0 %v873
  %v875 = vpop.xlane.xlu0 %874
  %v876 = vsub.f32 %v868, %v872
  %v877 = vsub.f32 %v869, %v875
  %v878 = vmul.f32 %v876, 1.442695
  %v879 = vpow.pop %v878
  %v880 = vmul.f32 %v877, 1.442695
  %v881 = vpow.pop %v880
  %v882 = vsel %vm299, %v879, 0.0
  %883 = vadd.xlane.f32.xlu0 %v882
  %v884 = vpop.xlane.xlu0 %883
  %v885 = vsel %vm299, %v881, 0.0
  %886 = vadd.xlane.f32.xlu0 %v885
  %v887 = vpop.xlane.xlu0 %886
  %v888 = vrcp.pop %v884
  %v889 = vrcp.pop %v887
  %v890 = vmul.f32 %v879, %v888
  %v891 = vmul.f32 %v881, %v889
  %892 = vrot.lane.b32.xlu0 %v193, 48
  %v893 = vpop.permute.xlu0 %892
  %894 = vrot.lane.b32.xlu0 %v198, 48
  %v895 = vpop.permute.xlu0 %894
  %v899 = vsel %vm299, %v890, 0
  %v902 = vsel %vm299, %v891, 0
  %904 = vmatprep.subr.mxu0 0.0
  %905 = vmatpush1.msra.mxu0 %v893
  %906 = vmatprep.subr.mxu0 0.0
  %907 = vmatpush1.msra.mxu0 %v895
  %908 = vmatprep.subr.mxu0 0.0
  %909 = vmatpush1.msra.mxu0 0.0
  %910 = vmatprep.subr.mxu0 0.0
  %911 = vmatpush1.msra.mxu0 0.0
  %912 = vmatprep.subr.mxu0 0.0
  %913 = vmatpush1.msra.mxu0 0.0
  %914 = vmatprep.subr.mxu0 0.0
  %915 = vmatpush1.msra.mxu0 0.0
  %916 = vmatprep.subr.mxu0 0.0
  %917 = vmatpush1.msra.mxu0 0.0
  %918 = vmatprep.subr.mxu0 0.0
  %919 = vmatpush1.msra.mxu0 0.0
  %920 = vmatprep.subr.mxu0 0.0
  %921 = vmatpush1.msra.mxu0 0.0
  %922 = vmatprep.subr.mxu0 0.0
  %923 = vmatpush1.msra.mxu0 0.0
  %924 = vmatprep.subr.mxu0 0.0
  %925 = vmatpush1.msra.mxu0 0.0
  %926 = vmatprep.subr.mxu0 0.0
  %927 = vmatpush1.msra.mxu0 0.0
  %928 = vmatprep.subr.mxu0 0.0
  %929 = vmatpush1.msra.mxu0 0.0
  %930 = vmatprep.subr.mxu0 0.0
  %931 = vmatpush1.msra.mxu0 0.0
  %932 = vmatprep.subr.mxu0 0.0
  %933 = vmatpush1.msra.mxu0 0.0
  %934 = vmatprep.subr.mxu0 0.0
  %935 = vmatpush1.msra.mxu0 0.0
  %936 = vmatprep.subr.mxu0 0.0
  %937 = vmatpush1.msra.mxu0 0.0
  %938 = vmatprep.subr.mxu0 0.0
  %939 = vmatpush1.msra.mxu0 0.0
  %940 = vmatprep.subr.mxu0 0.0
  %941 = vmatpush1.msra.mxu0 0.0
  %942 = vmatprep.subr.mxu0 0.0
  %943 = vmatpush1.msra.mxu0 0.0
  %944 = vmatprep.subr.mxu0 0.0
  %945 = vmatpush1.msra.mxu0 0.0
  %946 = vmatprep.subr.mxu0 0.0
  %947 = vmatpush1.msra.mxu0 0.0
  %948 = vmatprep.subr.mxu0 0.0
  %949 = vmatpush1.msra.mxu0 0.0
  %950 = vmatprep.subr.mxu0 0.0
  %951 = vmatpush1.msra.mxu0 0.0
  %952 = vmatprep.subr.mxu0 0.0
  %953 = vmatpush1.msra.mxu0 0.0
  %954 = vmatprep.subr.mxu0 0.0
  %955 = vmatpush1.msra.mxu0 0.0
  %956 = vmatprep.subr.mxu0 0.0
  %957 = vmatpush1.msra.mxu0 0.0
  %958 = vmatprep.subr.mxu0 0.0
  %959 = vmatpush1.msra.mxu0 0.0
  %960 = vmatprep.subr.mxu0 0.0
  %961 = vmatpush1.msra.mxu0 0.0
  %962 = vmatprep.subr.mxu0 0.0
  %963 = vmatpush1.msra.mxu0 0.0
  %964 = vmatprep.subr.mxu0 0.0
  %965 = vmatpush1.msra.mxu0 0.0
  %966 = vmatprep.subr.mxu0 0.0
  %967 = vmatpush1.msra.mxu0 0.0
  %968 = vmatprep.mubr.f32.mxu0 0.0
  %969 = vmatmul.mubr.f32.gmra.mrb[0].mxu0 %v899
  %v970 = vpop.f32.mrb[0].mxu0
  %v971 = vadd.f32 0.0, %v970
  %v972 = vpop.f32.mrb[0].mxu0
  %973 = vmatprep.mubr.f32.mxu0 0.0
  %974 = vmatmul.mubr.f32.gmra.mrb[0].mxu0 %v902
  %v975 = vpop.f32.mrb[0].mxu0
  %v976 = vadd.f32 0.0, %v975
  %v977 = vpop.f32.mrb[0].mxu0
  %978 = vdwg.mxu0
  %v980 = vsel %vm211, %v971, 0
  %v983 = vsel %vm211, %v976, 0
  %985 = vmatprep.subr.mxu0 0.0
  %986 = vmatpush1.msra.mxu0 %v203
  %987 = vmatprep.subr.mxu0 0.0
  %988 = vmatpush1.msra.mxu0 0.0
  %989 = vmatprep.subr.mxu0 0.0
  %990 = vmatpush1.msra.mxu0 0.0
  %991 = vmatprep.subr.mxu0 0.0
  %992 = vmatpush1.msra.mxu0 0.0
  %993 = vmatprep.subr.mxu0 0.0
  %994 = vmatpush1.msra.mxu0 0.0
  %995 = vmatprep.subr.mxu0 0.0
  %996 = vmatpush1.msra.mxu0 0.0
  %997 = vmatprep.subr.mxu0 0.0
  %998 = vmatpush1.msra.mxu0 0.0
  %999 = vmatprep.subr.mxu0 0.0
  %1000 = vmatpush1.msra.mxu0 0.0
  %1001 = vmatprep.subr.mxu0 0.0
  %1002 = vmatpush1.msra.mxu0 0.0
  %1003 = vmatprep.subr.mxu0 0.0
  %1004 = vmatpush1.msra.mxu0 0.0
  %1005 = vmatprep.subr.mxu0 0.0
  %1006 = vmatpush1.msra.mxu0 0.0
  %1007 = vmatprep.subr.mxu0 0.0
  %1008 = vmatpush1.msra.mxu0 0.0
  %1009 = vmatprep.subr.mxu0 0.0
  %1010 = vmatpush1.msra.mxu0 0.0
  %1011 = vmatprep.subr.mxu0 0.0
  %1012 = vmatpush1.msra.mxu0 0.0
  %1013 = vmatprep.subr.mxu0 0.0
  %1014 = vmatpush1.msra.mxu0 0.0
  %1015 = vmatprep.subr.mxu0 0.0
  %1016 = vmatpush1.msra.mxu0 0.0
  %1017 = vmatprep.subr.mxu0 0.0
  %1018 = vmatpush1.msra.mxu0 0.0
  %1019 = vmatprep.subr.mxu0 0.0
  %1020 = vmatpush1.msra.mxu0 0.0
  %1021 = vmatprep.subr.mxu0 0.0
  %1022 = vmatpush1.msra.mxu0 0.0
  %1023 = vmatprep.subr.mxu0 0.0
  %1024 = vmatpush1.msra.mxu0 0.0
  %1025 = vmatprep.subr.mxu0 0.0
  %1026 = vmatpush1.msra.mxu0 0.0
  %1027 = vmatprep.subr.mxu0 0.0
  %1028 = vmatpush1.msra.mxu0 0.0
  %1029 = vmatprep.subr.mxu0 0.0
  %1030 = vmatpush1.msra.mxu0 0.0
  %1031 = vmatprep.subr.mxu0 0.0
  %1032 = vmatpush1.msra.mxu0 0.0
  %1033 = vmatprep.subr.mxu0 0.0
  %1034 = vmatpush1.msra.mxu0 0.0
  %1035 = vmatprep.subr.mxu0 0.0
  %1036 = vmatpush1.msra.mxu0 0.0
  %1037 = vmatprep.subr.mxu0 0.0
  %1038 = vmatpush1.msra.mxu0 0.0
  %1039 = vmatprep.subr.mxu0 0.0
  %1040 = vmatpush1.msra.mxu0 0.0
  %1041 = vmatprep.subr.mxu0 0.0
  %1042 = vmatpush1.msra.mxu0 0.0
  %1043 = vmatprep.subr.mxu0 0.0
  %1044 = vmatpush1.msra.mxu0 0.0
  %1045 = vmatprep.subr.mxu0 0.0
  %1046 = vmatpush1.msra.mxu0 0.0
  %1047 = vmatprep.subr.mxu0 0.0
  %1048 = vmatpush1.msra.mxu0 0.0
  %1049 = vmatprep.mubr.f32.mxu0 0.0
  %1050 = vmatmul.mubr.f32.gmra.mrb[0].mxu0 %v980
  %v1051 = vpop.f32.mrb[0].mxu0
  %v1052 = vadd.f32 0.0, %v1051
  %v1053 = vpop.f32.mrb[0].mxu0
  %1054 = vmatprep.mubr.f32.mxu0 0.0
  %1055 = vmatmul.mubr.f32.gmra.mrb[0].mxu0 %v983
  %v1056 = vpop.f32.mrb[0].mxu0
  %v1057 = vadd.f32 0.0, %v1056
  %v1058 = vpop.f32.mrb[0].mxu0
  %1059 = vdwg.mxu0
  %v1060 = vadd.f32 %v767, %v1052
  %v1061 = vadd.f32 %v772, %v1057
  %1062 = vrot.lane.b32.xlu0 %v193, 104
  %v1063 = vpop.permute.xlu0 %1062
  %1064 = vrot.lane.b32.xlu0 %v198, 104
  %v1065 = vpop.permute.xlu0 %1064
  %1066 = vrot.lane.b32.xlu0 %v193, 72
  %v1067 = vpop.permute.xlu0 %1066
  %1068 = vrot.lane.b32.xlu0 %v198, 72
  %v1069 = vpop.permute.xlu0 %1068
  %v1070 = vsel %vm211, %v1063, 0
  %v1072 = vsel %vm211, %v1065, 0
  %v1074 = vsel %vm211, %v1067, 0
  %v1076 = vsel %vm211, %v1069, 0
  %1078 = vmatprep.subr.mxu0 0.0
  %1079 = vmatpush1.xpose.msra.mxu0 %v1074
  %1080 = vmatprep.subr.mxu0 0.0
  %1081 = vmatpush1.xpose.msra.mxu0 %v1076
  %1082 = vmatprep.subr.mxu0 0.0
  %1083 = vmatpush1.xpose.msra.mxu0 0.0
  %1084 = vmatprep.subr.mxu0 0.0
  %1085 = vmatpush1.xpose.msra.mxu0 0.0
  %1086 = vmatprep.subr.mxu0 0.0
  %1087 = vmatpush1.xpose.msra.mxu0 0.0
  %1088 = vmatprep.subr.mxu0 0.0
  %1089 = vmatpush1.xpose.msra.mxu0 0.0
  %1090 = vmatprep.subr.mxu0 0.0
  %1091 = vmatpush1.xpose.msra.mxu0 0.0
  %1092 = vmatprep.subr.mxu0 0.0
  %1093 = vmatpush1.xpose.msra.mxu0 0.0
  %1094 = vmatprep.subr.mxu0 0.0
  %1095 = vmatpush1.xpose.msra.mxu0 0.0
  %1096 = vmatprep.subr.mxu0 0.0
  %1097 = vmatpush1.xpose.msra.mxu0 0.0
  %1098 = vmatprep.subr.mxu0 0.0
  %1099 = vmatpush1.xpose.msra.mxu0 0.0
  %1100 = vmatprep.subr.mxu0 0.0
  %1101 = vmatpush1.xpose.msra.mxu0 0.0
  %1102 = vmatprep.subr.mxu0 0.0
  %1103 = vmatpush1.xpose.msra.mxu0 0.0
  %1104 = vmatprep.subr.mxu0 0.0
  %1105 = vmatpush1.xpose.msra.mxu0 0.0
  %1106 = vmatprep.subr.mxu0 0.0
  %1107 = vmatpush1.xpose.msra.mxu0 0.0
  %1108 = vmatprep.subr.mxu0 0.0
  %1109 = vmatpush1.xpose.msra.mxu0 0.0
  %1110 = vmatprep.subr.mxu0 0.0
  %1111 = vmatpush1.xpose.msra.mxu0 0.0
  %1112 = vmatprep.subr.mxu0 0.0
  %1113 = vmatpush1.xpose.msra.mxu0 0.0
  %1114 = vmatprep.subr.mxu0 0.0
  %1115 = vmatpush1.xpose.msra.mxu0 0.0
  %1116 = vmatprep.subr.mxu0 0.0
  %1117 = vmatpush1.xpose.msra.mxu0 0.0
  %1118 = vmatprep.subr.mxu0 0.0
  %1119 = vmatpush1.xpose.msra.mxu0 0.0
  %1120 = vmatprep.subr.mxu0 0.0
  %1121 = vmatpush1.xpose.msra.mxu0 0.0
  %1122 = vmatprep.subr.mxu0 0.0
  %1123 = vmatpush1.xpose.msra.mxu0 0.0
  %1124 = vmatprep.subr.mxu0 0.0
  %1125 = vmatpush1.xpose.msra.mxu0 0.0
  %1126 = vmatprep.subr.mxu0 0.0
  %1127 = vmatpush1.xpose.msra.mxu0 0.0
  %1128 = vmatprep.subr.mxu0 0.0
  %1129 = vmatpush1.xpose.msra.mxu0 0.0
  %1130 = vmatprep.subr.mxu0 0.0
  %1131 = vmatpush1.xpose.msra.mxu0 0.0
  %1132 = vmatprep.subr.mxu0 0.0
  %1133 = vmatpush1.xpose.msra.mxu0 0.0
  %1134 = vmatprep.subr.mxu0 0.0
  %1135 = vmatpush1.xpose.msra.mxu0 0.0
  %1136 = vmatprep.subr.mxu0 0.0
  %1137 = vmatpush1.xpose.msra.mxu0 0.0
  %1138 = vmatprep.subr.mxu0 0.0
  %1139 = vmatpush1.xpose.msra.mxu0 0.0
  %1140 = vmatprep.subr.mxu0 0.0
  %1141 = vmatpush1.xpose.msra.mxu0 0.0
  %1142 = vmatprep.mubr.f32.mxu0 0.0
  %1143 = vmatmul.mubr.f32.gmra.mrb[0].mxu0 %v1070
  %v1144 = vpop.f32.mrb[0].mxu0
  %v1145 = vadd.f32 0.0, %v1144
  %v1146 = vpop.f32.mrb[0].mxu0
  %1147 = vmatprep.mubr.f32.mxu0 0.0
  %1148 = vmatmul.mubr.f32.gmra.mrb[0].mxu0 %v1072
  %v1149 = vpop.f32.mrb[0].mxu0
  %v1150 = vadd.f32 0.0, %v1149
  %v1151 = vpop.f32.mrb[0].mxu0
  %1152 = vdwg.mxu0
  %v1153 = vmul.f32 %v1145, 0.35355338
  %v1154 = vmul.f32 %v1150, 0.35355338
  %v1155 = vadd.f32 %v1153, %v107
  %v1156 = vadd.f32 %v1154, %v108
  %v1157 = vsel %vm299, %v1155, -inf
  %1158 = vmax.xlane.f32.xlu0 %v1157
  %v1159 = vpop.xlane.xlu0 %1158
  %v1160 = vsel %vm299, %v1156, -inf
  %1161 = vmax.xlane.f32.xlu0 %v1160
  %v1162 = vpop.xlane.xlu0 %1161
  %v1163 = vsub.f32 %v1155, %v1159
  %v1164 = vsub.f32 %v1156, %v1162
  %v1165 = vmul.f32 %v1163, 1.442695
  %v1166 = vpow.pop %v1165
  %v1167 = vmul.f32 %v1164, 1.442695
  %v1168 = vpow.pop %v1167
  %v1169 = vsel %vm299, %v1166, 0.0
  %1170 = vadd.xlane.f32.xlu0 %v1169
  %v1171 = vpop.xlane.xlu0 %1170
  %v1172 = vsel %vm299, %v1168, 0.0
  %1173 = vadd.xlane.f32.xlu0 %v1172
  %v1174 = vpop.xlane.xlu0 %1173
  %v1175 = vrcp.pop %v1171
  %v1176 = vrcp.pop %v1174
  %v1177 = vmul.f32 %v1166, %v1175
  %v1178 = vmul.f32 %v1168, %v1176
  %1179 = vrot.lane.b32.xlu0 %v193, 40
  %v1180 = vpop.permute.xlu0 %1179
  %1181 = vrot.lane.b32.xlu0 %v198, 40
  %v1182 = vpop.permute.xlu0 %1181
  %v1186 = vsel %vm299, %v1177, 0
  %v1189 = vsel %vm299, %v1178, 0
  %1191 = vmatprep.subr.mxu0 0.0
  %1192 = vmatpush1.msra.mxu0 %v1180
  %1193 = vmatprep.subr.mxu0 0.0
  %1194 = vmatpush1.msra.mxu0 %v1182
  %1195 = vmatprep.subr.mxu0 0.0
  %1196 = vmatpush1.msra.mxu0 0.0
  %1197 = vmatprep.subr.mxu0 0.0
  %1198 = vmatpush1.msra.mxu0 0.0
  %1199 = vmatprep.subr.mxu0 0.0
  %1200 = vmatpush1.msra.mxu0 0.0
  %1201 = vmatprep.subr.mxu0 0.0
  %1202 = vmatpush1.msra.mxu0 0.0
  %1203 = vmatprep.subr.mxu0 0.0
  %1204 = vmatpush1.msra.mxu0 0.0
  %1205 = vmatprep.subr.mxu0 0.0
  %1206 = vmatpush1.msra.mxu0 0.0
  %1207 = vmatprep.subr.mxu0 0.0
  %1208 = vmatpush1.msra.mxu0 0.0
  %1209 = vmatprep.subr.mxu0 0.0
  %1210 = vmatpush1.msra.mxu0 0.0
  %1211 = vmatprep.subr.mxu0 0.0
  %1212 = vmatpush1.msra.mxu0 0.0
  %1213 = vmatprep.subr.mxu0 0.0
  %1214 = vmatpush1.msra.mxu0 0.0
  %1215 = vmatprep.subr.mxu0 0.0
  %1216 = vmatpush1.msra.mxu0 0.0
  %1217 = vmatprep.subr.mxu0 0.0
  %1218 = vmatpush1.msra.mxu0 0.0
  %1219 = vmatprep.subr.mxu0 0.0
  %1220 = vmatpush1.msra.mxu0 0.0
  %1221 = vmatprep.subr.mxu0 0.0
  %1222 = vmatpush1.msra.mxu0 0.0
  %1223 = vmatprep.subr.mxu0 0.0
  %1224 = vmatpush1.msra.mxu0 0.0
  %1225 = vmatprep.subr.mxu0 0.0
  %1226 = vmatpush1.msra.mxu0 0.0
  %1227 = vmatprep.subr.mxu0 0.0
  %1228 = vmatpush1.msra.mxu0 0.0
  %1229 = vmatprep.subr.mxu0 0.0
  %1230 = vmatpush1.msra.mxu0 0.0
  %1231 = vmatprep.subr.mxu0 0.0
  %1232 = vmatpush1.msra.mxu0 0.0
  %1233 = vmatprep.subr.mxu0 0.0
  %1234 = vmatpush1.msra.mxu0 0.0
  %1235 = vmatprep.subr.mxu0 0.0
  %1236 = vmatpush1.msra.mxu0 0.0
  %1237 = vmatprep.subr.mxu0 0.0
  %1238 = vmatpush1.msra.mxu0 0.0
  %1239 = vmatprep.subr.mxu0 0.0
  %1240 = vmatpush1.msra.mxu0 0.0
  %1241 = vmatprep.subr.mxu0 0.0
  %1242 = vmatpush1.msra.mxu0 0.0
  %1243 = vmatprep.subr.mxu0 0.0
  %1244 = vmatpush1.msra.mxu0 0.0
  %1245 = vmatprep.subr.mxu0 0.0
  %1246 = vmatpush1.msra.mxu0 0.0
  %1247 = vmatprep.subr.mxu0 0.0
  %1248 = vmatpush1.msra.mxu0 0.0
  %1249 = vmatprep.subr.mxu0 0.0
  %1250 = vmatpush1.msra.mxu0 0.0
  %1251 = vmatprep.subr.mxu0 0.0
  %1252 = vmatpush1.msra.mxu0 0.0
  %1253 = vmatprep.subr.mxu0 0.0
  %1254 = vmatpush1.msra.mxu0 0.0
  %1255 = vmatprep.mubr.f32.mxu0 0.0
  %1256 = vmatmul.mubr.f32.gmra.mrb[0].mxu0 %v1186
  %v1257 = vpop.f32.mrb[0].mxu0
  %v1258 = vadd.f32 0.0, %v1257
  %v1259 = vpop.f32.mrb[0].mxu0
  %1260 = vmatprep.mubr.f32.mxu0 0.0
  %1261 = vmatmul.mubr.f32.gmra.mrb[0].mxu0 %v1189
  %v1262 = vpop.f32.mrb[0].mxu0
  %v1263 = vadd.f32 0.0, %v1262
  %v1264 = vpop.f32.mrb[0].mxu0
  %1265 = vdwg.mxu0
  %v1267 = vsel %vm211, %v1258, 0
  %v1270 = vsel %vm211, %v1263, 0
  %1272 = vmatprep.subr.mxu0 0.0
  %1273 = vmatpush1.msra.mxu0 %v204
  %1274 = vmatprep.subr.mxu0 0.0
  %1275 = vmatpush1.msra.mxu0 0.0
  %1276 = vmatprep.subr.mxu0 0.0
  %1277 = vmatpush1.msra.mxu0 0.0
  %1278 = vmatprep.subr.mxu0 0.0
  %1279 = vmatpush1.msra.mxu0 0.0
  %1280 = vmatprep.subr.mxu0 0.0
  %1281 = vmatpush1.msra.mxu0 0.0
  %1282 = vmatprep.subr.mxu0 0.0
  %1283 = vmatpush1.msra.mxu0 0.0
  %1284 = vmatprep.subr.mxu0 0.0
  %1285 = vmatpush1.msra.mxu0 0.0
  %1286 = vmatprep.subr.mxu0 0.0
  %1287 = vmatpush1.msra.mxu0 0.0
  %1288 = vmatprep.subr.mxu0 0.0
  %1289 = vmatpush1.msra.mxu0 0.0
  %1290 = vmatprep.subr.mxu0 0.0
  %1291 = vmatpush1.msra.mxu0 0.0
  %1292 = vmatprep.subr.mxu0 0.0
  %1293 = vmatpush1.msra.mxu0 0.0
  %1294 = vmatprep.subr.mxu0 0.0
  %1295 = vmatpush1.msra.mxu0 0.0
  %1296 = vmatprep.subr.mxu0 0.0
  %1297 = vmatpush1.msra.mxu0 0.0
  %1298 = vmatprep.subr.mxu0 0.0
  %1299 = vmatpush1.msra.mxu0 0.0
  %1300 = vmatprep.subr.mxu0 0.0
  %1301 = vmatpush1.msra.mxu0 0.0
  %1302 = vmatprep.subr.mxu0 0.0
  %1303 = vmatpush1.msra.mxu0 0.0
  %1304 = vmatprep.subr.mxu0 0.0
  %1305 = vmatpush1.msra.mxu0 0.0
  %1306 = vmatprep.subr.mxu0 0.0
  %1307 = vmatpush1.msra.mxu0 0.0
  %1308 = vmatprep.subr.mxu0 0.0
  %1309 = vmatpush1.msra.mxu0 0.0
  %1310 = vmatprep.subr.mxu0 0.0
  %1311 = vmatpush1.msra.mxu0 0.0
  %1312 = vmatprep.subr.mxu0 0.0
  %1313 = vmatpush1.msra.mxu0 0.0
  %1314 = vmatprep.subr.mxu0 0.0
  %1315 = vmatpush1.msra.mxu0 0.0
  %1316 = vmatprep.subr.mxu0 0.0
  %1317 = vmatpush1.msra.mxu0 0.0
  %1318 = vmatprep.subr.mxu0 0.0
  %1319 = vmatpush1.msra.mxu0 0.0
  %1320 = vmatprep.subr.mxu0 0.0
  %1321 = vmatpush1.msra.mxu0 0.0
  %1322 = vmatprep.subr.mxu0 0.0
  %1323 = vmatpush1.msra.mxu0 0.0
  %1324 = vmatprep.subr.mxu0 0.0
  %1325 = vmatpush1.msra.mxu0 0.0
  %1326 = vmatprep.subr.mxu0 0.0
  %1327 = vmatpush1.msra.mxu0 0.0
  %1328 = vmatprep.subr.mxu0 0.0
  %1329 = vmatpush1.msra.mxu0 0.0
  %1330 = vmatprep.subr.mxu0 0.0
  %1331 = vmatpush1.msra.mxu0 0.0
  %1332 = vmatprep.subr.mxu0 0.0
  %1333 = vmatpush1.msra.mxu0 0.0
  %1334 = vmatprep.subr.mxu0 0.0
  %1335 = vmatpush1.msra.mxu0 0.0
  %1336 = vmatprep.mubr.f32.mxu0 0.0
  %1337 = vmatmul.mubr.f32.gmra.mrb[0].mxu0 %v1267
  %v1338 = vpop.f32.mrb[0].mxu0
  %v1339 = vadd.f32 0.0, %v1338
  %v1340 = vpop.f32.mrb[0].mxu0
  %1341 = vmatprep.mubr.f32.mxu0 0.0
  %1342 = vmatmul.mubr.f32.gmra.mrb[0].mxu0 %v1270
  %v1343 = vpop.f32.mrb[0].mxu0
  %v1344 = vadd.f32 0.0, %v1343
  %v1345 = vpop.f32.mrb[0].mxu0
  %1346 = vdwg.mxu0
  %v1347 = vadd.f32 %v1060, %v1339
  %v1348 = vadd.f32 %v1061, %v1344
  %v1349 = vld [vmem:[%s7] sm:$0x1]
  %v1351 = vlaneseq
  %v1352 = vshrl.u32 %v1351, 7
  %v1353 = vsub.s32 0, %v1352
  %v1354 = vrot.slane %v1349, %v1353
  %v1356 = vadd.f32 %v1347, %v1354
  %v1357 = vadd.f32 %v1348, %v1354
  %v1358 = vadd.f32 %v105, %v1356
  %v1359 = vadd.f32 %v106, %v1357
  %v1360 = vld [vmem:[%s8] sm:$0x1]
  %v1361 = vld [vmem:[%s9] sm:$0x1]
  %v1362 = vsel %vm63, %v1358, 0.0
  %1363 = vadd.xlane.f32.xlu0 %v1362
  %v1364 = vpop.xlane.xlu0 %1363
  %v1365 = vsel %vm63, %v1359, 0.0
  %1366 = vadd.xlane.f32.xlu0 %v1365
  %v1367 = vpop.xlane.xlu0 %1366
  %v1368 = vmul.f32 %v1364, %v70
  %v1369 = vmul.f32 %v1367, %v70
  %v1370 = vsub.f32 %v1358, %v1368
  %v1371 = vsub.f32 %v1359, %v1369
  %v1372 = vmul.f32 %v1370, %v1370
  %v1373 = vmul.f32 %v1371, %v1371
  %v1374 = vsel %vm63, %v1372, 0.0
  %1375 = vadd.xlane.f32.xlu0 %v1374
  %v1376 = vpop.xlane.xlu0 %1375
  %v1377 = vsel %vm63, %v1373, 0.0
  %1378 = vadd.xlane.f32.xlu0 %v1377
  %v1379 = vpop.xlane.xlu0 %1378
  %v1380 = vmul.f32 %v1376, %v70
  %v1381 = vmul.f32 %v1379, %v70
  %v1382 = vadd.f32 %v1380, 1e-12
  %v1383 = vadd.f32 %v1381, 1e-12
  %v1384 = vrsqrt.pop %v1382
  %v1385 = vrsqrt.pop %v1383
  %v1386 = vmul.f32 %v1370, %v1384
  %v1387 = vmul.f32 %v1371, %v1385
  %v1389 = vlaneseq
  %v1390 = vshrl.u32 %v1389, 7
  %v1391 = vsub.s32 0, %v1390
  %v1392 = vrot.slane %v1360, %v1391
  %v1394 = vmul.f32 %v1386, %v1392
  %v1395 = vmul.f32 %v1387, %v1392
  %v1397 = vlaneseq
  %v1398 = vshrl.u32 %v1397, 7
  %v1399 = vsub.s32 0, %v1398
  %v1400 = vrot.slane %v1361, %v1399
  %v1402 = vadd.f32 %v1394, %v1400
  %v1403 = vadd.f32 %v1395, %v1400
  %v1404 = vld [vmem:[%s10] sm:$0xff]
  %v1405 = vld [vmem:[%s10 + $0x8] sm:$0xff]
  %v1406 = vld [vmem:[%s10 + $0x10] sm:$0xff]
  %v1407 = vld [vmem:[%s10 + $0x18] sm:$0xff]
  %v1408 = vld [vmem:[%s11] sm:$0x1]
  %v1410 = vlaneseq
  %v1411 = vshrl.u32 %v1410, 7
  %v1412 = vsub.s32 0, %v1411
  %v1413 = vrot.slane %v1408, %v1412
  %v1416 = vsel %vm63, %v1402, 0
  %v1419 = vsel %vm63, %v1403, 0
  %1421 = vmatprep.subr.mxu0 0.0
  %1422 = vmatpush1.msra.mxu0 %v1404
  %1423 = vmatprep.subr.mxu0 0.0
  %1424 = vmatpush1.msra.mxu0 %v1405
  %1425 = vmatprep.subr.mxu0 0.0
  %1426 = vmatpush1.msra.mxu0 %v1406
  %1427 = vmatprep.subr.mxu0 0.0
  %1428 = vmatpush1.msra.mxu0 %v1407
  %1429 = vmatprep.subr.mxu0 0.0
  %1430 = vmatpush1.msra.mxu0 0.0
  %1431 = vmatprep.subr.mxu0 0.0
  %1432 = vmatpush1.msra.mxu0 0.0
  %1433 = vmatprep.subr.mxu0 0.0
  %1434 = vmatpush1.msra.mxu0 0.0
  %1435 = vmatprep.subr.mxu0 0.0
  %1436 = vmatpush1.msra.mxu0 0.0
  %1437 = vmatprep.subr.mxu0 0.0
  %1438 = vmatpush1.msra.mxu0 0.0
  %1439 = vmatprep.subr.mxu0 0.0
  %1440 = vmatpush1.msra.mxu0 0.0
  %1441 = vmatprep.subr.mxu0 0.0
  %1442 = vmatpush1.msra.mxu0 0.0
  %1443 = vmatprep.subr.mxu0 0.0
  %1444 = vmatpush1.msra.mxu0 0.0
  %1445 = vmatprep.subr.mxu0 0.0
  %1446 = vmatpush1.msra.mxu0 0.0
  %1447 = vmatprep.subr.mxu0 0.0
  %1448 = vmatpush1.msra.mxu0 0.0
  %1449 = vmatprep.subr.mxu0 0.0
  %1450 = vmatpush1.msra.mxu0 0.0
  %1451 = vmatprep.subr.mxu0 0.0
  %1452 = vmatpush1.msra.mxu0 0.0
  %1453 = vmatprep.subr.mxu0 0.0
  %1454 = vmatpush1.msra.mxu0 0.0
  %1455 = vmatprep.subr.mxu0 0.0
  %1456 = vmatpush1.msra.mxu0 0.0
  %1457 = vmatprep.subr.mxu0 0.0
  %1458 = vmatpush1.msra.mxu0 0.0
  %1459 = vmatprep.subr.mxu0 0.0
  %1460 = vmatpush1.msra.mxu0 0.0
  %1461 = vmatprep.subr.mxu0 0.0
  %1462 = vmatpush1.msra.mxu0 0.0
  %1463 = vmatprep.subr.mxu0 0.0
  %1464 = vmatpush1.msra.mxu0 0.0
  %1465 = vmatprep.subr.mxu0 0.0
  %1466 = vmatpush1.msra.mxu0 0.0
  %1467 = vmatprep.subr.mxu0 0.0
  %1468 = vmatpush1.msra.mxu0 0.0
  %1469 = vmatprep.subr.mxu0 0.0
  %1470 = vmatpush1.msra.mxu0 0.0
  %1471 = vmatprep.subr.mxu0 0.0
  %1472 = vmatpush1.msra.mxu0 0.0
  %1473 = vmatprep.subr.mxu0 0.0
  %1474 = vmatpush1.msra.mxu0 0.0
  %1475 = vmatprep.subr.mxu0 0.0
  %1476 = vmatpush1.msra.mxu0 0.0
  %1477 = vmatprep.subr.mxu0 0.0
  %1478 = vmatpush1.msra.mxu0 0.0
  %1479 = vmatprep.subr.mxu0 0.0
  %1480 = vmatpush1.msra.mxu0 0.0
  %1481 = vmatprep.subr.mxu0 0.0
  %1482 = vmatpush1.msra.mxu0 0.0
  %1483 = vmatprep.subr.mxu0 0.0
  %1484 = vmatpush1.msra.mxu0 0.0
  %1485 = vmatprep.mubr.f32.mxu0 0.0
  %1486 = vmatmul.mubr.f32.gmra.mrb[0].mxu0 %v1416
  %v1487 = vpop.f32.mrb[0].mxu0
  %v1488 = vadd.f32 %v1413, %v1487
  %v1489 = vpop.f32.mrb[0].mxu0
  %1490 = vmatprep.mubr.f32.mxu0 0.0
  %1491 = vmatmul.mubr.f32.gmra.mrb[0].mxu0 %v1419
  %v1492 = vpop.f32.mrb[0].mxu0
  %v1493 = vadd.f32 %v1413, %v1492
  %v1494 = vpop.f32.mrb[0].mxu0
  %1495 = vdwg.mxu0
  %v1496 = vmul.f32 %v1488, 0.5
  %v1497 = vmul.f32 %v1493, 0.5
  %v1498 = vmul.f32 %v1488, 0.044715
  %v1499 = vmul.f32 %v1493, 0.044715
  %v1500 = vmul.f32 %v1498, %v1488
  %v1501 = vmul.f32 %v1499, %v1493
  %v1502 = vmul.f32 %v1500, %v1488
  %v1503 = vmul.f32 %v1501, %v1493
  %v1504 = vadd.f32 %v1488, %v1502
  %v1505 = vadd.f32 %v1493, %v1503
  %v1506 = vmul.f32 %v1504, 0.7978846
  %v1507 = vmul.f32 %v1505, 0.7978846
  %v1508 = vtanh.pop %v1506
  %v1509 = vtanh.pop %v1507
  %v1510 = vadd.f32 %v1508, 1.0
  %v1511 = vadd.f32 %v1509, 1.0
  %v1512 = vmul.f32 %v1496, %v1510
  %v1513 = vmul.f32 %v1497, %v1511
  %v1514 = vld [vmem:[%s12] sm:$0xff]
  %v1515 = vld [vmem:[%s12 + $0x8] sm:$0xff]
  %v1516 = vld [vmem:[%s12 + $0x10] sm:$0xff]
  %v1517 = vld [vmem:[%s12 + $0x18] sm:$0xff]
  %v1518 = vld [vmem:[%s12 + $0x20] sm:$0xff]
  %v1519 = vld [vmem:[%s12 + $0x28] sm:$0xff]
  %v1520 = vld [vmem:[%s12 + $0x30] sm:$0xff]
  %v1521 = vld [vmem:[%s12 + $0x38] sm:$0xff]
  %v1522 = vld [vmem:[%s13] sm:$0x1]
  %v1524 = vlaneseq
  %v1525 = vshrl.u32 %v1524, 7
  %v1526 = vsub.s32 0, %v1525
  %v1527 = vrot.slane %v1522, %v1526
  %vm1529 = vcmask 523264
  %v1531 = vsel %vm1529, %v1512, 0
  %v1534 = vsel %vm1529, %v1513, 0
  %1536 = vmatprep.subr.mxu0 0.0
  %1537 = vmatpush1.msra.mxu0 %v1514
  %1538 = vmatprep.subr.mxu0 0.0
  %1539 = vmatpush1.msra.mxu0 %v1515
  %1540 = vmatprep.subr.mxu0 0.0
  %1541 = vmatpush1.msra.mxu0 %v1516
  %1542 = vmatprep.subr.mxu0 0.0
  %1543 = vmatpush1.msra.mxu0 %v1517
  %1544 = vmatprep.subr.mxu0 0.0
  %1545 = vmatpush1.msra.mxu0 %v1518
  %1546 = vmatprep.subr.mxu0 0.0
  %1547 = vmatpush1.msra.mxu0 %v1519
  %1548 = vmatprep.subr.mxu0 0.0
  %1549 = vmatpush1.msra.mxu0 %v1520
  %1550 = vmatprep.subr.mxu0 0.0
  %1551 = vmatpush1.msra.mxu0 %v1521
  %1552 = vmatprep.subr.mxu0 0.0
  %1553 = vmatpush1.msra.mxu0 0.0
  %1554 = vmatprep.subr.mxu0 0.0
  %1555 = vmatpush1.msra.mxu0 0.0
  %1556 = vmatprep.subr.mxu0 0.0
  %1557 = vmatpush1.msra.mxu0 0.0
  %1558 = vmatprep.subr.mxu0 0.0
  %1559 = vmatpush1.msra.mxu0 0.0
  %1560 = vmatprep.subr.mxu0 0.0
  %1561 = vmatpush1.msra.mxu0 0.0
  %1562 = vmatprep.subr.mxu0 0.0
  %1563 = vmatpush1.msra.mxu0 0.0
  %1564 = vmatprep.subr.mxu0 0.0
  %1565 = vmatpush1.msra.mxu0 0.0
  %1566 = vmatprep.subr.mxu0 0.0
  %1567 = vmatpush1.msra.mxu0 0.0
  %1568 = vmatprep.subr.mxu0 0.0
  %1569 = vmatpush1.msra.mxu0 0.0
  %1570 = vmatprep.subr.mxu0 0.0
  %1571 = vmatpush1.msra.mxu0 0.0
  %1572 = vmatprep.subr.mxu0 0.0
  %1573 = vmatpush1.msra.mxu0 0.0
  %1574 = vmatprep.subr.mxu0 0.0
  %1575 = vmatpush1.msra.mxu0 0.0
  %1576 = vmatprep.subr.mxu0 0.0
  %1577 = vmatpush1.msra.mxu0 0.0
  %1578 = vmatprep.subr.mxu0 0.0
  %1579 = vmatpush1.msra.mxu0 0.0
  %1580 = vmatprep.subr.mxu0 0.0
  %1581 = vmatpush1.msra.mxu0 0.0
  %1582 = vmatprep.subr.mxu0 0.0
  %1583 = vmatpush1.msra.mxu0 0.0
  %1584 = vmatprep.subr.mxu0 0.0
  %1585 = vmatpush1.msra.mxu0 0.0
  %1586 = vmatprep.subr.mxu0 0.0
  %1587 = vmatpush1.msra.mxu0 0.0
  %1588 = vmatprep.subr.mxu0 0.0
  %1589 = vmatpush1.msra.mxu0 0.0
  %1590 = vmatprep.subr.mxu0 0.0
  %1591 = vmatpush1.msra.mxu0 0.0
  %1592 = vmatprep.subr.mxu0 0.0
  %1593 = vmatpush1.msra.mxu0 0.0
  %1594 = vmatprep.subr.mxu0 0.0
  %1595 = vmatpush1.msra.mxu0 0.0
  %1596 = vmatprep.subr.mxu0 0.0
  %1597 = vmatpush1.msra.mxu0 0.0
  %1598 = vmatprep.subr.mxu0 0.0
  %1599 = vmatpush1.msra.mxu0 0.0
  %1600 = vmatprep.mubr.f32.mxu0 0.0
  %1601 = vmatmul.mubr.f32.gmra.mrb[0].mxu0 %v1531
  %v1602 = vpop.f32.mrb[0].mxu0
  %v1603 = vadd.f32 %v1527, %v1602
  %v1604 = vpop.f32.mrb[0].mxu0
  %1605 = vmatprep.mubr.f32.mxu0 0.0
  %1606 = vmatmul.mubr.f32.gmra.mrb[0].mxu0 %v1534
  %v1607 = vpop.f32.mrb[0].mxu0
  %v1608 = vadd.f32 %v1527, %v1607
  %v1609 = vpop.f32.mrb[0].mxu0
  %1610 = vdwg.mxu0
  %v1611 = vadd.f32 %v1402, %v1603
  %v1612 = vadd.f32 %v1403, %v1608
  %v1613 = vld [vmem:[%s14] sm:$0x1]
  %v1614 = vld [vmem:[%s15] sm:$0x1]
  %v1615 = vsel %vm63, %v1611, 0.0
  %1616 = vadd.xlane.f32.xlu0 %v1615
  %v1617 = vpop.xlane.xlu0 %1616
  %v1618 = vsel %vm63, %v1612, 0.0
  %1619 = vadd.xlane.f32.xlu0 %v1618
  %v1620 = vpop.xlane.xlu0 %1619
  %v1621 = vmul.f32 %v1617, %v70
  %v1622 = vmul.f32 %v1620, %v70
  %v1623 = vsub.f32 %v1611, %v1621
  %v1624 = vsub.f32 %v1612, %v1622
  %v1625 = vmul.f32 %v1623, %v1623
  %v1626 = vmul.f32 %v1624, %v1624
  %v1627 = vsel %vm63, %v1625, 0.0
  %1628 = vadd.xlane.f32.xlu0 %v1627
  %v1629 = vpop.xlane.xlu0 %1628
  %v1630 = vsel %vm63, %v1626, 0.0
  %1631 = vadd.xlane.f32.xlu0 %v1630
  %v1632 = vpop.xlane.xlu0 %1631
  %v1633 = vmul.f32 %v1629, %v70
  %v1634 = vmul.f32 %v1632, %v70
  %v1635 = vadd.f32 %v1633, 1e-12
  %v1636 = vadd.f32 %v1634, 1e-12
  %v1637 = vrsqrt.pop %v1635
  %v1638 = vrsqrt.pop %v1636
  %v1639 = vmul.f32 %v1623, %v1637
  %v1640 = vmul.f32 %v1624, %v1638
  %v1642 = vlaneseq
  %v1643 = vshrl.u32 %v1642, 7
  %v1644 = vsub.s32 0, %v1643
  %v1645 = vrot.slane %v1613, %v1644
  %v1647 = vmul.f32 %v1639, %v1645
  %v1648 = vmul.f32 %v1640, %v1645
  %v1650 = vlaneseq
  %v1651 = vshrl.u32 %v1650, 7
  %v1652 = vsub.s32 0, %v1651
  %v1653 = vrot.slane %v1614, %v1652
  %v1655 = vadd.f32 %v1647, %v1653
  %v1656 = vadd.f32 %v1648, %v1653
  %s1657 = scalar_lea.vmem %s4, 32
  %v1658 = vld [vmem:[%s1657] sm:$0xff]
  %v1659 = vld [vmem:[%s1657 + $0x8] sm:$0xff]
  %v1660 = vld [vmem:[%s1657 + $0x10] sm:$0xff]
  %v1661 = vld [vmem:[%s1657 + $0x18] sm:$0xff]
  %s1662 = scalar_lea.vmem %s5, 1
  %v1663 = vld [vmem:[%s1662] sm:$0x1]
  %v1665 = vlaneseq
  %v1666 = vshrl.u32 %v1665, 7
  %v1667 = vsub.s32 0, %v1666
  %v1668 = vrot.slane %v1663, %v1667
  %v1671 = vsel %vm63, %v1655, 0
  %v1674 = vsel %vm63, %v1656, 0
  %1676 = vmatprep.subr.mxu0 0.0
  %1677 = vmatpush1.msra.mxu0 %v1658
  %1678 = vmatprep.subr.mxu0 0.0
  %1679 = vmatpush1.msra.mxu0 %v1659
  %1680 = vmatprep.subr.mxu0 0.0
  %1681 = vmatpush1.msra.mxu0 %v1660
  %1682 = vmatprep.subr.mxu0 0.0
  %1683 = vmatpush1.msra.mxu0 %v1661
  %1684 = vmatprep.subr.mxu0 0.0
  %1685 = vmatpush1.msra.mxu0 0.0
  %1686 = vmatprep.subr.mxu0 0.0
  %1687 = vmatpush1.msra.mxu0 0.0
  %1688 = vmatprep.subr.mxu0 0.0
  %1689 = vmatpush1.msra.mxu0 0.0
  %1690 = vmatprep.subr.mxu0 0.0
  %1691 = vmatpush1.msra.mxu0 0.0
  %1692 = vmatprep.subr.mxu0 0.0
  %1693 = vmatpush1.msra.mxu0 0.0
  %1694 = vmatprep.subr.mxu0 0.0
  %1695 = vmatpush1.msra.mxu0 0.0
  %1696 = vmatprep.subr.mxu0 0.0
  %1697 = vmatpush1.msra.mxu0 0.0
  %1698 = vmatprep.subr.mxu0 0.0
  %1699 = vmatpush1.msra.mxu0 0.0
  %1700 = vmatprep.subr.mxu0 0.0
  %1701 = vmatpush1.msra.mxu0 0.0
  %1702 = vmatprep.subr.mxu0 0.0
  %1703 = vmatpush1.msra.mxu0 0.0
  %1704 = vmatprep.subr.mxu0 0.0
  %1705 = vmatpush1.msra.mxu0 0.0
  %1706 = vmatprep.subr.mxu0 0.0
  %1707 = vmatpush1.msra.mxu0 0.0
  %1708 = vmatprep.subr.mxu0 0.0
  %1709 = vmatpush1.msra.mxu0 0.0
  %1710 = vmatprep.subr.mxu0 0.0
  %1711 = vmatpush1.msra.mxu0 0.0
  %1712 = vmatprep.subr.mxu0 0.0
  %1713 = vmatpush1.msra.mxu0 0.0
  %1714 = vmatprep.subr.mxu0 0.0
  %1715 = vmatpush1.msra.mxu0 0.0
  %1716 = vmatprep.subr.mxu0 0.0
  %1717 = vmatpush1.msra.mxu0 0.0
  %1718 = vmatprep.subr.mxu0 0.0
  %1719 = vmatpush1.msra.mxu0 0.0
  %1720 = vmatprep.subr.mxu0 0.0
  %1721 = vmatpush1.msra.mxu0 0.0
  %1722 = vmatprep.subr.mxu0 0.0
  %1723 = vmatpush1.msra.mxu0 0.0
  %1724 = vmatprep.subr.mxu0 0.0
  %1725 = vmatpush1.msra.mxu0 0.0
  %1726 = vmatprep.subr.mxu0 0.0
  %1727 = vmatpush1.msra.mxu0 0.0
  %1728 = vmatprep.subr.mxu0 0.0
  %1729 = vmatpush1.msra.mxu0 0.0
  %1730 = vmatprep.subr.mxu0 0.0
  %1731 = vmatpush1.msra.mxu0 0.0
  %1732 = vmatprep.subr.mxu0 0.0
  %1733 = vmatpush1.msra.mxu0 0.0
  %1734 = vmatprep.subr.mxu0 0.0
  %1735 = vmatpush1.msra.mxu0 0.0
  %1736 = vmatprep.subr.mxu0 0.0
  %1737 = vmatpush1.msra.mxu0 0.0
  %1738 = vmatprep.subr.mxu0 0.0
  %1739 = vmatpush1.msra.mxu0 0.0
  %1740 = vmatprep.mubr.f32.mxu0 0.0
  %1741 = vmatmul.mubr.f32.gmra.mrb[0].mxu0 %v1671
  %v1742 = vpop.f32.mrb[0].mxu0
  %v1743 = vadd.f32 %v1668, %v1742
  %v1744 = vpop.f32.mrb[0].mxu0
  %1745 = vmatprep.mubr.f32.mxu0 0.0
  %1746 = vmatmul.mubr.f32.gmra.mrb[0].mxu0 %v1674
  %v1747 = vpop.f32.mrb[0].mxu0
  %v1748 = vadd.f32 %v1668, %v1747
  %v1749 = vpop.f32.mrb[0].mxu0
  %1750 = vdwg.mxu0
  %s1751 = scalar_lea.vmem %s6, 32
  %v1752 = vld [vmem:[%s1751] sm:$0xff]
  %v1753 = vld [vmem:[%s1751 + $0x8] sm:$0xff]
  %v1754 = vld [vmem:[%s1751 + $0x10] sm:$0xff]
  %v1755 = vld [vmem:[%s1751 + $0x18] sm:$0xff]
  %1758 = vrot.lane.b32.xlu0 %v1743, 96
  %v1759 = vpop.permute.xlu0 %1758
  %1760 = vrot.lane.b32.xlu0 %v1748, 96
  %v1761 = vpop.permute.xlu0 %1760
  %v1762 = vsel %vm211, %v1743, 0
  %v1764 = vsel %vm211, %v1748, 0
  %v1766 = vsel %vm211, %v1759, 0
  %v1768 = vsel %vm211, %v1761, 0
  %1770 = vmatprep.subr.mxu0 0.0
  %1771 = vmatpush1.xpose.msra.mxu0 %v1766
  %1772 = vmatprep.subr.mxu0 0.0
  %1773 = vmatpush1.xpose.msra.mxu0 %v1768
  %1774 = vmatprep.subr.mxu0 0.0
  %1775 = vmatpush1.xpose.msra.mxu0 0.0
  %1776 = vmatprep.subr.mxu0 0.0
  %1777 = vmatpush1.xpose.msra.mxu0 0.0
  %1778 = vmatprep.subr.mxu0 0.0
  %1779 = vmatpush1.xpose.msra.mxu0 0.0
  %1780 = vmatprep.subr.mxu0 0.0
  %1781 = vmatpush1.xpose.msra.mxu0 0.0
  %1782 = vmatprep.subr.mxu0 0.0
  %1783 = vmatpush1.xpose.msra.mxu0 0.0
  %1784 = vmatprep.subr.mxu0 0.0
  %1785 = vmatpush1.xpose.msra.mxu0 0.0
  %1786 = vmatprep.subr.mxu0 0.0
  %1787 = vmatpush1.xpose.msra.mxu0 0.0
  %1788 = vmatprep.subr.mxu0 0.0
  %1789 = vmatpush1.xpose.msra.mxu0 0.0
  %1790 = vmatprep.subr.mxu0 0.0
  %1791 = vmatpush1.xpose.msra.mxu0 0.0
  %1792 = vmatprep.subr.mxu0 0.0
  %1793 = vmatpush1.xpose.msra.mxu0 0.0
  %1794 = vmatprep.subr.mxu0 0.0
  %1795 = vmatpush1.xpose.msra.mxu0 0.0
  %1796 = vmatprep.subr.mxu0 0.0
  %1797 = vmatpush1.xpose.msra.mxu0 0.0
  %1798 = vmatprep.subr.mxu0 0.0
  %1799 = vmatpush1.xpose.msra.mxu0 0.0
  %1800 = vmatprep.subr.mxu0 0.0
  %1801 = vmatpush1.xpose.msra.mxu0 0.0
  %1802 = vmatprep.subr.mxu0 0.0
  %1803 = vmatpush1.xpose.msra.mxu0 0.0
  %1804 = vmatprep.subr.mxu0 0.0
  %1805 = vmatpush1.xpose.msra.mxu0 0.0
  %1806 = vmatprep.subr.mxu0 0.0
  %1807 = vmatpush1.xpose.msra.mxu0 0.0
  %1808 = vmatprep.subr.mxu0 0.0
  %1809 = vmatpush1.xpose.msra.mxu0 0.0
  %1810 = vmatprep.subr.mxu0 0.0
  %1811 = vmatpush1.xpose.msra.mxu0 0.0
  %1812 = vmatprep.subr.mxu0 0.0
  %1813 = vmatpush1.xpose.msra.mxu0 0.0
  %1814 = vmatprep.subr.mxu0 0.0
  %1815 = vmatpush1.xpose.msra.mxu0 0.0
  %1816 = vmatprep.subr.mxu0 0.0
  %1817 = vmatpush1.xpose.msra.mxu0 0.0
  %1818 = vmatprep.subr.mxu0 0.0
  %1819 = vmatpush1.xpose.msra.mxu0 0.0
  %1820 = vmatprep.subr.mxu0 0.0
  %1821 = vmatpush1.xpose.msra.mxu0 0.0
  %1822 = vmatprep.subr.mxu0 0.0
  %1823 = vmatpush1.xpose.msra.mxu0 0.0
  %1824 = vmatprep.subr.mxu0 0.0
  %1825 = vmatpush1.xpose.msra.mxu0 0.0
  %1826 = vmatprep.subr.mxu0 0.0
  %1827 = vmatpush1.xpose.msra.mxu0 0.0
  %1828 = vmatprep.subr.mxu0 0.0
  %1829 = vmatpush1.xpose.msra.mxu0 0.0
  %1830 = vmatprep.subr.mxu0 0.0
  %1831 = vmatpush1.xpose.msra.mxu0 0.0
  %1832 = vmatprep.subr.mxu0 0.0
  %1833 = vmatpush1.xpose.msra.mxu0 0.0
  %1834 = vmatprep.mubr.f32.mxu0 0.0
  %1835 = vmatmul.mubr.f32.gmra.mrb[0].mxu0 %v1762
  %v1836 = vpop.f32.mrb[0].mxu0
  %v1837 = vadd.f32 0.0, %v1836
  %v1838 = vpop.f32.mrb[0].mxu0
  %1839 = vmatprep.mubr.f32.mxu0 0.0
  %1840 = vmatmul.mubr.f32.gmra.mrb[0].mxu0 %v1764
  %v1841 = vpop.f32.mrb[0].mxu0
  %v1842 = vadd.f32 0.0, %v1841
  %v1843 = vpop.f32.mrb[0].mxu0
  %1844 = vdwg.mxu0
  %v1845 = vmul.f32 %v1837, 0.35355338
  %v1846 = vmul.f32 %v1842, 0.35355338
  %v1847 = vadd.f32 %v1845, %v107
  %v1848 = vadd.f32 %v1846, %v108
  %v1849 = vsel %vm299, %v1847, -inf
  %1850 = vmax.xlane.f32.xlu0 %v1849
  %v1851 = vpop.xlane.xlu0 %1850
  %v1852 = vsel %vm299, %v1848, -inf
  %1853 = vmax.xlane.f32.xlu0 %v1852
  %v1854 = vpop.xlane.xlu0 %1853
  %v1855 = vsub.f32 %v1847, %v1851
  %v1856 = vsub.f32 %v1848, %v1854
  %v1857 = vmul.f32 %v1855, 1.442695
  %v1858 = vpow.pop %v1857
  %v1859 = vmul.f32 %v1856, 1.442695
  %v1860 = vpow.pop %v1859
  %v1861 = vsel %vm299, %v1858, 0.0
  %1862 = vadd.xlane.f32.xlu0 %v1861
  %v1863 = vpop.xlane.xlu0 %1862
  %v1864 = vsel %vm299, %v1860, 0.0
  %1865 = vadd.xlane.f32.xlu0 %v1864
  %v1866 = vpop.xlane.xlu0 %1865
  %v1867 = vrcp.pop %v1863
  %v1868 = vrcp.pop %v1866
  %v1869 = vmul.f32 %v1858, %v1867
  %v1870 = vmul.f32 %v1860, %v1868
  %1871 = vrot.lane.b32.xlu0 %v1743, 64
  %v1872 = vpop.permute.xlu0 %1871
  %1873 = vrot.lane.b32.xlu0 %v1748, 64
  %v1874 = vpop.permute.xlu0 %1873
  %v1878 = vsel %vm299, %v1869, 0
  %v1881 = vsel %vm299, %v1870, 0
  %1883 = vmatprep.subr.mxu0 0.0
  %1884 = vmatpush1.msra.mxu0 %v1872
  %1885 = vmatprep.subr.mxu0 0.0
  %1886 = vmatpush1.msra.mxu0 %v1874
  %1887 = vmatprep.subr.mxu0 0.0
  %1888 = vmatpush1.msra.mxu0 0.0
  %1889 = vmatprep.subr.mxu0 0.0
  %1890 = vmatpush1.msra.mxu0 0.0
  %1891 = vmatprep.subr.mxu0 0.0
  %1892 = vmatpush1.msra.mxu0 0.0
  %1893 = vmatprep.subr.mxu0 0.0
  %1894 = vmatpush1.msra.mxu0 0.0
  %1895 = vmatprep.subr.mxu0 0.0
  %1896 = vmatpush1.msra.mxu0 0.0
  %1897 = vmatprep.subr.mxu0 0.0
  %1898 = vmatpush1.msra.mxu0 0.0
  %1899 = vmatprep.subr.mxu0 0.0
  %1900 = vmatpush1.msra.mxu0 0.0
  %1901 = vmatprep.subr.mxu0 0.0
  %1902 = vmatpush1.msra.mxu0 0.0
  %1903 = vmatprep.subr.mxu0 0.0
  %1904 = vmatpush1.msra.mxu0 0.0
  %1905 = vmatprep.subr.mxu0 0.0
  %1906 = vmatpush1.msra.mxu0 0.0
  %1907 = vmatprep.subr.mxu0 0.0
  %1908 = vmatpush1.msra.mxu0 0.0
  %1909 = vmatprep.subr.mxu0 0.0
  %1910 = vmatpush1.msra.mxu0 0.0
  %1911 = vmatprep.subr.mxu0 0.0
  %1912 = vmatpush1.msra.mxu0 0.0
  %1913 = vmatprep.subr.mxu0 0.0
  %1914 = vmatpush1.msra.mxu0 0.0
  %1915 = vmatprep.subr.mxu0 0.0
  %1916 = vmatpush1.msra.mxu0 0.0
  %1917 = vmatprep.subr.mxu0 0.0
  %1918 = vmatpush1.msra.mxu0 0.0
  %1919 = vmatprep.subr.mxu0 0.0
  %1920 = vmatpush1.msra.mxu0 0.0
  %1921 = vmatprep.subr.mxu0 0.0
  %1922 = vmatpush1.msra.mxu0 0.0
  %1923 = vmatprep.subr.mxu0 0.0
  %1924 = vmatpush1.msra.mxu0 0.0
  %1925 = vmatprep.subr.mxu0 0.0
  %1926 = vmatpush1.msra.mxu0 0.0
  %1927 = vmatprep.subr.mxu0 0.0
  %1928 = vmatpush1.msra.mxu0 0.0
  %1929 = vmatprep.subr.mxu0 0.0
  %1930 = vmatpush1.msra.mxu0 0.0
  %1931 = vmatprep.subr.mxu0 0.0
  %1932 = vmatpush1.msra.mxu0 0.0
  %1933 = vmatprep.subr.mxu0 0.0
  %1934 = vmatpush1.msra.mxu0 0.0
  %1935 = vmatprep.subr.mxu0 0.0
  %1936 = vmatpush1.msra.mxu0 0.0
  %1937 = vmatprep.subr.mxu0 0.0
  %1938 = vmatpush1.msra.mxu0 0.0
  %1939 = vmatprep.subr.mxu0 0.0
  %1940 = vmatpush1.msra.mxu0 0.0
  %1941 = vmatprep.subr.mxu0 0.0
  %1942 = vmatpush1.msra.mxu0 0.0
  %1943 = vmatprep.subr.mxu0 0.0
  %1944 = vmatpush1.msra.mxu0 0.0
  %1945 = vmatprep.subr.mxu0 0.0
  %1946 = vmatpush1.msra.mxu0 0.0
  %1947 = vmatprep.mubr.f32.mxu0 0.0
  %1948 = vmatmul.mubr.f32.gmra.mrb[0].mxu0 %v1878
  %v1949 = vpop.f32.mrb[0].mxu0
  %v1950 = vadd.f32 0.0, %v1949
  %v1951 = vpop.f32.mrb[0].mxu0
  %1952 = vmatprep.mubr.f32.mxu0 0.0
  %1953 = vmatmul.mubr.f32.gmra.mrb[0].mxu0 %v1881
  %v1954 = vpop.f32.mrb[0].mxu0
  %v1955 = vadd.f32 0.0, %v1954
  %v1956 = vpop.f32.mrb[0].mxu0
  %1957 = vdwg.mxu0
  %1958 = vrot.lane.b32.xlu0 %v1743, 120
  %v1959 = vpop.permute.xlu0 %1958
  %1960 = vrot.lane.b32.xlu0 %v1748, 120
  %v1961 = vpop.permute.xlu0 %1960
  %1962 = vrot.lane.b32.xlu0 %v1743, 88
  %v1963 = vpop.permute.xlu0 %1962
  %1964 = vrot.lane.b32.xlu0 %v1748, 88
  %v1965 = vpop.permute.xlu0 %1964
  %v1966 = vsel %vm211, %v1959, 0
  %v1968 = vsel %vm211, %v1961, 0
  %v1970 = vsel %vm211, %v1963, 0
  %v1972 = vsel %vm211, %v1965, 0
  %1974 = vmatprep.subr.mxu0 0.0
  %1975 = vmatpush1.xpose.msra.mxu0 %v1970
  %1976 = vmatprep.subr.mxu0 0.0
  %1977 = vmatpush1.xpose.msra.mxu0 %v1972
  %1978 = vmatprep.subr.mxu0 0.0
  %1979 = vmatpush1.xpose.msra.mxu0 0.0
  %1980 = vmatprep.subr.mxu0 0.0
  %1981 = vmatpush1.xpose.msra.mxu0 0.0
  %1982 = vmatprep.subr.mxu0 0.0
  %1983 = vmatpush1.xpose.msra.mxu0 0.0
  %1984 = vmatprep.subr.mxu0 0.0
  %1985 = vmatpush1.xpose.msra.mxu0 0.0
  %1986 = vmatprep.subr.mxu0 0.0
  %1987 = vmatpush1.xpose.msra.mxu0 0.0
  %1988 = vmatprep.subr.mxu0 0.0
  %1989 = vmatpush1.xpose.msra.mxu0 0.0
  %1990 = vmatprep.subr.mxu0 0.0
  %1991 = vmatpush1.xpose.msra.mxu0 0.0
  %1992 = vmatprep.subr.mxu0 0.0
  %1993 = vmatpush1.xpose.msra.mxu0 0.0
  %1994 = vmatprep.subr.mxu0 0.0
  %1995 = vmatpush1.xpose.msra.mxu0 0.0
  %1996 = vmatprep.subr.mxu0 0.0
  %1997 = vmatpush1.xpose.msra.mxu0 0.0
  %1998 = vmatprep.subr.mxu0 0.0
  %1999 = vmatpush1.xpose.msra.mxu0 0.0
  %2000 = vmatprep.subr.mxu0 0.0
  %2001 = vmatpush1.xpose.msra.mxu0 0.0
  %2002 = vmatprep.subr.mxu0 0.0
  %2003 = vmatpush1.xpose.msra.mxu0 0.0
  %2004 = vmatprep.subr.mxu0 0.0
  %2005 = vmatpush1.xpose.msra.mxu0 0.0
  %2006 = vmatprep.subr.mxu0 0.0
  %2007 = vmatpush1.xpose.msra.mxu0 0.0
  %2008 = vmatprep.subr.mxu0 0.0
  %2009 = vmatpush1.xpose.msra.mxu0 0.0
  %2010 = vmatprep.subr.mxu0 0.0
  %2011 = vmatpush1.xpose.msra.mxu0 0.0
  %2012 = vmatprep.subr.mxu0 0.0
  %2013 = vmatpush1.xpose.msra.mxu0 0.0
  %2014 = vmatprep.subr.mxu0 0.0
  %2015 = vmatpush1.xpose.msra.mxu0 0.0
  %2016 = vmatprep.subr.mxu0 0.0
  %2017 = vmatpush1.xpose.msra.mxu0 0.0
  %2018 = vmatprep.subr.mxu0 0.0
  %2019 = vmatpush1.xpose.msra.mxu0 0.0
  %2020 = vmatprep.subr.mxu0 0.0
  %2021 = vmatpush1.xpose.msra.mxu0 0.0
  %2022 = vmatprep.subr.mxu0 0.0
  %2023 = vmatpush1.xpose.msra.mxu0 0.0
  %2024 = vmatprep.subr.mxu0 0.0
  %2025 = vmatpush1.xpose.msra.mxu0 0.0
  %2026 = vmatprep.subr.mxu0 0.0
  %2027 = vmatpush1.xpose.msra.mxu0 0.0
  %2028 = vmatprep.subr.mxu0 0.0
  %2029 = vmatpush1.xpose.msra.mxu0 0.0
  %2030 = vmatprep.subr.mxu0 0.0
  %2031 = vmatpush1.xpose.msra.mxu0 0.0
  %2032 = vmatprep.subr.mxu0 0.0
  %2033 = vmatpush1.xpose.msra.mxu0 0.0
  %2034 = vmatprep.subr.mxu0 0.0
  %2035 = vmatpush1.xpose.msra.mxu0 0.0
  %2036 = vmatprep.subr.mxu0 0.0
  %2037 = vmatpush1.xpose.msra.mxu0 0.0
  %2038 = vmatprep.mubr.f32.mxu0 0.0
  %2039 = vmatmul.mubr.f32.gmra.mrb[0].mxu0 %v1966
  %v2040 = vpop.f32.mrb[0].mxu0
  %v2041 = vadd.f32 0.0, %v2040
  %v2042 = vpop.f32.mrb[0].mxu0
  %2043 = vmatprep.mubr.f32.mxu0 0.0
  %2044 = vmatmul.mubr.f32.gmra.mrb[0].mxu0 %v1968
  %v2045 = vpop.f32.mrb[0].mxu0
  %v2046 = vadd.f32 0.0, %v2045
  %v2047 = vpop.f32.mrb[0].mxu0
  %2048 = vdwg.mxu0
  %v2049 = vmul.f32 %v2041, 0.35355338
  %v2050 = vmul.f32 %v2046, 0.35355338
  %v2051 = vadd.f32 %v2049, %v107
  %v2052 = vadd.f32 %v2050, %v108
  %v2053 = vsel %vm299, %v2051, -inf
  %2054 = vmax.xlane.f32.xlu0 %v2053
  %v2055 = vpop.xlane.xlu0 %2054
  %v2056 = vsel %vm299, %v2052, -inf
  %2057 = vmax.xlane.f32.xlu0 %v2056
  %v2058 = vpop.xlane.xlu0 %2057
  %v2059 = vsub.f32 %v2051, %v2055
  %v2060 = vsub.f32 %v2052, %v2058
  %v2061 = vmul.f32 %v2059, 1.442695
  %v2062 = vpow.pop %v2061
  %v2063 = vmul.f32 %v2060, 1.442695
  %v2064 = vpow.pop %v2063
  %v2065 = vsel %vm299, %v2062, 0.0
  %2066 = vadd.xlane.f32.xlu0 %v2065
  %v2067 = vpop.xlane.xlu0 %2066
  %v2068 = vsel %vm299, %v2064, 0.0
  %2069 = vadd.xlane.f32.xlu0 %v2068
  %v2070 = vpop.xlane.xlu0 %2069
  %v2071 = vrcp.pop %v2067
  %v2072 = vrcp.pop %v2070
  %v2073 = vmul.f32 %v2062, %v2071
  %v2074 = vmul.f32 %v2064, %v2072
  %2075 = vrot.lane.b32.xlu0 %v1743, 56
  %v2076 = vpop.permute.xlu0 %2075
  %2077 = vrot.lane.b32.xlu0 %v1748, 56
  %v2078 = vpop.permute.xlu0 %2077
  %v2082 = vsel %vm299, %v2073, 0
  %v2085 = vsel %vm299, %v2074, 0
  %2087 = vmatprep.subr.mxu0 0.0
  %2088 = vmatpush1.msra.mxu0 %v2076
  %2089 = vmatprep.subr.mxu0 0.0
  %2090 = vmatpush1.msra.mxu0 %v2078
  %2091 = vmatprep.subr.mxu0 0.0
  %2092 = vmatpush1.msra.mxu0 0.0
  %2093 = vmatprep.subr.mxu0 0.0
  %2094 = vmatpush1.msra.mxu0 0.0
  %2095 = vmatprep.subr.mxu0 0.0
  %2096 = vmatpush1.msra.mxu0 0.0
  %2097 = vmatprep.subr.mxu0 0.0
  %2098 = vmatpush1.msra.mxu0 0.0
  %2099 = vmatprep.subr.mxu0 0.0
  %2100 = vmatpush1.msra.mxu0 0.0
  %2101 = vmatprep.subr.mxu0 0.0
  %2102 = vmatpush1.msra.mxu0 0.0
  %2103 = vmatprep.subr.mxu0 0.0
  %2104 = vmatpush1.msra.mxu0 0.0
  %2105 = vmatprep.subr.mxu0 0.0
  %2106 = vmatpush1.msra.mxu0 0.0
  %2107 = vmatprep.subr.mxu0 0.0
  %2108 = vmatpush1.msra.mxu0 0.0
  %2109 = vmatprep.subr.mxu0 0.0
  %2110 = vmatpush1.msra.mxu0 0.0
  %2111 = vmatprep.subr.mxu0 0.0
  %2112 = vmatpush1.msra.mxu0 0.0
  %2113 = vmatprep.subr.mxu0 0.0
  %2114 = vmatpush1.msra.mxu0 0.0
  %2115 = vmatprep.subr.mxu0 0.0
  %2116 = vmatpush1.msra.mxu0 0.0
  %2117 = vmatprep.subr.mxu0 0.0
  %2118 = vmatpush1.msra.mxu0 0.0
  %2119 = vmatprep.subr.mxu0 0.0
  %2120 = vmatpush1.msra.mxu0 0.0
  %2121 = vmatprep.subr.mxu0 0.0
  %2122 = vmatpush1.msra.mxu0 0.0
  %2123 = vmatprep.subr.mxu0 0.0
  %2124 = vmatpush1.msra.mxu0 0.0
  %2125 = vmatprep.subr.mxu0 0.0
  %2126 = vmatpush1.msra.mxu0 0.0
  %2127 = vmatprep.subr.mxu0 0.0
  %2128 = vmatpush1.msra.mxu0 0.0
  %2129 = vmatprep.subr.mxu0 0.0
  %2130 = vmatpush1.msra.mxu0 0.0
  %2131 = vmatprep.subr.mxu0 0.0
  %2132 = vmatpush1.msra.mxu0 0.0
  %2133 = vmatprep.subr.mxu0 0.0
  %2134 = vmatpush1.msra.mxu0 0.0
  %2135 = vmatprep.subr.mxu0 0.0
  %2136 = vmatpush1.msra.mxu0 0.0
  %2137 = vmatprep.subr.mxu0 0.0
  %2138 = vmatpush1.msra.mxu0 0.0
  %2139 = vmatprep.subr.mxu0 0.0
  %2140 = vmatpush1.msra.mxu0 0.0
  %2141 = vmatprep.subr.mxu0 0.0
  %2142 = vmatpush1.msra.mxu0 0.0
  %2143 = vmatprep.subr.mxu0 0.0
  %2144 = vmatpush1.msra.mxu0 0.0
  %2145 = vmatprep.subr.mxu0 0.0
  %2146 = vmatpush1.msra.mxu0 0.0
  %2147 = vmatprep.subr.mxu0 0.0
  %2148 = vmatpush1.msra.mxu0 0.0
  %2149 = vmatprep.subr.mxu0 0.0
  %2150 = vmatpush1.msra.mxu0 0.0
  %2151 = vmatprep.mubr.f32.mxu0 0.0
  %2152 = vmatmul.mubr.f32.gmra.mrb[0].mxu0 %v2082
  %v2153 = vpop.f32.mrb[0].mxu0
  %v2154 = vadd.f32 0.0, %v2153
  %v2155 = vpop.f32.mrb[0].mxu0
  %2156 = vmatprep.mubr.f32.mxu0 0.0
  %2157 = vmatmul.mubr.f32.gmra.mrb[0].mxu0 %v2085
  %v2158 = vpop.f32.mrb[0].mxu0
  %v2159 = vadd.f32 0.0, %v2158
  %v2160 = vpop.f32.mrb[0].mxu0
  %2161 = vdwg.mxu0
  %v2163 = vsel %vm211, %v2154, 0
  %v2166 = vsel %vm211, %v2159, 0
  %2168 = vmatprep.subr.mxu0 0.0
  %2169 = vmatpush1.msra.mxu0 %v1753
  %2170 = vmatprep.subr.mxu0 0.0
  %2171 = vmatpush1.msra.mxu0 0.0
  %2172 = vmatprep.subr.mxu0 0.0
  %2173 = vmatpush1.msra.mxu0 0.0
  %2174 = vmatprep.subr.mxu0 0.0
  %2175 = vmatpush1.msra.mxu0 0.0
  %2176 = vmatprep.subr.mxu0 0.0
  %2177 = vmatpush1.msra.mxu0 0.0
  %2178 = vmatprep.subr.mxu0 0.0
  %2179 = vmatpush1.msra.mxu0 0.0
  %2180 = vmatprep.subr.mxu0 0.0
  %2181 = vmatpush1.msra.mxu0 0.0
  %2182 = vmatprep.subr.mxu0 0.0
  %2183 = vmatpush1.msra.mxu0 0.0
  %2184 = vmatprep.subr.mxu0 0.0
  %2185 = vmatpush1.msra.mxu0 0.0
  %2186 = vmatprep.subr.mxu0 0.0
  %2187 = vmatpush1.msra.mxu0 0.0
  %2188 = vmatprep.subr.mxu0 0.0
  %2189 = vmatpush1.msra.mxu0 0.0
  %2190 = vmatprep.subr.mxu0 0.0
  %2191 = vmatpush1.msra.mxu0 0.0
  %2192 = vmatprep.subr.mxu0 0.0
  %2193 = vmatpush1.msra.mxu0 0.0
  %2194 = vmatprep.subr.mxu0 0.0
  %2195 = vmatpush1.msra.mxu0 0.0
  %2196 = vmatprep.subr.mxu0 0.0
  %2197 = vmatpush1.msra.mxu0 0.0
  %2198 = vmatprep.subr.mxu0 0.0
  %2199 = vmatpush1.msra.mxu0 0.0
  %2200 = vmatprep.subr.mxu0 0.0
  %2201 = vmatpush1.msra.mxu0 0.0
  %2202 = vmatprep.subr.mxu0 0.0
  %2203 = vmatpush1.msra.mxu0 0.0
  %2204 = vmatprep.subr.mxu0 0.0
  %2205 = vmatpush1.msra.mxu0 0.0
  %2206 = vmatprep.subr.mxu0 0.0
  %2207 = vmatpush1.msra.mxu0 0.0
  %2208 = vmatprep.subr.mxu0 0.0
  %2209 = vmatpush1.msra.mxu0 0.0
  %2210 = vmatprep.subr.mxu0 0.0
  %2211 = vmatpush1.msra.mxu0 0.0
  %2212 = vmatprep.subr.mxu0 0.0
  %2213 = vmatpush1.msra.mxu0 0.0
  %2214 = vmatprep.subr.mxu0 0.0
  %2215 = vmatpush1.msra.mxu0 0.0
  %2216 = vmatprep.subr.mxu0 0.0
  %2217 = vmatpush1.msra.mxu0 0.0
  %2218 = vmatprep.subr.mxu0 0.0
  %2219 = vmatpush1.msra.mxu0 0.0
  %2220 = vmatprep.subr.mxu0 0.0
  %2221 = vmatpush1.msra.mxu0 0.0
  %2222 = vmatprep.subr.mxu0 0.0
  %2223 = vmatpush1.msra.mxu0 0.0
  %2224 = vmatprep.subr.mxu0 0.0
  %2225 = vmatpush1.msra.mxu0 0.0
  %2226 = vmatprep.subr.mxu0 0.0
  %2227 = vmatpush1.msra.mxu0 0.0
  %2228 = vmatprep.subr.mxu0 0.0
  %2229 = vmatpush1.msra.mxu0 0.0
  %2230 = vmatprep.subr.mxu0 0.0
  %2231 = vmatpush1.msra.mxu0 0.0
  %2232 = vmatprep.mubr.f32.mxu0 0.0
  %2233 = vmatmul.mubr.f32.gmra.mrb[0].mxu0 %v2163
  %v2234 = vpop.f32.mrb[0].mxu0
  %v2235 = vadd.f32 0.0, %v2234
  %v2236 = vpop.f32.mrb[0].mxu0
  %2237 = vmatprep.mubr.f32.mxu0 0.0
  %2238 = vmatmul.mubr.f32.gmra.mrb[0].mxu0 %v2166
  %v2239 = vpop.f32.mrb[0].mxu0
  %v2240 = vadd.f32 0.0, %v2239
  %v2241 = vpop.f32.mrb[0].mxu0
  %2242 = vdwg.mxu0
  %v2244 = vsel %vm211, %v1950, 0
  %v2247 = vsel %vm211, %v1955, 0
  %2249 = vmatprep.subr.mxu0 0.0
  %2250 = vmatpush1.msra.mxu0 %v1752
  %2251 = vmatprep.subr.mxu0 0.0
  %2252 = vmatpush1.msra.mxu0 0.0
  %2253 = vmatprep.subr.mxu0 0.0
  %2254 = vmatpush1.msra.mxu0 0.0
  %2255 = vmatprep.subr.mxu0 0.0
  %2256 = vmatpush1.msra.mxu0 0.0
  %2257 = vmatprep.subr.mxu0 0.0
  %2258 = vmatpush1.msra.mxu0 0.0
  %2259 = vmatprep.subr.mxu0 0.0
  %2260 = vmatpush1.msra.mxu0 0.0
  %2261 = vmatprep.subr.mxu0 0.0
  %2262 = vmatpush1.msra.mxu0 0.0
  %2263 = vmatprep.subr.mxu0 0.0
  %2264 = vmatpush1.msra.mxu0 0.0
  %2265 = vmatprep.subr.mxu0 0.0
  %2266 = vmatpush1.msra.mxu0 0.0
  %2267 = vmatprep.subr.mxu0 0.0
  %2268 = vmatpush1.msra.mxu0 0.0
  %2269 = vmatprep.subr.mxu0 0.0
  %2270 = vmatpush1.msra.mxu0 0.0
  %2271 = vmatprep.subr.mxu0 0.0
  %2272 = vmatpush1.msra.mxu0 0.0
  %2273 = vmatprep.subr.mxu0 0.0
  %2274 = vmatpush1.msra.mxu0 0.0
  %2275 = vmatprep.subr.mxu0 0.0
  %2276 = vmatpush1.msra.mxu0 0.0
  %2277 = vmatprep.subr.mxu0 0.0
  %2278 = vmatpush1.msra.mxu0 0.0
  %2279 = vmatprep.subr.mxu0 0.0
  %2280 = vmatpush1.msra.mxu0 0.0
  %2281 = vmatprep.subr.mxu0 0.0
  %2282 = vmatpush1.msra.mxu0 0.0
  %2283 = vmatprep.subr.mxu0 0.0
  %2284 = vmatpush1.msra.mxu0 0.0
  %2285 = vmatprep.subr.mxu0 0.0
  %2286 = vmatpush1.msra.mxu0 0.0
  %2287 = vmatprep.subr.mxu0 0.0
  %2288 = vmatpush1.msra.mxu0 0.0
  %2289 = vmatprep.subr.mxu0 0.0
  %2290 = vmatpush1.msra.mxu0 0.0
  %2291 = vmatprep.subr.mxu0 0.0
  %2292 = vmatpush1.msra.mxu0 0.0
  %2293 = vmatprep.subr.mxu0 0.0
  %2294 = vmatpush1.msra.mxu0 0.0
  %2295 = vmatprep.subr.mxu0 0.0
  %2296 = vmatpush1.msra.mxu0 0.0
  %2297 = vmatprep.subr.mxu0 0.0
  %2298 = vmatpush1.msra.mxu0 0.0
  %2299 = vmatprep.subr.mxu0 0.0
  %2300 = vmatpush1.msra.mxu0 0.0
  %2301 = vmatprep.subr.mxu0 0.0
  %2302 = vmatpush1.msra.mxu0 0.0
  %2303 = vmatprep.subr.mxu0 0.0
  %2304 = vmatpush1.msra.mxu0 0.0
  %2305 = vmatprep.subr.mxu0 0.0
  %2306 = vmatpush1.msra.mxu0 0.0
  %2307 = vmatprep.subr.mxu0 0.0
  %2308 = vmatpush1.msra.mxu0 0.0
  %2309 = vmatprep.subr.mxu0 0.0
  %2310 = vmatpush1.msra.mxu0 0.0
  %2311 = vmatprep.subr.mxu0 0.0
  %2312 = vmatpush1.msra.mxu0 0.0
  %2313 = vmatprep.mubr.f32.mxu0 0.0
  %2314 = vmatmul.mubr.f32.gmra.mrb[0].mxu0 %v2244
  %v2315 = vpop.f32.mrb[0].mxu0
  %v2316 = vadd.f32 %v2235, %v2315
  %v2317 = vpop.f32.mrb[0].mxu0
  %2318 = vmatprep.mubr.f32.mxu0 0.0
  %2319 = vmatmul.mubr.f32.gmra.mrb[0].mxu0 %v2247
  %v2320 = vpop.f32.mrb[0].mxu0
  %v2321 = vadd.f32 %v2240, %v2320
  %v2322 = vpop.f32.mrb[0].mxu0
  %2323 = vdwg.mxu0
  %2324 = vrot.lane.b32.xlu0 %v1743, 112
  %v2325 = vpop.permute.xlu0 %2324
  %2326 = vrot.lane.b32.xlu0 %v1748, 112
  %v2327 = vpop.permute.xlu0 %2326
  %2328 = vrot.lane.b32.xlu0 %v1743, 80
  %v2329 = vpop.permute.xlu0 %2328
  %2330 = vrot.lane.b32.xlu0 %v1748, 80
  %v2331 = vpop.permute.xlu0 %2330
  %v2332 = vsel %vm211, %v2325, 0
  %v2334 = vsel %vm211, %v2327, 0
  %v2336 = vsel %vm211, %v2329, 0
  %v2338 = vsel %vm211, %v2331, 0
  %2340 = vmatprep.subr.mxu0 0.0
  %2341 = vmatpush1.xpose.msra.mxu0 %v2336
  %2342 = vmatprep.subr.mxu0 0.0
  %2343 = vmatpush1.xpose.msra.mxu0 %v2338
  %2344 = vmatprep.subr.mxu0 0.0
  %2345 = vmatpush1.xpose.msra.mxu0 0.0
  %2346 = vmatprep.subr.mxu0 0.0
  %2347 = vmatpush1.xpose.msra.mxu0 0.0
  %2348 = vmatprep.subr.mxu0 0.0
  %2349 = vmatpush1.xpose.msra.mxu0 0.0
  %2350 = vmatprep.subr.mxu0 0.0
  %2351 = vmatpush1.xpose.msra.mxu0 0.0
  %2352 = vmatprep.subr.mxu0 0.0
  %2353 = vmatpush1.xpose.msra.mxu0 0.0
  %2354 = vmatprep.subr.mxu0 0.0
  %2355 = vmatpush1.xpose.msra.mxu0 0.0
  %2356 = vmatprep.subr.mxu0 0.0
  %2357 = vmatpush1.xpose.msra.mxu0 0.0
  %2358 = vmatprep.subr.mxu0 0.0
  %2359 = vmatpush1.xpose.msra.mxu0 0.0
  %2360 = vmatprep.subr.mxu0 0.0
  %2361 = vmatpush1.xpose.msra.mxu0 0.0
  %2362 = vmatprep.subr.mxu0 0.0
  %2363 = vmatpush1.xpose.msra.mxu0 0.0
  %2364 = vmatprep.subr.mxu0 0.0
  %2365 = vmatpush1.xpose.msra.mxu0 0.0
  %2366 = vmatprep.subr.mxu0 0.0
  %2367 = vmatpush1.xpose.msra.mxu0 0.0
  %2368 = vmatprep.subr.mxu0 0.0
  %2369 = vmatpush1.xpose.msra.mxu0 0.0
  %2370 = vmatprep.subr.mxu0 0.0
  %2371 = vmatpush1.xpose.msra.mxu0 0.0
  %2372 = vmatprep.subr.mxu0 0.0
  %2373 = vmatpush1.xpose.msra.mxu0 0.0
  %2374 = vmatprep.subr.mxu0 0.0
  %2375 = vmatpush1.xpose.msra.mxu0 0.0
  %2376 = vmatprep.subr.mxu0 0.0
  %2377 = vmatpush1.xpose.msra.mxu0 0.0
  %2378 = vmatprep.subr.mxu0 0.0
  %2379 = vmatpush1.xpose.msra.mxu0 0.0
  %2380 = vmatprep.subr.mxu0 0.0
  %2381 = vmatpush1.xpose.msra.mxu0 0.0
  %2382 = vmatprep.subr.mxu0 0.0
  %2383 = vmatpush1.xpose.msra.mxu0 0.0
  %2384 = vmatprep.subr.mxu0 0.0
  %2385 = vmatpush1.xpose.msra.mxu0 0.0
  %2386 = vmatprep.subr.mxu0 0.0
  %2387 = vmatpush1.xpose.msra.mxu0 0.0
  %2388 = vmatprep.subr.mxu0 0.0
  %2389 = vmatpush1.xpose.msra.mxu0 0.0
  %2390 = vmatprep.subr.mxu0 0.0
  %2391 = vmatpush1.xpose.msra.mxu0 0.0
  %2392 = vmatprep.subr.mxu0 0.0
  %2393 = vmatpush1.xpose.msra.mxu0 0.0
  %2394 = vmatprep.subr.mxu0 0.0
  %2395 = vmatpush1.xpose.msra.mxu0 0.0
  %2396 = vmatprep.subr.mxu0 0.0
  %2397 = vmatpush1.xpose.msra.mxu0 0.0
  %2398 = vmatprep.subr.mxu0 0.0
  %2399 = vmatpush1.xpose.msra.mxu0 0.0
  %2400 = vmatprep.subr.mxu0 0.0
  %2401 = vmatpush1.xpose.msra.mxu0 0.0
  %2402 = vmatprep.subr.mxu0 0.0
  %2403 = vmatpush1.xpose.msra.mxu0 0.0
  %2404 = vmatprep.mubr.f32.mxu0 0.0
  %2405 = vmatmul.mubr.f32.gmra.mrb[0].mxu0 %v2332
  %v2406 = vpop.f32.mrb[0].mxu0
  %v2407 = vadd.f32 0.0, %v2406
  %v2408 = vpop.f32.mrb[0].mxu0
  %2409 = vmatprep.mubr.f32.mxu0 0.0
  %2410 = vmatmul.mubr.f32.gmra.mrb[0].mxu0 %v2334
  %v2411 = vpop.f32.mrb[0].mxu0
  %v2412 = vadd.f32 0.0, %v2411
  %v2413 = vpop.f32.mrb[0].mxu0
  %2414 = vdwg.mxu0
  %v2415 = vmul.f32 %v2407, 0.35355338
  %v2416 = vmul.f32 %v2412, 0.35355338
  %v2417 = vadd.f32 %v2415, %v107
  %v2418 = vadd.f32 %v2416, %v108
  %v2419 = vsel %vm299, %v2417, -inf
  %2420 = vmax.xlane.f32.xlu0 %v2419
  %v2421 = vpop.xlane.xlu0 %2420
  %v2422 = vsel %vm299, %v2418, -inf
  %2423 = vmax.xlane.f32.xlu0 %v2422
  %v2424 = vpop.xlane.xlu0 %2423
  %v2425 = vsub.f32 %v2417, %v2421
  %v2426 = vsub.f32 %v2418, %v2424
  %v2427 = vmul.f32 %v2425, 1.442695
  %v2428 = vpow.pop %v2427
  %v2429 = vmul.f32 %v2426, 1.442695
  %v2430 = vpow.pop %v2429
  %v2431 = vsel %vm299, %v2428, 0.0
  %2432 = vadd.xlane.f32.xlu0 %v2431
  %v2433 = vpop.xlane.xlu0 %2432
  %v2434 = vsel %vm299, %v2430, 0.0
  %2435 = vadd.xlane.f32.xlu0 %v2434
  %v2436 = vpop.xlane.xlu0 %2435
  %v2437 = vrcp.pop %v2433
  %v2438 = vrcp.pop %v2436
  %v2439 = vmul.f32 %v2428, %v2437
  %v2440 = vmul.f32 %v2430, %v2438
  %2441 = vrot.lane.b32.xlu0 %v1743, 48
  %v2442 = vpop.permute.xlu0 %2441
  %2443 = vrot.lane.b32.xlu0 %v1748, 48
  %v2444 = vpop.permute.xlu0 %2443
  %v2448 = vsel %vm299, %v2439, 0
  %v2451 = vsel %vm299, %v2440, 0
  %2453 = vmatprep.subr.mxu0 0.0
  %2454 = vmatpush1.msra.mxu0 %v2442
  %2455 = vmatprep.subr.mxu0 0.0
  %2456 = vmatpush1.msra.mxu0 %v2444
  %2457 = vmatprep.subr.mxu0 0.0
  %2458 = vmatpush1.msra.mxu0 0.0
  %2459 = vmatprep.subr.mxu0 0.0
  %2460 = vmatpush1.msra.mxu0 0.0
  %2461 = vmatprep.subr.mxu0 0.0
  %2462 = vmatpush1.msra.mxu0 0.0
  %2463 = vmatprep.subr.mxu0 0.0
  %2464 = vmatpush1.msra.mxu0 0.0
  %2465 = vmatprep.subr.mxu0 0.0
  %2466 = vmatpush1.msra.mxu0 0.0
  %2467 = vmatprep.subr.mxu0 0.0
  %2468 = vmatpush1.msra.mxu0 0.0
  %2469 = vmatprep.subr.mxu0 0.0
  %2470 = vmatpush1.msra.mxu0 0.0
  %2471 = vmatprep.subr.mxu0 0.0
  %2472 = vmatpush1.msra.mxu0 0.0
  %2473 = vmatprep.subr.mxu0 0.0
  %2474 = vmatpush1.msra.mxu0 0.0
  %2475 = vmatprep.subr.mxu0 0.0
  %2476 = vmatpush1.msra.mxu0 0.0
  %2477 = vmatprep.subr.mxu0 0.0
  %2478 = vmatpush1.msra.mxu0 0.0
  %2479 = vmatprep.subr.mxu0 0.0
  %2480 = vmatpush1.msra.mxu0 0.0
  %2481 = vmatprep.subr.mxu0 0.0
  %2482 = vmatpush1.msra.mxu0 0.0
  %2483 = vmatprep.subr.mxu0 0.0
  %2484 = vmatpush1.msra.mxu0 0.0
  %2485 = vmatprep.subr.mxu0 0.0
  %2486 = vmatpush1.msra.mxu0 0.0
  %2487 = vmatprep.subr.mxu0 0.0
  %2488 = vmatpush1.msra.mxu0 0.0
  %2489 = vmatprep.subr.mxu0 0.0
  %2490 = vmatpush1.msra.mxu0 0.0
  %2491 = vmatprep.subr.mxu0 0.0
  %2492 = vmatpush1.msra.mxu0 0.0
  %2493 = vmatprep.subr.mxu0 0.0
  %2494 = vmatpush1.msra.mxu0 0.0
  %2495 = vmatprep.subr.mxu0 0.0
  %2496 = vmatpush1.msra.mxu0 0.0
  %2497 = vmatprep.subr.mxu0 0.0
  %2498 = vmatpush1.msra.mxu0 0.0
  %2499 = vmatprep.subr.mxu0 0.0
  %2500 = vmatpush1.msra.mxu0 0.0
  %2501 = vmatprep.subr.mxu0 0.0
  %2502 = vmatpush1.msra.mxu0 0.0
  %2503 = vmatprep.subr.mxu0 0.0
  %2504 = vmatpush1.msra.mxu0 0.0
  %2505 = vmatprep.subr.mxu0 0.0
  %2506 = vmatpush1.msra.mxu0 0.0
  %2507 = vmatprep.subr.mxu0 0.0
  %2508 = vmatpush1.msra.mxu0 0.0
  %2509 = vmatprep.subr.mxu0 0.0
  %2510 = vmatpush1.msra.mxu0 0.0
  %2511 = vmatprep.subr.mxu0 0.0
  %2512 = vmatpush1.msra.mxu0 0.0
  %2513 = vmatprep.subr.mxu0 0.0
  %2514 = vmatpush1.msra.mxu0 0.0
  %2515 = vmatprep.subr.mxu0 0.0
  %2516 = vmatpush1.msra.mxu0 0.0
  %2517 = vmatprep.mubr.f32.mxu0 0.0
  %2518 = vmatmul.mubr.f32.gmra.mrb[0].mxu0 %v2448
  %v2519 = vpop.f32.mrb[0].mxu0
  %v2520 = vadd.f32 0.0, %v2519
  %v2521 = vpop.f32.mrb[0].mxu0
  %2522 = vmatprep.mubr.f32.mxu0 0.0
  %2523 = vmatmul.mubr.f32.gmra.mrb[0].mxu0 %v2451
  %v2524 = vpop.f32.mrb[0].mxu0
  %v2525 = vadd.f32 0.0, %v2524
  %v2526 = vpop.f32.mrb[0].mxu0
  %2527 = vdwg.mxu0
  %v2529 = vsel %vm211, %v2520, 0
  %v2532 = vsel %vm211, %v2525, 0
  %2534 = vmatprep.subr.mxu0 0.0
  %2535 = vmatpush1.msra.mxu0 %v1754
  %2536 = vmatprep.subr.mxu0 0.0
  %2537 = vmatpush1.msra.mxu0 0.0
  %2538 = vmatprep.subr.mxu0 0.0
  %2539 = vmatpush1.msra.mxu0 0.0
  %2540 = vmatprep.subr.mxu0 0.0
  %2541 = vmatpush1.msra.mxu0 0.0
  %2542 = vmatprep.subr.mxu0 0.0
  %2543 = vmatpush1.msra.mxu0 0.0
  %2544 = vmatprep.subr.mxu0 0.0
  %2545 = vmatpush1.msra.mxu0 0.0
  %2546 = vmatprep.subr.mxu0 0.0
  %2547 = vmatpush1.msra.mxu0 0.0
  %2548 = vmatprep.subr.mxu0 0.0
  %2549 = vmatpush1.msra.mxu0 0.0
  %2550 = vmatprep.subr.mxu0 0.0
  %2551 = vmatpush1.msra.mxu0 0.0
  %2552 = vmatprep.subr.mxu0 0.0
  %2553 = vmatpush1.msra.mxu0 0.0
  %2554 = vmatprep.subr.mxu0 0.0
  %2555 = vmatpush1.msra.mxu0 0.0
  %2556 = vmatprep.subr.mxu0 0.0
  %2557 = vmatpush1.msra.mxu0 0.0
  %2558 = vmatprep.subr.mxu0 0.0
  %2559 = vmatpush1.msra.mxu0 0.0
  %2560 = vmatprep.subr.mxu0 0.0
  %2561 = vmatpush1.msra.mxu0 0.0
  %2562 = vmatprep.subr.mxu0 0.0
  %2563 = vmatpush1.msra.mxu0 0.0
  %2564 = vmatprep.subr.mxu0 0.0
  %2565 = vmatpush1.msra.mxu0 0.0
  %2566 = vmatprep.subr.mxu0 0.0
  %2567 = vmatpush1.msra.mxu0 0.0
  %2568 = vmatprep.subr.mxu0 0.0
  %2569 = vmatpush1.msra.mxu0 0.0
  %2570 = vmatprep.subr.mxu0 0.0
  %2571 = vmatpush1.msra.mxu0 0.0
  %2572 = vmatprep.subr.mxu0 0.0
  %2573 = vmatpush1.msra.mxu0 0.0
  %2574 = vmatprep.subr.mxu0 0.0
  %2575 = vmatpush1.msra.mxu0 0.0
  %2576 = vmatprep.subr.mxu0 0.0
  %2577 = vmatpush1.msra.mxu0 0.0
  %2578 = vmatprep.subr.mxu0 0.0
  %2579 = vmatpush1.msra.mxu0 0.0
  %2580 = vmatprep.subr.mxu0 0.0
  %2581 = vmatpush1.msra.mxu0 0.0
  %2582 = vmatprep.subr.mxu0 0.0
  %2583 = vmatpush1.msra.mxu0 0.0
  %2584 = vmatprep.subr.mxu0 0.0
  %2585 = vmatpush1.msra.mxu0 0.0
  %2586 = vmatprep.subr.mxu0 0.0
  %2587 = vmatpush1.msra.mxu0 0.0
  %2588 = vmatprep.subr.mxu0 0.0
  %2589 = vmatpush1.msra.mxu0 0.0
  %2590 = vmatprep.subr.mxu0 0.0
  %2591 = vmatpush1.msra.mxu0 0.0
  %2592 = vmatprep.subr.mxu0 0.0
  %2593 = vmatpush1.msra.mxu0 0.0
  %2594 = vmatprep.subr.mxu0 0.0
  %2595 = vmatpush1.msra.mxu0 0.0
  %2596 = vmatprep.subr.mxu0 0.0
  %2597 = vmatpush1.msra.mxu0 0.0
  %2598 = vmatprep.mubr.f32.mxu0 0.0
  %2599 = vmatmul.mubr.f32.gmra.mrb[0].mxu0 %v2529
  %v2600 = vpop.f32.mrb[0].mxu0
  %v2601 = vadd.f32 0.0, %v2600
  %v2602 = vpop.f32.mrb[0].mxu0
  %2603 = vmatprep.mubr.f32.mxu0 0.0
  %2604 = vmatmul.mubr.f32.gmra.mrb[0].mxu0 %v2532
  %v2605 = vpop.f32.mrb[0].mxu0
  %v2606 = vadd.f32 0.0, %v2605
  %v2607 = vpop.f32.mrb[0].mxu0
  %2608 = vdwg.mxu0
  %v2609 = vadd.f32 %v2316, %v2601
  %v2610 = vadd.f32 %v2321, %v2606
  %2611 = vrot.lane.b32.xlu0 %v1743, 104
  %v2612 = vpop.permute.xlu0 %2611
  %2613 = vrot.lane.b32.xlu0 %v1748, 104
  %v2614 = vpop.permute.xlu0 %2613
  %2615 = vrot.lane.b32.xlu0 %v1743, 72
  %v2616 = vpop.permute.xlu0 %2615
  %2617 = vrot.lane.b32.xlu0 %v1748, 72
  %v2618 = vpop.permute.xlu0 %2617
  %v2619 = vsel %vm211, %v2612, 0
  %v2621 = vsel %vm211, %v2614, 0
  %v2623 = vsel %vm211, %v2616, 0
  %v2625 = vsel %vm211, %v2618, 0
  %2627 = vmatprep.subr.mxu0 0.0
  %2628 = vmatpush1.xpose.msra.mxu0 %v2623
  %2629 = vmatprep.subr.mxu0 0.0
  %2630 = vmatpush1.xpose.msra.mxu0 %v2625
  %2631 = vmatprep.subr.mxu0 0.0
  %2632 = vmatpush1.xpose.msra.mxu0 0.0
  %2633 = vmatprep.subr.mxu0 0.0
  %2634 = vmatpush1.xpose.msra.mxu0 0.0
  %2635 = vmatprep.subr.mxu0 0.0
  %2636 = vmatpush1.xpose.msra.mxu0 0.0
  %2637 = vmatprep.subr.mxu0 0.0
  %2638 = vmatpush1.xpose.msra.mxu0 0.0
  %2639 = vmatprep.subr.mxu0 0.0
  %2640 = vmatpush1.xpose.msra.mxu0 0.0
  %2641 = vmatprep.subr.mxu0 0.0
  %2642 = vmatpush1.xpose.msra.mxu0 0.0
  %2643 = vmatprep.subr.mxu0 0.0
  %2644 = vmatpush1.xpose.msra.mxu0 0.0
  %2645 = vmatprep.subr.mxu0 0.0
  %2646 = vmatpush1.xpose.msra.mxu0 0.0
  %2647 = vmatprep.subr.mxu0 0.0
  %2648 = vmatpush1.xpose.msra.mxu0 0.0
  %2649 = vmatprep.subr.mxu0 0.0
  %2650 = vmatpush1.xpose.msra.mxu0 0.0
  %2651 = vmatprep.subr.mxu0 0.0
  %2652 = vmatpush1.xpose.msra.mxu0 0.0
  %2653 = vmatprep.subr.mxu0 0.0
  %2654 = vmatpush1.xpose.msra.mxu0 0.0
  %2655 = vmatprep.subr.mxu0 0.0
  %2656 = vmatpush1.xpose.msra.mxu0 0.0
  %2657 = vmatprep.subr.mxu0 0.0
  %2658 = vmatpush1.xpose.msra.mxu0 0.0
  %2659 = vmatprep.subr.mxu0 0.0
  %2660 = vmatpush1.xpose.msra.mxu0 0.0
  %2661 = vmatprep.subr.mxu0 0.0
  %2662 = vmatpush1.xpose.msra.mxu0 0.0
  %2663 = vmatprep.subr.mxu0 0.0
  %2664 = vmatpush1.xpose.msra.mxu0 0.0
  %2665 = vmatprep.subr.mxu0 0.0
  %2666 = vmatpush1.xpose.msra.mxu0 0.0
  %2667 = vmatprep.subr.mxu0 0.0
  %2668 = vmatpush1.xpose.msra.mxu0 0.0
  %2669 = vmatprep.subr.mxu0 0.0
  %2670 = vmatpush1.xpose.msra.mxu0 0.0
  %2671 = vmatprep.subr.mxu0 0.0
  %2672 = vmatpush1.xpose.msra.mxu0 0.0
  %2673 = vmatprep.subr.mxu0 0.0
  %2674 = vmatpush1.xpose.msra.mxu0 0.0
  %2675 = vmatprep.subr.mxu0 0.0
  %2676 = vmatpush1.xpose.msra.mxu0 0.0
  %2677 = vmatprep.subr.mxu0 0.0
  %2678 = vmatpush1.xpose.msra.mxu0 0.0
  %2679 = vmatprep.subr.mxu0 0.0
  %2680 = vmatpush1.xpose.msra.mxu0 0.0
  %2681 = vmatprep.subr.mxu0 0.0
  %2682 = vmatpush1.xpose.msra.mxu0 0.0
  %2683 = vmatprep.subr.mxu0 0.0
  %2684 = vmatpush1.xpose.msra.mxu0 0.0
  %2685 = vmatprep.subr.mxu0 0.0
  %2686 = vmatpush1.xpose.msra.mxu0 0.0
  %2687 = vmatprep.subr.mxu0 0.0
  %2688 = vmatpush1.xpose.msra.mxu0 0.0
  %2689 = vmatprep.subr.mxu0 0.0
  %2690 = vmatpush1.xpose.msra.mxu0 0.0
  %2691 = vmatprep.mubr.f32.mxu0 0.0
  %2692 = vmatmul.mubr.f32.gmra.mrb[0].mxu0 %v2619
  %v2693 = vpop.f32.mrb[0].mxu0
  %v2694 = vadd.f32 0.0, %v2693
  %v2695 = vpop.f32.mrb[0].mxu0
  %2696 = vmatprep.mubr.f32.mxu0 0.0
  %2697 = vmatmul.mubr.f32.gmra.mrb[0].mxu0 %v2621
  %v2698 = vpop.f32.mrb[0].mxu0
  %v2699 = vadd.f32 0.0, %v2698
  %v2700 = vpop.f32.mrb[0].mxu0
  %2701 = vdwg.mxu0
  %v2702 = vmul.f32 %v2694, 0.35355338
  %v2703 = vmul.f32 %v2699, 0.35355338
  %v2704 = vadd.f32 %v2702, %v107
  %v2705 = vadd.f32 %v2703, %v108
  %v2706 = vsel %vm299, %v2704, -inf
  %2707 = vmax.xlane.f32.xlu0 %v2706
  %v2708 = vpop.xlane.xlu0 %2707
  %v2709 = vsel %vm299, %v2705, -inf
  %2710 = vmax.xlane.f32.xlu0 %v2709
  %v2711 = vpop.xlane.xlu0 %2710
  %v2712 = vsub.f32 %v2704, %v2708
  %v2713 = vsub.f32 %v2705, %v2711
  %v2714 = vmul.f32 %v2712, 1.442695
  %v2715 = vpow.pop %v2714
  %v2716 = vmul.f32 %v2713, 1.442695
  %v2717 = vpow.pop %v2716
  %v2718 = vsel %vm299, %v2715, 0.0
  %2719 = vadd.xlane.f32.xlu0 %v2718
  %v2720 = vpop.xlane.xlu0 %2719
  %v2721 = vsel %vm299, %v2717, 0.0
  %2722 = vadd.xlane.f32.xlu0 %v2721
  %v2723 = vpop.xlane.xlu0 %2722
  %v2724 = vrcp.pop %v2720
  %v2725 = vrcp.pop %v2723
  %v2726 = vmul.f32 %v2715, %v2724
  %v2727 = vmul.f32 %v2717, %v2725
  %2728 = vrot.lane.b32.xlu0 %v1743, 40
  %v2729 = vpop.permute.xlu0 %2728
  %2730 = vrot.lane.b32.xlu0 %v1748, 40
  %v2731 = vpop.permute.xlu0 %2730
  %v2735 = vsel %vm299, %v2726, 0
  %v2738 = vsel %vm299, %v2727, 0
  %2740 = vmatprep.subr.mxu0 0.0
  %2741 = vmatpush1.msra.mxu0 %v2729
  %2742 = vmatprep.subr.mxu0 0.0
  %2743 = vmatpush1.msra.mxu0 %v2731
  %2744 = vmatprep.subr.mxu0 0.0
  %2745 = vmatpush1.msra.mxu0 0.0
  %2746 = vmatprep.subr.mxu0 0.0
  %2747 = vmatpush1.msra.mxu0 0.0
  %2748 = vmatprep.subr.mxu0 0.0
  %2749 = vmatpush1.msra.mxu0 0.0
  %2750 = vmatprep.subr.mxu0 0.0
  %2751 = vmatpush1.msra.mxu0 0.0
  %2752 = vmatprep.subr.mxu0 0.0
  %2753 = vmatpush1.msra.mxu0 0.0
  %2754 = vmatprep.subr.mxu0 0.0
  %2755 = vmatpush1.msra.mxu0 0.0
  %2756 = vmatprep.subr.mxu0 0.0
  %2757 = vmatpush1.msra.mxu0 0.0
  %2758 = vmatprep.subr.mxu0 0.0
  %2759 = vmatpush1.msra.mxu0 0.0
  %2760 = vmatprep.subr.mxu0 0.0
  %2761 = vmatpush1.msra.mxu0 0.0
  %2762 = vmatprep.subr.mxu0 0.0
  %2763 = vmatpush1.msra.mxu0 0.0
  %2764 = vmatprep.subr.mxu0 0.0
  %2765 = vmatpush1.msra.mxu0 0.0
  %2766 = vmatprep.subr.mxu0 0.0
  %2767 = vmatpush1.msra.mxu0 0.0
  %2768 = vmatprep.subr.mxu0 0.0
  %2769 = vmatpush1.msra.mxu0 0.0
  %2770 = vmatprep.subr.mxu0 0.0
  %2771 = vmatpush1.msra.mxu0 0.0
  %2772 = vmatprep.subr.mxu0 0.0
  %2773 = vmatpush1.msra.mxu0 0.0
  %2774 = vmatprep.subr.mxu0 0.0
  %2775 = vmatpush1.msra.mxu0 0.0
  %2776 = vmatprep.subr.mxu0 0.0
  %2777 = vmatpush1.msra.mxu0 0.0
  %2778 = vmatprep.subr.mxu0 0.0
  %2779 = vmatpush1.msra.mxu0 0.0
  %2780 = vmatprep.subr.mxu0 0.0
  %2781 = vmatpush1.msra.mxu0 0.0
  %2782 = vmatprep.subr.mxu0 0.0
  %2783 = vmatpush1.msra.mxu0 0.0
  %2784 = vmatprep.subr.mxu0 0.0
  %2785 = vmatpush1.msra.mxu0 0.0
  %2786 = vmatprep.subr.mxu0 0.0
  %2787 = vmatpush1.msra.mxu0 0.0
  %2788 = vmatprep.subr.mxu0 0.0
  %2789 = vmatpush1.msra.mxu0 0.0
  %2790 = vmatprep.subr.mxu0 0.0
  %2791 = vmatpush1.msra.mxu0 0.0
  %2792 = vmatprep.subr.mxu0 0.0
  %2793 = vmatpush1.msra.mxu0 0.0
  %2794 = vmatprep.subr.mxu0 0.0
  %2795 = vmatpush1.msra.mxu0 0.0
  %2796 = vmatprep.subr.mxu0 0.0
  %2797 = vmatpush1.msra.mxu0 0.0
  %2798 = vmatprep.subr.mxu0 0.0
  %2799 = vmatpush1.msra.mxu0 0.0
  %2800 = vmatprep.subr.mxu0 0.0
  %2801 = vmatpush1.msra.mxu0 0.0
  %2802 = vmatprep.subr.mxu0 0.0
  %2803 = vmatpush1.msra.mxu0 0.0
  %2804 = vmatprep.mubr.f32.mxu0 0.0
  %2805 = vmatmul.mubr.f32.gmra.mrb[0].mxu0 %v2735
  %v2806 = vpop.f32.mrb[0].mxu0
  %v2807 = vadd.f32 0.0, %v2806
  %v2808 = vpop.f32.mrb[0].mxu0
  %2809 = vmatprep.mubr.f32.mxu0 0.0
  %2810 = vmatmul.mubr.f32.gmra.mrb[0].mxu0 %v2738
  %v2811 = vpop.f32.mrb[0].mxu0
  %v2812 = vadd.f32 0.0, %v2811
  %v2813 = vpop.f32.mrb[0].mxu0
  %2814 = vdwg.mxu0
  %v2816 = vsel %vm211, %v2807, 0
  %v2819 = vsel %vm211, %v2812, 0
  %2821 = vmatprep.subr.mxu0 0.0
  %2822 = vmatpush1.msra.mxu0 %v1755
  %2823 = vmatprep.subr.mxu0 0.0
  %2824 = vmatpush1.msra.mxu0 0.0
  %2825 = vmatprep.subr.mxu0 0.0
  %2826 = vmatpush1.msra.mxu0 0.0
  %2827 = vmatprep.subr.mxu0 0.0
  %2828 = vmatpush1.msra.mxu0 0.0
  %2829 = vmatprep.subr.mxu0 0.0
  %2830 = vmatpush1.msra.mxu0 0.0
  %2831 = vmatprep.subr.mxu0 0.0
  %2832 = vmatpush1.msra.mxu0 0.0
  %2833 = vmatprep.subr.mxu0 0.0
  %2834 = vmatpush1.msra.mxu0 0.0
  %2835 = vmatprep.subr.mxu0 0.0
  %2836 = vmatpush1.msra.mxu0 0.0
  %2837 = vmatprep.subr.mxu0 0.0
  %2838 = vmatpush1.msra.mxu0 0.0
  %2839 = vmatprep.subr.mxu0 0.0
  %2840 = vmatpush1.msra.mxu0 0.0
  %2841 = vmatprep.subr.mxu0 0.0
  %2842 = vmatpush1.msra.mxu0 0.0
  %2843 = vmatprep.subr.mxu0 0.0
  %2844 = vmatpush1.msra.mxu0 0.0
  %2845 = vmatprep.subr.mxu0 0.0
  %2846 = vmatpush1.msra.mxu0 0.0
  %2847 = vmatprep.subr.mxu0 0.0
  %2848 = vmatpush1.msra.mxu0 0.0
  %2849 = vmatprep.subr.mxu0 0.0
  %2850 = vmatpush1.msra.mxu0 0.0
  %2851 = vmatprep.subr.mxu0 0.0
  %2852 = vmatpush1.msra.mxu0 0.0
  %2853 = vmatprep.subr.mxu0 0.0
  %2854 = vmatpush1.msra.mxu0 0.0
  %2855 = vmatprep.subr.mxu0 0.0
  %2856 = vmatpush1.msra.mxu0 0.0
  %2857 = vmatprep.subr.mxu0 0.0
  %2858 = vmatpush1.msra.mxu0 0.0
  %2859 = vmatprep.subr.mxu0 0.0
  %2860 = vmatpush1.msra.mxu0 0.0
  %2861 = vmatprep.subr.mxu0 0.0
  %2862 = vmatpush1.msra.mxu0 0.0
  %2863 = vmatprep.subr.mxu0 0.0
  %2864 = vmatpush1.msra.mxu0 0.0
  %2865 = vmatprep.subr.mxu0 0.0
  %2866 = vmatpush1.msra.mxu0 0.0
  %2867 = vmatprep.subr.mxu0 0.0
  %2868 = vmatpush1.msra.mxu0 0.0
  %2869 = vmatprep.subr.mxu0 0.0
  %2870 = vmatpush1.msra.mxu0 0.0
  %2871 = vmatprep.subr.mxu0 0.0
  %2872 = vmatpush1.msra.mxu0 0.0
  %2873 = vmatprep.subr.mxu0 0.0
  %2874 = vmatpush1.msra.mxu0 0.0
  %2875 = vmatprep.subr.mxu0 0.0
  %2876 = vmatpush1.msra.mxu0 0.0
  %2877 = vmatprep.subr.mxu0 0.0
  %2878 = vmatpush1.msra.mxu0 0.0
  %2879 = vmatprep.subr.mxu0 0.0
  %2880 = vmatpush1.msra.mxu0 0.0
  %2881 = vmatprep.subr.mxu0 0.0
  %2882 = vmatpush1.msra.mxu0 0.0
  %2883 = vmatprep.subr.mxu0 0.0
  %2884 = vmatpush1.msra.mxu0 0.0
  %2885 = vmatprep.mubr.f32.mxu0 0.0
  %2886 = vmatmul.mubr.f32.gmra.mrb[0].mxu0 %v2816
  %v2887 = vpop.f32.mrb[0].mxu0
  %v2888 = vadd.f32 0.0, %v2887
  %v2889 = vpop.f32.mrb[0].mxu0
  %2890 = vmatprep.mubr.f32.mxu0 0.0
  %2891 = vmatmul.mubr.f32.gmra.mrb[0].mxu0 %v2819
  %v2892 = vpop.f32.mrb[0].mxu0
  %v2893 = vadd.f32 0.0, %v2892
  %v2894 = vpop.f32.mrb[0].mxu0
  %2895 = vdwg.mxu0
  %v2896 = vadd.f32 %v2609, %v2888
  %v2897 = vadd.f32 %v2610, %v2893
  %s2898 = scalar_lea.vmem %s7, 1
  %v2899 = vld [vmem:[%s2898] sm:$0x1]
  %v2901 = vlaneseq
  %v2902 = vshrl.u32 %v2901, 7
  %v2903 = vsub.s32 0, %v2902
  %v2904 = vrot.slane %v2899, %v2903
  %v2906 = vadd.f32 %v2896, %v2904
  %v2907 = vadd.f32 %v2897, %v2904
  %v2908 = vadd.f32 %v1655, %v2906
  %v2909 = vadd.f32 %v1656, %v2907
  %s2910 = scalar_lea.vmem %s8, 1
  %v2911 = vld [vmem:[%s2910] sm:$0x1]
  %s2912 = scalar_lea.vmem %s9, 1
  %v2913 = vld [vmem:[%s2912] sm:$0x1]
  %v2914 = vsel %vm63, %v2908, 0.0
  %2915 = vadd.xlane.f32.xlu0 %v2914
  %v2916 = vpop.xlane.xlu0 %2915
  %v2917 = vsel %vm63, %v2909, 0.0
  %2918 = vadd.xlane.f32.xlu0 %v2917
  %v2919 = vpop.xlane.xlu0 %2918
  %v2920 = vmul.f32 %v2916, %v70
  %v2921 = vmul.f32 %v2919, %v70
  %v2922 = vsub.f32 %v2908, %v2920
  %v2923 = vsub.f32 %v2909, %v2921
  %v2924 = vmul.f32 %v2922, %v2922
  %v2925 = vmul.f32 %v2923, %v2923
  %v2926 = vsel %vm63, %v2924, 0.0
  %2927 = vadd.xlane.f32.xlu0 %v2926
  %v2928 = vpop.xlane.xlu0 %2927
  %v2929 = vsel %vm63, %v2925, 0.0
  %2930 = vadd.xlane.f32.xlu0 %v2929
  %v2931 = vpop.xlane.xlu0 %2930
  %v2932 = vmul.f32 %v2928, %v70
  %v2933 = vmul.f32 %v2931, %v70
  %v2934 = vadd.f32 %v2932, 1e-12
  %v2935 = vadd.f32 %v2933, 1e-12
  %v2936 = vrsqrt.pop %v2934
  %v2937 = vrsqrt.pop %v2935
  %v2938 = vmul.f32 %v2922, %v2936
  %v2939 = vmul.f32 %v2923, %v2937
  %v2941 = vlaneseq
  %v2942 = vshrl.u32 %v2941, 7
  %v2943 = vsub.s32 0, %v2942
  %v2944 = vrot.slane %v2911, %v2943
  %v2946 = vmul.f32 %v2938, %v2944
  %v2947 = vmul.f32 %v2939, %v2944
  %v2949 = vlaneseq
  %v2950 = vshrl.u32 %v2949, 7
  %v2951 = vsub.s32 0, %v2950
  %v2952 = vrot.slane %v2913, %v2951
  %v2954 = vadd.f32 %v2946, %v2952
  %v2955 = vadd.f32 %v2947, %v2952
  %s2956 = scalar_lea.vmem %s10, 32
  %v2957 = vld [vmem:[%s2956] sm:$0xff]
  %v2958 = vld [vmem:[%s2956 + $0x8] sm:$0xff]
  %v2959 = vld [vmem:[%s2956 + $0x10] sm:$0xff]
  %v2960 = vld [vmem:[%s2956 + $0x18] sm:$0xff]
  %s2961 = scalar_lea.vmem %s11, 1
  %v2962 = vld [vmem:[%s2961] sm:$0x1]
  %v2964 = vlaneseq
  %v2965 = vshrl.u32 %v2964, 7
  %v2966 = vsub.s32 0, %v2965
  %v2967 = vrot.slane %v2962, %v2966
  %v2970 = vsel %vm63, %v2954, 0
  %v2973 = vsel %vm63, %v2955, 0
  %2975 = vmatprep.subr.mxu0 0.0
  %2976 = vmatpush1.msra.mxu0 %v2957
  %2977 = vmatprep.subr.mxu0 0.0
  %2978 = vmatpush1.msra.mxu0 %v2958
  %2979 = vmatprep.subr.mxu0 0.0
  %2980 = vmatpush1.msra.mxu0 %v2959
  %2981 = vmatprep.subr.mxu0 0.0
  %2982 = vmatpush1.msra.mxu0 %v2960
  %2983 = vmatprep.subr.mxu0 0.0
  %2984 = vmatpush1.msra.mxu0 0.0
  %2985 = vmatprep.subr.mxu0 0.0
  %2986 = vmatpush1.msra.mxu0 0.0
  %2987 = vmatprep.subr.mxu0 0.0
  %2988 = vmatpush1.msra.mxu0 0.0
  %2989 = vmatprep.subr.mxu0 0.0
  %2990 = vmatpush1.msra.mxu0 0.0
  %2991 = vmatprep.subr.mxu0 0.0
  %2992 = vmatpush1.msra.mxu0 0.0
  %2993 = vmatprep.subr.mxu0 0.0
  %2994 = vmatpush1.msra.mxu0 0.0
  %2995 = vmatprep.subr.mxu0 0.0
  %2996 = vmatpush1.msra.mxu0 0.0
  %2997 = vmatprep.subr.mxu0 0.0
  %2998 = vmatpush1.msra.mxu0 0.0
  %2999 = vmatprep.subr.mxu0 0.0
  %3000 = vmatpush1.msra.mxu0 0.0
  %3001 = vmatprep.subr.mxu0 0.0
  %3002 = vmatpush1.msra.mxu0 0.0
  %3003 = vmatprep.subr.mxu0 0.0
  %3004 = vmatpush1.msra.mxu0 0.0
  %3005 = vmatprep.subr.mxu0 0.0
  %3006 = vmatpush1.msra.mxu0 0.0
  %3007 = vmatprep.subr.mxu0 0.0
  %3008 = vmatpush1.msra.mxu0 0.0
  %3009 = vmatprep.subr.mxu0 0.0
  %3010 = vmatpush1.msra.mxu0 0.0
  %3011 = vmatprep.subr.mxu0 0.0
  %3012 = vmatpush1.msra.mxu0 0.0
  %3013 = vmatprep.subr.mxu0 0.0
  %3014 = vmatpush1.msra.mxu0 0.0
  %3015 = vmatprep.subr.mxu0 0.0
  %3016 = vmatpush1.msra.mxu0 0.0
  %3017 = vmatprep.subr.mxu0 0.0
  %3018 = vmatpush1.msra.mxu0 0.0
  %3019 = vmatprep.subr.mxu0 0.0
  %3020 = vmatpush1.msra.mxu0 0.0
  %3021 = vmatprep.subr.mxu0 0.0
  %3022 = vmatpush1.msra.mxu0 0.0
  %3023 = vmatprep.subr.mxu0 0.0
  %3024 = vmatpush1.msra.mxu0 0.0
  %3025 = vmatprep.subr.mxu0 0.0
  %3026 = vmatpush1.msra.mxu0 0.0
  %3027 = vmatprep.subr.mxu0 0.0
  %3028 = vmatpush1.msra.mxu0 0.0
  %3029 = vmatprep.subr.mxu0 0.0
  %3030 = vmatpush1.msra.mxu0 0.0
  %3031 = vmatprep.subr.mxu0 0.0
  %3032 = vmatpush1.msra.mxu0 0.0
  %3033 = vmatprep.subr.mxu0 0.0
  %3034 = vmatpush1.msra.mxu0 0.0
  %3035 = vmatprep.subr.mxu0 0.0
  %3036 = vmatpush1.msra.mxu0 0.0
  %3037 = vmatprep.subr.mxu0 0.0
  %3038 = vmatpush1.msra.mxu0 0.0
  %3039 = vmatprep.mubr.f32.mxu0 0.0
  %3040 = vmatmul.mubr.f32.gmra.mrb[0].mxu0 %v2970
  %v3041 = vpop.f32.mrb[0].mxu0
  %v3042 = vadd.f32 %v2967, %v3041
  %v3043 = vpop.f32.mrb[0].mxu0
  %3044 = vmatprep.mubr.f32.mxu0 0.0
  %3045 = vmatmul.mubr.f32.gmra.mrb[0].mxu0 %v2973
  %v3046 = vpop.f32.mrb[0].mxu0
  %v3047 = vadd.f32 %v2967, %v3046
  %v3048 = vpop.f32.mrb[0].mxu0
  %3049 = vdwg.mxu0
  %v3050 = vmul.f32 %v3042, 0.5
  %v3051 = vmul.f32 %v3047, 0.5
  %v3052 = vmul.f32 %v3042, 0.044715
  %v3053 = vmul.f32 %v3047, 0.044715
  %v3054 = vmul.f32 %v3052, %v3042
  %v3055 = vmul.f32 %v3053, %v3047
  %v3056 = vmul.f32 %v3054, %v3042
  %v3057 = vmul.f32 %v3055, %v3047
  %v3058 = vadd.f32 %v3042, %v3056
  %v3059 = vadd.f32 %v3047, %v3057
  %v3060 = vmul.f32 %v3058, 0.7978846
  %v3061 = vmul.f32 %v3059, 0.7978846
  %v3062 = vtanh.pop %v3060
  %v3063 = vtanh.pop %v3061
  %v3064 = vadd.f32 %v3062, 1.0
  %v3065 = vadd.f32 %v3063, 1.0
  %v3066 = vmul.f32 %v3050, %v3064
  %v3067 = vmul.f32 %v3051, %v3065
  %s3068 = scalar_lea.vmem %s12, 64
  %v3069 = vld [vmem:[%s3068] sm:$0xff]
  %v3070 = vld [vmem:[%s3068 + $0x8] sm:$0xff]
  %v3071 = vld [vmem:[%s3068 + $0x10] sm:$0xff]
  %v3072 = vld [vmem:[%s3068 + $0x18] sm:$0xff]
  %v3073 = vld [vmem:[%s3068 + $0x20] sm:$0xff]
  %v3074 = vld [vmem:[%s3068 + $0x28] sm:$0xff]
  %v3075 = vld [vmem:[%s3068 + $0x30] sm:$0xff]
  %v3076 = vld [vmem:[%s3068 + $0x38] sm:$0xff]
  %s3077 = scalar_lea.vmem %s13, 1
  %v3078 = vld [vmem:[%s3077] sm:$0x1]
  %v3080 = vlaneseq
  %v3081 = vshrl.u32 %v3080, 7
  %v3082 = vsub.s32 0, %v3081
  %v3083 = vrot.slane %v3078, %v3082
  %v3086 = vsel %vm1529, %v3066, 0
  %v3089 = vsel %vm1529, %v3067, 0
  %3091 = vmatprep.subr.mxu0 0.0
  %3092 = vmatpush1.msra.mxu0 %v3069
  %3093 = vmatprep.subr.mxu0 0.0
  %3094 = vmatpush1.msra.mxu0 %v3070
  %3095 = vmatprep.subr.mxu0 0.0
  %3096 = vmatpush1.msra.mxu0 %v3071
  %3097 = vmatprep.subr.mxu0 0.0
  %3098 = vmatpush1.msra.mxu0 %v3072
  %3099 = vmatprep.subr.mxu0 0.0
  %3100 = vmatpush1.msra.mxu0 %v3073
  %3101 = vmatprep.subr.mxu0 0.0
  %3102 = vmatpush1.msra.mxu0 %v3074
  %3103 = vmatprep.subr.mxu0 0.0
  %3104 = vmatpush1.msra.mxu0 %v3075
  %3105 = vmatprep.subr.mxu0 0.0
  %3106 = vmatpush1.msra.mxu0 %v3076
  %3107 = vmatprep.subr.mxu0 0.0
  %3108 = vmatpush1.msra.mxu0 0.0
  %3109 = vmatprep.subr.mxu0 0.0
  %3110 = vmatpush1.msra.mxu0 0.0
  %3111 = vmatprep.subr.mxu0 0.0
  %3112 = vmatpush1.msra.mxu0 0.0
  %3113 = vmatprep.subr.mxu0 0.0
  %3114 = vmatpush1.msra.mxu0 0.0
  %3115 = vmatprep.subr.mxu0 0.0
  %3116 = vmatpush1.msra.mxu0 0.0
  %3117 = vmatprep.subr.mxu0 0.0
  %3118 = vmatpush1.msra.mxu0 0.0
  %3119 = vmatprep.subr.mxu0 0.0
  %3120 = vmatpush1.msra.mxu0 0.0
  %3121 = vmatprep.subr.mxu0 0.0
  %3122 = vmatpush1.msra.mxu0 0.0
  %3123 = vmatprep.subr.mxu0 0.0
  %3124 = vmatpush1.msra.mxu0 0.0
  %3125 = vmatprep.subr.mxu0 0.0
  %3126 = vmatpush1.msra.mxu0 0.0
  %3127 = vmatprep.subr.mxu0 0.0
  %3128 = vmatpush1.msra.mxu0 0.0
  %3129 = vmatprep.subr.mxu0 0.0
  %3130 = vmatpush1.msra.mxu0 0.0
  %3131 = vmatprep.subr.mxu0 0.0
  %3132 = vmatpush1.msra.mxu0 0.0
  %3133 = vmatprep.subr.mxu0 0.0
  %3134 = vmatpush1.msra.mxu0 0.0
  %3135 = vmatprep.subr.mxu0 0.0
  %3136 = vmatpush1.msra.mxu0 0.0
  %3137 = vmatprep.subr.mxu0 0.0
  %3138 = vmatpush1.msra.mxu0 0.0
  %3139 = vmatprep.subr.mxu0 0.0
  %3140 = vmatpush1.msra.mxu0 0.0
  %3141 = vmatprep.subr.mxu0 0.0
  %3142 = vmatpush1.msra.mxu0 0.0
  %3143 = vmatprep.subr.mxu0 0.0
  %3144 = vmatpush1.msra.mxu0 0.0
  %3145 = vmatprep.subr.mxu0 0.0
  %3146 = vmatpush1.msra.mxu0 0.0
  %3147 = vmatprep.subr.mxu0 0.0
  %3148 = vmatpush1.msra.mxu0 0.0
  %3149 = vmatprep.subr.mxu0 0.0
  %3150 = vmatpush1.msra.mxu0 0.0
  %3151 = vmatprep.subr.mxu0 0.0
  %3152 = vmatpush1.msra.mxu0 0.0
  %3153 = vmatprep.subr.mxu0 0.0
  %3154 = vmatpush1.msra.mxu0 0.0
  %3155 = vmatprep.mubr.f32.mxu0 0.0
  %3156 = vmatmul.mubr.f32.gmra.mrb[0].mxu0 %v3086
  %v3157 = vpop.f32.mrb[0].mxu0
  %v3158 = vadd.f32 %v3083, %v3157
  %v3159 = vpop.f32.mrb[0].mxu0
  %3160 = vmatprep.mubr.f32.mxu0 0.0
  %3161 = vmatmul.mubr.f32.gmra.mrb[0].mxu0 %v3089
  %v3162 = vpop.f32.mrb[0].mxu0
  %v3163 = vadd.f32 %v3083, %v3162
  %v3164 = vpop.f32.mrb[0].mxu0
  %3165 = vdwg.mxu0
  %v3166 = vadd.f32 %v2954, %v3158
  %v3167 = vadd.f32 %v2955, %v3163
  %s3168 = scalar_lea.vmem %s14, 1
  %v3169 = vld [vmem:[%s3168] sm:$0x1]
  %s3170 = scalar_lea.vmem %s15, 1
  %v3171 = vld [vmem:[%s3170] sm:$0x1]
  %v3172 = vsel %vm63, %v3166, 0.0
  %3173 = vadd.xlane.f32.xlu0 %v3172
  %v3174 = vpop.xlane.xlu0 %3173
  %v3175 = vsel %vm63, %v3167, 0.0
  %3176 = vadd.xlane.f32.xlu0 %v3175
  %v3177 = vpop.xlane.xlu0 %3176
  %v3178 = vmul.f32 %v3174, %v70
  %v3179 = vmul.f32 %v3177, %v70
  %v3180 = vsub.f32 %v3166, %v3178
  %v3181 = vsub.f32 %v3167, %v3179
  %v3182 = vmul.f32 %v3180, %v3180
  %v3183 = vmul.f32 %v3181, %v3181
  %v3184 = vsel %vm63, %v3182, 0.0
  %3185 = vadd.xlane.f32.xlu0 %v3184
  %v3186 = vpop.xlane.xlu0 %3185
  %v3187 = vsel %vm63, %v3183, 0.0
  %3188 = vadd.xlane.f32.xlu0 %v3187
  %v3189 = vpop.xlane.xlu0 %3188
  %v3190 = vmul.f32 %v3186, %v70
  %v3191 = vmul.f32 %v3189, %v70
  %v3192 = vadd.f32 %v3190, 1e-12
  %v3193 = vadd.f32 %v3191, 1e-12
  %v3194 = vrsqrt.pop %v3192
  %v3195 = vrsqrt.pop %v3193
  %v3196 = vmul.f32 %v3180, %v3194
  %v3197 = vmul.f32 %v3181, %v3195
  %v3199 = vlaneseq
  %v3200 = vshrl.u32 %v3199, 7
  %v3201 = vsub.s32 0, %v3200
  %v3202 = vrot.slane %v3169, %v3201
  %v3204 = vmul.f32 %v3196, %v3202
  %v3205 = vmul.f32 %v3197, %v3202
  %v3207 = vlaneseq
  %v3208 = vshrl.u32 %v3207, 7
  %v3209 = vsub.s32 0, %v3208
  %v3210 = vrot.slane %v3171, %v3209
  %v3212 = vadd.f32 %v3204, %v3210
  %v3213 = vadd.f32 %v3205, %v3210
  %v3214 = vld [vmem:[%s16] sm:$0xff]
  %v3215 = vld [vmem:[%s16 + $0x8] sm:$0xff]
  %v3216 = vld [vmem:[%s16 + $0x10] sm:$0xff]
  %v3217 = vld [vmem:[%s16 + $0x18] sm:$0xff]
  %v3218 = vld [vmem:[%s17] sm:$0x1]
  %v3220 = vlaneseq
  %v3221 = vshrl.u32 %v3220, 7
  %v3222 = vsub.s32 0, %v3221
  %v3223 = vrot.slane %v3218, %v3222
  %v3226 = vsel %vm63, %v3212, 0
  %v3229 = vsel %vm63, %v3213, 0
  %3231 = vmatprep.subr.mxu0 0.0
  %3232 = vmatpush1.msra.mxu0 %v3214
  %3233 = vmatprep.subr.mxu0 0.0
  %3234 = vmatpush1.msra.mxu0 %v3215
  %3235 = vmatprep.subr.mxu0 0.0
  %3236 = vmatpush1.msra.mxu0 %v3216
  %3237 = vmatprep.subr.mxu0 0.0
  %3238 = vmatpush1.msra.mxu0 %v3217
  %3239 = vmatprep.subr.mxu0 0.0
  %3240 = vmatpush1.msra.mxu0 0.0
  %3241 = vmatprep.subr.mxu0 0.0
  %3242 = vmatpush1.msra.mxu0 0.0
  %3243 = vmatprep.subr.mxu0 0.0
  %3244 = vmatpush1.msra.mxu0 0.0
  %3245 = vmatprep.subr.mxu0 0.0
  %3246 = vmatpush1.msra.mxu0 0.0
  %3247 = vmatprep.subr.mxu0 0.0
  %3248 = vmatpush1.msra.mxu0 0.0
  %3249 = vmatprep.subr.mxu0 0.0
  %3250 = vmatpush1.msra.mxu0 0.0
  %3251 = vmatprep.subr.mxu0 0.0
  %3252 = vmatpush1.msra.mxu0 0.0
  %3253 = vmatprep.subr.mxu0 0.0
  %3254 = vmatpush1.msra.mxu0 0.0
  %3255 = vmatprep.subr.mxu0 0.0
  %3256 = vmatpush1.msra.mxu0 0.0
  %3257 = vmatprep.subr.mxu0 0.0
  %3258 = vmatpush1.msra.mxu0 0.0
  %3259 = vmatprep.subr.mxu0 0.0
  %3260 = vmatpush1.msra.mxu0 0.0
  %3261 = vmatprep.subr.mxu0 0.0
  %3262 = vmatpush1.msra.mxu0 0.0
  %3263 = vmatprep.subr.mxu0 0.0
  %3264 = vmatpush1.msra.mxu0 0.0
  %3265 = vmatprep.subr.mxu0 0.0
  %3266 = vmatpush1.msra.mxu0 0.0
  %3267 = vmatprep.subr.mxu0 0.0
  %3268 = vmatpush1.msra.mxu0 0.0
  %3269 = vmatprep.subr.mxu0 0.0
  %3270 = vmatpush1.msra.mxu0 0.0
  %3271 = vmatprep.subr.mxu0 0.0
  %3272 = vmatpush1.msra.mxu0 0.0
  %3273 = vmatprep.subr.mxu0 0.0
  %3274 = vmatpush1.msra.mxu0 0.0
  %3275 = vmatprep.subr.mxu0 0.0
  %3276 = vmatpush1.msra.mxu0 0.0
  %3277 = vmatprep.subr.mxu0 0.0
  %3278 = vmatpush1.msra.mxu0 0.0
  %3279 = vmatprep.subr.mxu0 0.0
  %3280 = vmatpush1.msra.mxu0 0.0
  %3281 = vmatprep.subr.mxu0 0.0
  %3282 = vmatpush1.msra.mxu0 0.0
  %3283 = vmatprep.subr.mxu0 0.0
  %3284 = vmatpush1.msra.mxu0 0.0
  %3285 = vmatprep.subr.mxu0 0.0
  %3286 = vmatpush1.msra.mxu0 0.0
  %3287 = vmatprep.subr.mxu0 0.0
  %3288 = vmatpush1.msra.mxu0 0.0
  %3289 = vmatprep.subr.mxu0 0.0
  %3290 = vmatpush1.msra.mxu0 0.0
  %3291 = vmatprep.subr.mxu0 0.0
  %3292 = vmatpush1.msra.mxu0 0.0
  %3293 = vmatprep.subr.mxu0 0.0
  %3294 = vmatpush1.msra.mxu0 0.0
  %3295 = vmatprep.mubr.f32.mxu0 0.0
  %3296 = vmatmul.mubr.f32.gmra.mrb[0].mxu0 %v3226
  %v3297 = vpop.f32.mrb[0].mxu0
  %v3298 = vadd.f32 %v3223, %v3297
  %v3299 = vpop.f32.mrb[0].mxu0
  %3300 = vmatprep.mubr.f32.mxu0 0.0
  %3301 = vmatmul.mubr.f32.gmra.mrb[0].mxu0 %v3229
  %v3302 = vpop.f32.mrb[0].mxu0
  %v3303 = vadd.f32 %v3223, %v3302
  %v3304 = vpop.f32.mrb[0].mxu0
  %3305 = vdwg.mxu0
  %3306 = vxpose.xlu0.b32.start [1/16] %v3298, 128
  %3307 = vxpose.xlu0.b32.cont [2/16] %v3303, 128
  %3308 = vxpose.xlu0.b32.cont [3/16] 0.0, 128
  %3309 = vxpose.xlu0.b32.cont [4/16] 0.0, 128
  %3310 = vxpose.xlu0.b32.cont [5/16] 0.0, 128
  %3311 = vxpose.xlu0.b32.cont [6/16] 0.0, 128
  %3312 = vxpose.xlu0.b32.cont [7/16] 0.0, 128
  %3313 = vxpose.xlu0.b32.cont [8/16] 0.0, 128
  %3314 = vxpose.xlu0.b32.cont [9/16] 0.0, 128
  %3315 = vxpose.xlu0.b32.cont [10/16] 0.0, 128
  %3316 = vxpose.xlu0.b32.cont [11/16] 0.0, 128
  %3317 = vxpose.xlu0.b32.cont [12/16] 0.0, 128
  %3318 = vxpose.xlu0.b32.cont [13/16] 0.0, 128
  %3319 = vxpose.xlu0.b32.cont [14/16] 0.0, 128
  %3320 = vxpose.xlu0.b32.cont [15/16] 0.0, 128
  %3321 = vxpose.xlu0.b32.end [16/16] 0.0, 128
  %v3322 = vpop.trf.xlu0
  %v3323 = vpop.trf.xlu0
  %v3324 = vpop.trf.xlu0
  %v3325 = vpop.trf.xlu0
  %v3326 = vpop.trf.xlu0
  %v3327 = vpop.trf.xlu0
  %v3328 = vpop.trf.xlu0
  %v3329 = vpop.trf.xlu0
  %v3330 = vpop.trf.xlu0
  %v3331 = vpop.trf.xlu0
  %v3332 = vpop.trf.xlu0
  %v3333 = vpop.trf.xlu0
  %v3334 = vpop.trf.xlu0
  %v3335 = vpop.trf.xlu0
  %v3336 = vpop.trf.xlu0
  %v3337 = vpop.trf.xlu0
  %vm3338 = vcmask 123904
  %3339 = vst.msk [vmem:[%s18] sm:$0x3] %vm3338, %v3322
  // Predicated region
  $region74: #{bert_qa_forward.1} parent=0 // pred_check
    _
  $region75: #{bert_qa_forward.1} parent=0 // pred_check_branch
    %3341 = sbr.rel (0) target = $region77
  $region76: #{bert_qa_forward.1} parent=0 // pred_region
    _
  $region77: #{bert_qa_forward.1} parent=0 // pred_fallthru
    _
  // Predicated region
  $region78: #{bert_qa_forward.1} parent=0 // pred_check
    _
  $region79: #{bert_qa_forward.1} parent=0 // pred_check_branch
    %3343 = sbr.rel (0) target = $region81
  $region80: #{bert_qa_forward.1} parent=0 // pred_region
    _
  $region81: #{bert_qa_forward.1} parent=0 // pred_fallthru
    _

</llo_original>
